<compile_context>
chip_gen: v7x
topology: tpu7x:2x2x1
jax: 0.10.0
libtpu: 0.0.40
codegen_flags: <defaults>
</compile_context>

<pallas_src>
import functools
import math

import numpy as np
import jax
import jax.numpy as jnp
from jax.experimental import pallas as pl
from jax.experimental.pallas import tpu as pltpu  # noqa: F401  (TPU backend)

# ----------------------------- configuration (cfg.MODEL.*) -----------------------------
N_KP = 14          # ROI_KEYPOINT_HEAD.NUM_CLASSES (the projection code hardcodes 14)
DIMS = 2           # ROI_GRAPH_HEAD.DIMS
HID = 32           # ENCODER_HIDDEN == DECODER_HIDDEN
EDGE_TYPES = 2     # ROI_GRAPH_HEAD.EDGE_TYPES
PARAMS_3D = 12     # 7 cam params + 5 PCA shape-basis coefficients
SKIP_FIRST = False # ROI_GRAPH_HEAD.SKIP_FIRST
N_EDGE = N_KP * (N_KP - 1)               # 182
BN_SCALE = 1.0 / math.sqrt(1.0 + 1e-5)   # eval-mode BatchNorm1d with default running stats
# TODO(synk): a trained checkpoint's BatchNorm running mean/var + affine params must be
# folded into each MLP's fc2 weight/bias host-side; default (untrained) stats assumed here.


# -------------------------- geometry glue (tiny XLA epilogue) --------------------------
def build_shape(mean_shape):
    """Mean-shape mirroring / zero-keypoint insertion (shape glue only)."""
    shape = mean_shape.reshape(6, 3)
    shape6 = jnp.concatenate([shape, shape], axis=1)                  # (6, 6)
    shape6 = shape6.at[:, 5].set(-shape6[:, 5])
    shape12 = shape6.reshape(12, 3)
    b0 = jnp.zeros((1, 3), jnp.float32)
    shape13 = jnp.concatenate([shape12[:8], b0, shape12[8:]], axis=0)
    return jnp.concatenate([shape13, b0], axis=0)                     # (14, 3)


def hamilton_product(qa, qb):
    a0, a1, a2, a3 = qa[..., 0], qa[..., 1], qa[..., 2], qa[..., 3]
    b0, b1, b2, b3 = qb[..., 0], qb[..., 1], qb[..., 2], qb[..., 3]
    return jnp.stack([a0 * b0 - a1 * b1 - a2 * b2 - a3 * b3,
                      a0 * b1 + a1 * b0 + a2 * b3 - a3 * b2,
                      a0 * b2 - a1 * b3 + a2 * b0 + a3 * b1,
                      a0 * b3 + a1 * b2 - a2 * b1 + a3 * b0], axis=-1)


def quat_rotate(X, q):
    q = jnp.broadcast_to(q[:, None, :], X.shape[:2] + (4,))
    q_conj = jnp.concatenate([q[..., :1], -q[..., 1:4]], axis=-1)
    Xq = jnp.concatenate([jnp.zeros_like(X[..., :1]), X], axis=-1)
    return hamilton_product(q, hamilton_product(Xq, q_conj))[..., 1:4]


def orthographic_proj_withz(X, cam, ratio, offset_z=0.0):
    X_rot = quat_rotate(X, cam[:, -4:])
    scale = cam[:, 0].reshape(-1, 1, 1)
    trans = cam[:, 1:3].reshape(cam.shape[0], 1, 2)
    proj = scale * X_rot
    proj_xy = proj[:, :, :2] + trans
    proj_z = proj[:, :, 2:3] + offset_z
    r = ratio.reshape(-1, 1, 1) * jnp.ones((1, X.shape[1], 1), X.dtype)
    proj_xy = proj_xy * jnp.concatenate([jnp.ones_like(r), r], axis=2)
    return jnp.concatenate([proj_xy, proj_z], axis=2)


# --------------------- one-time weight packing + fused kernel builder ---------------------
def make_forward(params, rel_rec, rel_send, batch):
    """Packs all weights / relation matrices ONCE and returns a jitted fwd(x, ratio)."""
    B = batch
    BN = B * N_KP                      # nodes folded into the lane axis
    BE = B * N_EDGE                    # edges folded into the lane axis
    EP = ((BE + 127) // 128) * 128     # edge lane width, 128-aligned (384 for B=2)

    f32 = np.float32
    enc, rtp, dec = params["encoder"], params["encoder_rt"], params["decoder"]

    def A(x):
        return np.asarray(x, f32)

    def T(x):
        return A(x).T

    def bdiag(a, b):
        out = np.zeros((a.shape[0] + b.shape[0], a.shape[1] + b.shape[1]), f32)
        out[:a.shape[0], :a.shape[1]] = a
        out[a.shape[0]:, a.shape[1]:] = b
        return out

    # ---- relation matrices: batch-block-diagonal, merged [send | recv] along lanes ----
    rr_blk = np.kron(np.eye(B, dtype=f32), A(rel_rec))     # (BE, BN)
    rs_blk = np.kron(np.eye(B, dtype=f32), A(rel_send))
    gatherT = np.zeros((BN, 2 * EP), f32)
    gatherT[:, :BE] = rs_blk.T                              # send window at lanes [0, EP)
    gatherT[:, EP:EP + BE] = rr_blk.T                       # recv window at lanes [EP, 2EP)
    rr_pad = np.zeros((EP, BN), f32)                        # edge->node (zero-padded rows)
    rr_pad[:BE] = rr_blk

    # ---- stacked / block-diagonal weights (enc rows 0:HID, encoder_rt rows HID:2*HID) ----
    w_entries, b_entries = [], []

    def add_w(name, arr):
        w_entries.append((name, A(arr)))

    def add_b(name, *vecs):
        b_entries.append((name, np.concatenate([A(v).reshape(-1) for v in vecs])))

    def fc1_blk(m, lo, hi):            # split-K part of a stacked mlp fc1, block-diagonal
        return bdiag(T(A(enc[m]["w1"])[lo:hi]), T(A(rtp[m]["w1"])[lo:hi]))

    # mlp1 shares the raw x input -> vertical stack; mlp2/3/4 consume stacked features
    add_w("t1.w1", np.vstack([T(enc["mlp1"]["w1"]), T(rtp["mlp1"]["w1"])]))      # (64, 2)
    add_w("t2.w1s", fc1_blk("mlp2", 0, HID))
    add_w("t2.w1r", fc1_blk("mlp2", HID, 2 * HID))
    add_w("t3.w1", fc1_blk("mlp3", 0, HID))
    add_w("t4.w1s", fc1_blk("mlp4", 0, HID))
    add_w("t4.w1r", fc1_blk("mlp4", HID, 2 * HID))
    add_w("t4.w1k", fc1_blk("mlp4", 2 * HID, 3 * HID))
    for tag, m in (("t1", "mlp1"), ("t2", "mlp2"), ("t3", "mlp3"), ("t4", "mlp4")):
        add_b(tag + ".b1", enc[m]["b1"], rtp[m]["b1"])
        add_w(tag + ".w2", bdiag(T(enc[m]["w2"]), T(rtp[m]["w2"])))
        add_b(tag + ".b2", enc[m]["b2"], rtp[m]["b2"])
    add_w("efc.w", T(enc["fc_out_w"]))                                           # (2, 32)
    add_b("efc.b", enc["fc_out_b"])

    # decoder: per-edge-type message MLPs stacked (fc1) / block-diagonal (fc2)
    add_w("d.m1ws", np.vstack([T(A(dec["msg_w1"][i])[:DIMS]) for i in range(EDGE_TYPES)]))
    add_w("d.m1wr", np.vstack([T(A(dec["msg_w1"][i])[DIMS:]) for i in range(EDGE_TYPES)]))
    add_b("d.m1b", *[dec["msg_b1"][i] for i in range(EDGE_TYPES)])
    m2w = T(dec["msg_w2"][0])
    for i in range(1, EDGE_TYPES):
        m2w = bdiag(m2w, T(dec["msg_w2"][i]))
    add_w("d.m2w", m2w)
    add_b("d.m2b", *[dec["msg_b2"][i] for i in range(EDGE_TYPES)])
    add_w("d.o1wx", T(A(dec["out_w1"])[:DIMS]))
    add_w("d.o1wa", T(A(dec["out_w1"])[DIMS:]))
    add_b("d.o1b", dec["out_b1"])
    add_w("d.o2w", T(dec["out_w2"]))
    add_b("d.o2b", dec["out_b2"])
    add_w("d.o3w", T(dec["out_w3"]))
    add_b("d.o3b", dec["out_b3"])

    # ---- pack into two VMEM slabs: (NW, 64, 128) bf16 weights + (64, NB) f32 biases ----
    OUT_PAD, K_PAD = 2 * HID, 128
    wslab = np.zeros((len(w_entries), OUT_PAD, K_PAD), f32)
    w_meta = {}
    for i, (name, arr) in enumerate(w_entries):
        o, k = arr.shape
        wslab[i, :o, :k] = arr
        w_meta[name] = (i, o, k)
    bslab = np.zeros((OUT_PAD, len(b_entries)), f32)
    b_meta = {}
    for j, (name, vec) in enumerate(b_entries):
        bslab[:vec.shape[0], j] = vec
        b_meta[name] = (j, vec.shape[0])

    gatherT_d = jnp.asarray(gatherT, jnp.bfloat16)   # 0/1 entries -> exact in bf16
    rr_d = jnp.asarray(rr_pad, jnp.bfloat16)
    wslab_d = jnp.asarray(wslab, jnp.bfloat16)
    bslab_d = jnp.asarray(bslab, jnp.float32)

    # epilogue constants (tiny XLA tail)
    rt_w3 = jnp.asarray(rtp["fc_out_w"], jnp.float32).reshape(N_EDGE, HID, PARAMS_3D)
    rt_b = jnp.asarray(rtp["fc_out_b"], jnp.float32)
    shape14 = build_shape(jnp.asarray(params["mean_shape"], jnp.float32))        # (14, 3)

    # ----------------------------------- fused kernel -----------------------------------
    def kernel(x_ref, gat_ref, rr_ref, w_ref, b_ref, logits_ref, kgnn_ref, e2rt_ref):
        bf16, f32j = jnp.bfloat16, jnp.float32

        def W(name):
            i, o, k = w_meta[name]
            return w_ref[i][:o, :k]                              # bf16 (o, k)

        def Bc(name):
            j, o = b_meta[name]
            return b_ref[:o, j:j + 1]                            # f32 (o, 1)

        def dot(a, b):                                           # bf16 MXU, f32 accumulate
            return jnp.dot(a.astype(bf16), b.astype(bf16), preferred_element_type=f32j)

        def elu(z):
            return jnp.where(z > 0, z, jnp.exp(jnp.minimum(z, 0.0)) - 1.0)

        def mlp(tag, z):                                         # NRI MLP, eval mode
            h = elu(z + Bc(tag + ".b1"))                         # dropout == identity
            return elu(dot(W(tag + ".w2"), h) + Bc(tag + ".b2")) * BN_SCALE

        xT = x_ref[...]                                          # (DIMS, BN) f32
        gat = gat_ref[...]                                       # (BN, 2*EP) bf16
        rrm = rr_ref[...]                                        # (EP, BN)  bf16

        def node2edge(a):                                        # one merged gather matmul
            ser = dot(a, gat)                                    # (rows, 2*EP)
            return ser[:, :EP], ser[:, EP:]                      # send, recv (aligned split)

        # ---- stacked GraphEncoder + GraphEncoder3D trunk (rows 0:HID enc, HID: rt) ----
        h = mlp("t1", dot(W("t1.w1"), xT))                                       # (64, BN)
        s, r = node2edge(h)
        e = mlp("t2", dot(W("t2.w1s"), s) + dot(W("t2.w1r"), r))                  # (64, EP)
        n = mlp("t3", dot(W("t3.w1"), dot(e, rrm)) * (1.0 / N_KP))                # (64, BN)
        s2, r2 = node2edge(n)
        e2 = mlp("t4", dot(W("t4.w1s"), s2) + dot(W("t4.w1r"), r2)
                 + dot(W("t4.w1k"), e))                                           # (64, EP)

        logitsT = dot(W("efc.w"), e2[:HID, :]) + Bc("efc.b")                      # (ET, EP)
        logits_ref[...] = logitsT[:, :BE]
        e2rt_ref[...] = e2[HID:, :BE]                                             # rt trunk out

        # 2-class softmax == sigmoid of the logit difference (EUP; no XLU reductions)
        p1 = pl.reciprocal(1.0 + jnp.exp(logitsT[0:1, :] - logitsT[1:2, :]), approx=True)
        p0 = 1.0 - p1

        # --------------- GraphDecoder (single step, stacked message MLPs) ---------------
        sx, rx = node2edge(xT)                                                    # (DIMS, EP)
        m1 = jnp.maximum(dot(W("d.m1ws"), sx) + dot(W("d.m1wr"), rx)
                         + Bc("d.m1b"), 0.0)                                      # (ET*HID, EP)
        m2 = jnp.maximum(dot(W("d.m2w"), m1) + Bc("d.m2b"), 0.0)
        msgs = m2[HID:2 * HID, :] * p1
        if not SKIP_FIRST:
            msgs = msgs + m2[:HID, :] * p0                                        # (HID, EP)
        agg = dot(msgs, rrm)                                                      # (HID, BN)
        q1 = jnp.maximum(dot(W("d.o1wx"), xT) + dot(W("d.o1wa"), agg)
                         + Bc("d.o1b"), 0.0)
        q2 = jnp.maximum(dot(W("d.o2w"), q1) + Bc("d.o2b"), 0.0)
        q3 = dot(W("d.o3w"), q2) + Bc("d.o3b")                                    # (DIMS, BN)
        kgnn_ref[...] = xT + q3

    # TODO(synk): on v7x (2 TensorCores) a batch-parallel grid over ROI blocks with
    # dimension_semantics=("parallel",) would use the second core; not worth it at B=2.
    graph_core = pl.pallas_call(
        kernel,
        out_shape=(
            jax.ShapeDtypeStruct((EDGE_TYPES, BE), jnp.float32),   # logits^T
            jax.ShapeDtypeStruct((DIMS, BN), jnp.float32),         # kgnn2d^T
            jax.ShapeDtypeStruct((HID, BE), jnp.float32),          # encoder_rt mlp4 out^T
        ),
    )

    def fwd(x, ratio):
        xT = jnp.transpose(x.reshape(B * N_KP, DIMS)).astype(jnp.float32)
        logitsT, kgnnT, e2rtT = graph_core(xT, gatherT_d, rr_d, wslab_d, bslab_d)
        logits = jnp.transpose(logitsT).reshape(B, N_EDGE, EDGE_TYPES)
        kgnn2d = jnp.transpose(kgnnT).reshape(B, N_KP, DIMS)
        # GraphEncoder3D head: consume the (HID, B*N_EDGE) trunk output directly (no
        # materialized transpose) via a single contraction over (hid, edge).
        rt = jnp.einsum("hbe,ehp->bp", e2rtT.reshape(HID, B, N_EDGE), rt_w3) + rt_b
        # shape_basis = rt[:, 7:]   (computed but unused in the PyTorch forward)
        X = jnp.broadcast_to(shape14[None], (B, N_KP, 3))
        projected_points = orthographic_proj_withz(X, rt[:, :7], ratio)
        return logits, kgnn2d, projected_points

    return jax.jit(fwd)


# -------------------------- plain-jnp reference (for validation) --------------------------
def reference_forward(params, x, ratio, rel_rec, rel_send):
    B = x.shape[0]

    def elu(v):
        return jnp.where(v > 0, v, jnp.exp(jnp.minimum(v, 0.0)) - 1.0)

    def mlp(p, v):
        h = elu(v @ p["w1"] + p["b1"])
        return elu(h @ p["w2"] + p["b2"]) * BN_SCALE

    def node2edge(h):
        send = jnp.einsum("en,bnh->beh", rel_send, h)
        recv = jnp.einsum("en,bnh->beh", rel_rec, h)
        return jnp.concatenate([send, recv], axis=-1)

    def trunk(p):
        h = mlp(p["mlp1"], x)
        e = mlp(p["mlp2"], node2edge(h))
        n = mlp(p["mlp3"], jnp.einsum("en,beh->bnh", rel_rec, e) / N_KP)
        return mlp(p["mlp4"], jnp.concatenate([node2edge(n), e], axis=-1))

    enc = params["encoder"]
    logits = trunk(enc) @ enc["fc_out_w"] + enc["fc_out_b"]
    edges = jax.nn.softmax(logits, axis=-1)

    dec = params["decoder"]
    pre = jnp.concatenate([jnp.einsum("en,bnd->bed", rel_send, x),
                           jnp.einsum("en,bnd->bed", rel_rec, x)], axis=-1)
    all_msgs = jnp.zeros((B, N_EDGE, HID), jnp.float32)
    for i in range(1 if SKIP_FIRST else 0, EDGE_TYPES):
        m = jnp.maximum(pre @ dec["msg_w1"][i] + dec["msg_b1"][i], 0.0)
        m = jnp.maximum(m @ dec["msg_w2"][i] + dec["msg_b2"][i], 0.0)
        all_msgs = all_msgs + m * edges[..., i:i + 1]
    agg = jnp.einsum("en,beh->bnh", rel_rec, all_msgs)
    aug = jnp.concatenate([x, agg], axis=-1)
    pred = jnp.maximum(aug @ dec["out_w1"] + dec["out_b1"], 0.0)
    pred = jnp.maximum(pred @ dec["out_w2"] + dec["out_b2"], 0.0)
    kgnn2d = x + (pred @ dec["out_w3"] + dec["out_b3"])

    rtp = params["encoder_rt"]
    rt = trunk(rtp).reshape(B, -1) @ rtp["fc_out_w"] + rtp["fc_out_b"]
    shape14 = build_shape(params["mean_shape"])
    X = jnp.broadcast_to(shape14[None, :, :], (B, N_KP, 3))
    return logits, kgnn2d, orthographic_proj_withz(X, rt[:, 0:7], ratio)


# ------------------------------ deterministic parameters ------------------------------
def _lin_init(key, n_in, n_out):
    kw, kb = jax.random.split(key)
    w = jax.random.normal(kw, (n_in, n_out), jnp.float32) * (1.0 / math.sqrt(n_in))
    b = jax.random.normal(kb, (n_out,), jnp.float32) * 0.01
    return w, b


def _mlp_init(key, n_in, n_hid, n_out):
    k1, k2 = jax.random.split(key)
    w1, b1 = _lin_init(k1, n_in, n_hid)
    w2, b2 = _lin_init(k2, n_hid, n_out)
    return {"w1": w1, "b1": b1, "w2": w2, "b2": b2}


def init_params(key):
    ks = list(jax.random.split(key, 24))
    it = iter(ks)

    def enc_params(fc_out_in, fc_out_dim):
        p = {
            "mlp1": _mlp_init(next(it), DIMS, HID, HID),
            "mlp2": _mlp_init(next(it), 2 * HID, HID, HID),
            "mlp3": _mlp_init(next(it), HID, HID, HID),
            "mlp4": _mlp_init(next(it), 3 * HID, HID, HID),
        }
        w, b = _lin_init(next(it), fc_out_in, fc_out_dim)
        p["fc_out_w"], p["fc_out_b"] = w, b
        return p

    encoder = enc_params(HID, EDGE_TYPES)
    encoder_rt = enc_params(HID * N_EDGE, PARAMS_3D)

    dec = {"msg_w1": [], "msg_b1": [], "msg_w2": [], "msg_b2": []}
    for _ in range(EDGE_TYPES):
        w1, b1 = _lin_init(next(it), 2 * DIMS, HID)
        w2, b2 = _lin_init(next(it), HID, HID)
        dec["msg_w1"].append(w1); dec["msg_b1"].append(b1)
        dec["msg_w2"].append(w2); dec["msg_b2"].append(b2)
    dec["out_w1"], dec["out_b1"] = _lin_init(next(it), DIMS + HID, HID)
    dec["out_w2"], dec["out_b2"] = _lin_init(next(it), HID, HID)
    dec["out_w3"], dec["out_b3"] = _lin_init(next(it), HID, DIMS)

    # TODO(synk): mean_shape normally comes from PCA over data/pca_3d_cad.npy; synthesized here.
    mean_shape = jax.random.normal(next(it), (18,), jnp.float32) * 0.5

    return {"encoder": encoder, "decoder": dec, "encoder_rt": encoder_rt,
            "mean_shape": mean_shape}


def make_rel_matrices():
    off_diag = np.ones((N_KP, N_KP), dtype=np.float32) - np.eye(N_KP, dtype=np.float32)
    recv_idx = np.where(off_diag)[1]
    send_idx = np.where(off_diag)[0]
    eye = np.eye(N_KP, dtype=np.float32)
    rel_rec = eye[recv_idx]     # (N_EDGE, N_KP)
    rel_send = eye[send_idx]    # (N_EDGE, N_KP)
    return jnp.asarray(rel_rec), jnp.asarray(rel_send)


# ------------------------------------------ main ------------------------------------------
if __name__ == "__main__":
    key = jax.random.PRNGKey(0)
    k_param, k_x, k_ratio = jax.random.split(key, 3)

    B = 2
    x = jax.random.normal(k_x, (B, N_KP, DIMS), jnp.float32)          # ROI keypoint coords
    ratio = jax.random.uniform(k_ratio, (B,), jnp.float32, 0.5, 1.5)  # per-ROI aspect ratio

    params = init_params(k_param)
    rel_rec, rel_send = make_rel_matrices()

    fwd = make_forward(params, rel_rec, rel_send, batch=B)            # one-time weight prep
    ref = jax.jit(functools.partial(reference_forward, rel_rec=rel_rec, rel_send=rel_send))

    logits, kgnn2d, projected_points = fwd(x, ratio)
    jax.block_until_ready((logits, kgnn2d, projected_points))

    with jax.default_matmul_precision("highest"):                     # pure-f32 reference
        ref_out = ref(params, x, ratio)
    jax.block_until_ready(ref_out)

    assert logits.shape == (B, N_EDGE, EDGE_TYPES)
    assert kgnn2d.shape == (B, N_KP, DIMS)
    assert projected_points.shape == (B, N_KP, 3)
    # Kernel uses bf16 MXU inputs (f32 accumulation) vs. an f32 reference -> 5e-2 tolerance.
    for got, want in zip((logits, kgnn2d, projected_points), ref_out):
        assert bool(jnp.all(jnp.isfinite(got)))
        assert bool(jnp.allclose(got, want, atol=5e-2, rtol=5e-2)), \
            float(jnp.max(jnp.abs(got - want)))
    print("KERNEL_OK")
</pallas_src>

<mosaic_0001>
module attributes {stable_mosaic.version = 11 : i64} {
  func.func @kernel(%arg0: memref<2x28xf32, #tpu.memory_space<vmem>>, %arg1: memref<28x768xbf16, #tpu.memory_space<vmem>>, %arg2: memref<384x28xbf16, #tpu.memory_space<vmem>>, %arg3: memref<19x64x128xbf16, #tpu.memory_space<vmem>>, %arg4: memref<64x14xf32, #tpu.memory_space<vmem>>, %arg5: memref<2x364xf32, #tpu.memory_space<vmem>>, %arg6: memref<2x28xf32, #tpu.memory_space<vmem>>, %arg7: memref<32x364xf32, #tpu.memory_space<vmem>>) attributes {dimension_semantics = [], scalar_prefetch = 0 : i64, scratch_operands = 0 : i64, tpu.core_type = #tpu.core_type<tc>} {
    %c0 = arith.constant 0 : index
    %c0_0 = arith.constant 0 : index
    %0 = vector.load %arg0[%c0, %c0_0] : memref<2x28xf32, #tpu.memory_space<vmem>>, vector<2x28xf32>
    %c0_1 = arith.constant 0 : index
    %c0_2 = arith.constant 0 : index
    %1 = vector.load %arg1[%c0_1, %c0_2] : memref<28x768xbf16, #tpu.memory_space<vmem>>, vector<28x768xbf16>
    %c0_3 = arith.constant 0 : index
    %c0_4 = arith.constant 0 : index
    %2 = vector.load %arg2[%c0_3, %c0_4] : memref<384x28xbf16, #tpu.memory_space<vmem>>, vector<384x28xbf16>
    %c0_5 = arith.constant 0 : index
    %c0_6 = arith.constant 0 : index
    %c0_7 = arith.constant 0 : index
    %3 = vector.load %arg3[%c0_5, %c0_6, %c0_7] : memref<19x64x128xbf16, #tpu.memory_space<vmem>>, vector<1x64x128xbf16>
    %4 = vector.shape_cast %3 : vector<1x64x128xbf16> to vector<64x128xbf16>
    %5 = vector.extract_strided_slice %4 {offsets = [0, 0], sizes = [64, 2], strides = [1, 1]} : vector<64x128xbf16> to vector<64x2xbf16>
    %6 = arith.truncf %0 : vector<2x28xf32> to vector<2x28xbf16>
    %cst = arith.constant dense<0.000000e+00> : vector<64x28xf32>
    %7 = tpu.matmul %5, %6, %cst {dimension_numbers = #tpu.dot_dimension_numbers<[1], [0], [0], [1], [0, 0, 1, 1], [], []>} : vector<64x2xbf16>, vector<2x28xbf16>, vector<64x28xf32> -> vector<64x28xf32>
    %c0_8 = arith.constant 0 : index
    %c0_9 = arith.constant 0 : index
    %8 = vector.load %arg4[%c0_8, %c0_9] : memref<64x14xf32, #tpu.memory_space<vmem>>, vector<64x1xf32>
    %9 = vector.broadcast %8 : vector<64x1xf32> to vector<64x28xf32>
    %10 = arith.addf %7, %9 : vector<64x28xf32>
    %cst_10 = arith.constant 0.000000e+00 : f32
    %11 = vector.broadcast %cst_10 : f32 to vector<64x28xf32>
    %12 = arith.cmpf ogt, %10, %11 : vector<64x28xf32>
    %cst_11 = arith.constant 0.000000e+00 : f32
    %13 = vector.broadcast %cst_11 : f32 to vector<64x28xf32>
    %14 = arith.minimumf %10, %13 : vector<64x28xf32>
    %15 = math.exp %14 : vector<64x28xf32>
    %cst_12 = arith.constant 1.000000e+00 : f32
    %16 = vector.broadcast %cst_12 : f32 to vector<64x28xf32>
    %17 = arith.subf %15, %16 : vector<64x28xf32>
    %18 = arith.select %12, %10, %17 : vector<64x28xi1>, vector<64x28xf32>
    %c7 = arith.constant 7 : index
    %c0_13 = arith.constant 0 : index
    %c0_14 = arith.constant 0 : index
    %19 = vector.load %arg3[%c7, %c0_13, %c0_14] : memref<19x64x128xbf16, #tpu.memory_space<vmem>>, vector<1x64x128xbf16>
    %20 = vector.shape_cast %19 : vector<1x64x128xbf16> to vector<64x128xbf16>
    %21 = vector.extract_strided_slice %20 {offsets = [0, 0], sizes = [64, 64], strides = [1, 1]} : vector<64x128xbf16> to vector<64x64xbf16>
    %22 = arith.truncf %18 : vector<64x28xf32> to vector<64x28xbf16>
    %cst_15 = arith.constant dense<0.000000e+00> : vector<64x28xf32>
    %23 = tpu.matmul %21, %22, %cst_15 {dimension_numbers = #tpu.dot_dimension_numbers<[1], [0], [0], [1], [0, 0, 1, 1], [], []>} : vector<64x64xbf16>, vector<64x28xbf16>, vector<64x28xf32> -> vector<64x28xf32>
    %c0_16 = arith.constant 0 : index
    %c1 = arith.constant 1 : index
    %24 = vector.load %arg4[%c0_16, %c1] : memref<64x14xf32, #tpu.memory_space<vmem>>, vector<64x1xf32>
    %25 = vector.broadcast %24 : vector<64x1xf32> to vector<64x28xf32>
    %26 = arith.addf %23, %25 : vector<64x28xf32>
    %cst_17 = arith.constant 0.000000e+00 : f32
    %27 = vector.broadcast %cst_17 : f32 to vector<64x28xf32>
    %28 = arith.cmpf ogt, %26, %27 : vector<64x28xf32>
    %cst_18 = arith.constant 0.000000e+00 : f32
    %29 = vector.broadcast %cst_18 : f32 to vector<64x28xf32>
    %30 = arith.minimumf %26, %29 : vector<64x28xf32>
    %31 = math.exp %30 : vector<64x28xf32>
    %cst_19 = arith.constant 1.000000e+00 : f32
    %32 = vector.broadcast %cst_19 : f32 to vector<64x28xf32>
    %33 = arith.subf %31, %32 : vector<64x28xf32>
    %34 = arith.select %28, %26, %33 : vector<64x28xi1>, vector<64x28xf32>
    %cst_20 = arith.constant 0.999994993 : f32
    %35 = vector.broadcast %cst_20 : f32 to vector<64x28xf32>
    %36 = arith.mulf %34, %35 : vector<64x28xf32>
    %37 = arith.truncf %36 : vector<64x28xf32> to vector<64x28xbf16>
    %cst_21 = arith.constant dense<0.000000e+00> : vector<64x768xf32>
    %38 = tpu.matmul %37, %1, %cst_21 {dimension_numbers = #tpu.dot_dimension_numbers<[1], [0], [0], [1], [0, 0, 1, 1], [], []>} : vector<64x28xbf16>, vector<28x768xbf16>, vector<64x768xf32> -> vector<64x768xf32>
    %39 = vector.extract_strided_slice %38 {offsets = [0, 0], sizes = [64, 384], strides = [1, 1]} : vector<64x768xf32> to vector<64x384xf32>
    %40 = vector.extract_strided_slice %38 {offsets = [0, 384], sizes = [64, 384], strides = [1, 1]} : vector<64x768xf32> to vector<64x384xf32>
    %c1_22 = arith.constant 1 : index
    %c0_23 = arith.constant 0 : index
    %c0_24 = arith.constant 0 : index
    %41 = vector.load %arg3[%c1_22, %c0_23, %c0_24] : memref<19x64x128xbf16, #tpu.memory_space<vmem>>, vector<1x64x128xbf16>
    %42 = vector.shape_cast %41 : vector<1x64x128xbf16> to vector<64x128xbf16>
    %43 = vector.extract_strided_slice %42 {offsets = [0, 0], sizes = [64, 64], strides = [1, 1]} : vector<64x128xbf16> to vector<64x64xbf16>
    %44 = arith.truncf %39 : vector<64x384xf32> to vector<64x384xbf16>
    %cst_25 = arith.constant dense<0.000000e+00> : vector<64x384xf32>
    %45 = tpu.matmul %43, %44, %cst_25 {dimension_numbers = #tpu.dot_dimension_numbers<[1], [0], [0], [1], [0, 0, 1, 1], [], []>} : vector<64x64xbf16>, vector<64x384xbf16>, vector<64x384xf32> -> vector<64x384xf32>
    %c2 = arith.constant 2 : index
    %c0_26 = arith.constant 0 : index
    %c0_27 = arith.constant 0 : index
    %46 = vector.load %arg3[%c2, %c0_26, %c0_27] : memref<19x64x128xbf16, #tpu.memory_space<vmem>>, vector<1x64x128xbf16>
    %47 = vector.shape_cast %46 : vector<1x64x128xbf16> to vector<64x128xbf16>
    %48 = vector.extract_strided_slice %47 {offsets = [0, 0], sizes = [64, 64], strides = [1, 1]} : vector<64x128xbf16> to vector<64x64xbf16>
    %49 = arith.truncf %40 : vector<64x384xf32> to vector<64x384xbf16>
    %cst_28 = arith.constant dense<0.000000e+00> : vector<64x384xf32>
    %50 = tpu.matmul %48, %49, %cst_28 {dimension_numbers = #tpu.dot_dimension_numbers<[1], [0], [0], [1], [0, 0, 1, 1], [], []>} : vector<64x64xbf16>, vector<64x384xbf16>, vector<64x384xf32> -> vector<64x384xf32>
    %51 = arith.addf %45, %50 : vector<64x384xf32>
    %c0_29 = arith.constant 0 : index
    %c2_30 = arith.constant 2 : index
    %52 = vector.load %arg4[%c0_29, %c2_30] : memref<64x14xf32, #tpu.memory_space<vmem>>, vector<64x1xf32>
    %53 = vector.broadcast %52 : vector<64x1xf32> to vector<64x384xf32>
    %54 = arith.addf %51, %53 : vector<64x384xf32>
    %cst_31 = arith.constant 0.000000e+00 : f32
    %55 = vector.broadcast %cst_31 : f32 to vector<64x384xf32>
    %56 = arith.cmpf ogt, %54, %55 : vector<64x384xf32>
    %cst_32 = arith.constant 0.000000e+00 : f32
    %57 = vector.broadcast %cst_32 : f32 to vector<64x384xf32>
    %58 = arith.minimumf %54, %57 : vector<64x384xf32>
    %59 = math.exp %58 : vector<64x384xf32>
    %cst_33 = arith.constant 1.000000e+00 : f32
    %60 = vector.broadcast %cst_33 : f32 to vector<64x384xf32>
    %61 = arith.subf %59, %60 : vector<64x384xf32>
    %62 = arith.select %56, %54, %61 : vector<64x384xi1>, vector<64x384xf32>
    %c8 = arith.constant 8 : index
    %c0_34 = arith.constant 0 : index
    %c0_35 = arith.constant 0 : index
    %63 = vector.load %arg3[%c8, %c0_34, %c0_35] : memref<19x64x128xbf16, #tpu.memory_space<vmem>>, vector<1x64x128xbf16>
    %64 = vector.shape_cast %63 : vector<1x64x128xbf16> to vector<64x128xbf16>
    %65 = vector.extract_strided_slice %64 {offsets = [0, 0], sizes = [64, 64], strides = [1, 1]} : vector<64x128xbf16> to vector<64x64xbf16>
    %66 = arith.truncf %62 : vector<64x384xf32> to vector<64x384xbf16>
    %cst_36 = arith.constant dense<0.000000e+00> : vector<64x384xf32>
    %67 = tpu.matmul %65, %66, %cst_36 {dimension_numbers = #tpu.dot_dimension_numbers<[1], [0], [0], [1], [0, 0, 1, 1], [], []>} : vector<64x64xbf16>, vector<64x384xbf16>, vector<64x384xf32> -> vector<64x384xf32>
    %c0_37 = arith.constant 0 : index
    %c3 = arith.constant 3 : index
    %68 = vector.load %arg4[%c0_37, %c3] : memref<64x14xf32, #tpu.memory_space<vmem>>, vector<64x1xf32>
    %69 = vector.broadcast %68 : vector<64x1xf32> to vector<64x384xf32>
    %70 = arith.addf %67, %69 : vector<64x384xf32>
    %cst_38 = arith.constant 0.000000e+00 : f32
    %71 = vector.broadcast %cst_38 : f32 to vector<64x384xf32>
    %72 = arith.cmpf ogt, %70, %71 : vector<64x384xf32>
    %cst_39 = arith.constant 0.000000e+00 : f32
    %73 = vector.broadcast %cst_39 : f32 to vector<64x384xf32>
    %74 = arith.minimumf %70, %73 : vector<64x384xf32>
    %75 = math.exp %74 : vector<64x384xf32>
    %cst_40 = arith.constant 1.000000e+00 : f32
    %76 = vector.broadcast %cst_40 : f32 to vector<64x384xf32>
    %77 = arith.subf %75, %76 : vector<64x384xf32>
    %78 = arith.select %72, %70, %77 : vector<64x384xi1>, vector<64x384xf32>
    %cst_41 = arith.constant 0.999994993 : f32
    %79 = vector.broadcast %cst_41 : f32 to vector<64x384xf32>
    %80 = arith.mulf %78, %79 : vector<64x384xf32>
    %c3_42 = arith.constant 3 : index
    %c0_43 = arith.constant 0 : index
    %c0_44 = arith.constant 0 : index
    %81 = vector.load %arg3[%c3_42, %c0_43, %c0_44] : memref<19x64x128xbf16, #tpu.memory_space<vmem>>, vector<1x64x128xbf16>
    %82 = vector.shape_cast %81 : vector<1x64x128xbf16> to vector<64x128xbf16>
    %83 = vector.extract_strided_slice %82 {offsets = [0, 0], sizes = [64, 64], strides = [1, 1]} : vector<64x128xbf16> to vector<64x64xbf16>
    %84 = arith.truncf %80 : vector<64x384xf32> to vector<64x384xbf16>
    %cst_45 = arith.constant dense<0.000000e+00> : vector<64x28xf32>
    %85 = tpu.matmul %84, %2, %cst_45 {dimension_numbers = #tpu.dot_dimension_numbers<[1], [0], [0], [1], [0, 0, 1, 1], [], []>} : vector<64x384xbf16>, vector<384x28xbf16>, vector<64x28xf32> -> vector<64x28xf32>
    %86 = arith.truncf %85 : vector<64x28xf32> to vector<64x28xbf16>
    %cst_46 = arith.constant dense<0.000000e+00> : vector<64x28xf32>
    %87 = tpu.matmul %83, %86, %cst_46 {dimension_numbers = #tpu.dot_dimension_numbers<[1], [0], [0], [1], [0, 0, 1, 1], [], []>} : vector<64x64xbf16>, vector<64x28xbf16>, vector<64x28xf32> -> vector<64x28xf32>
    %cst_47 = arith.constant 0.0714285746 : f32
    %88 = vector.broadcast %cst_47 : f32 to vector<64x28xf32>
    %89 = arith.mulf %87, %88 : vector<64x28xf32>
    %c0_48 = arith.constant 0 : index
    %c4 = arith.constant 4 : index
    %90 = vector.load %arg4[%c0_48, %c4] : memref<64x14xf32, #tpu.memory_space<vmem>>, vector<64x1xf32>
    %91 = vector.broadcast %90 : vector<64x1xf32> to vector<64x28xf32>
    %92 = arith.addf %89, %91 : vector<64x28xf32>
    %cst_49 = arith.constant 0.000000e+00 : f32
    %93 = vector.broadcast %cst_49 : f32 to vector<64x28xf32>
    %94 = arith.cmpf ogt, %92, %93 : vector<64x28xf32>
    %cst_50 = arith.constant 0.000000e+00 : f32
    %95 = vector.broadcast %cst_50 : f32 to vector<64x28xf32>
    %96 = arith.minimumf %92, %95 : vector<64x28xf32>
    %97 = math.exp %96 : vector<64x28xf32>
    %cst_51 = arith.constant 1.000000e+00 : f32
    %98 = vector.broadcast %cst_51 : f32 to vector<64x28xf32>
    %99 = arith.subf %97, %98 : vector<64x28xf32>
    %100 = arith.select %94, %92, %99 : vector<64x28xi1>, vector<64x28xf32>
    %c9 = arith.constant 9 : index
    %c0_52 = arith.constant 0 : index
    %c0_53 = arith.constant 0 : index
    %101 = vector.load %arg3[%c9, %c0_52, %c0_53] : memref<19x64x128xbf16, #tpu.memory_space<vmem>>, vector<1x64x128xbf16>
    %102 = vector.shape_cast %101 : vector<1x64x128xbf16> to vector<64x128xbf16>
    %103 = vector.extract_strided_slice %102 {offsets = [0, 0], sizes = [64, 64], strides = [1, 1]} : vector<64x128xbf16> to vector<64x64xbf16>
    %104 = arith.truncf %100 : vector<64x28xf32> to vector<64x28xbf16>
    %cst_54 = arith.constant dense<0.000000e+00> : vector<64x28xf32>
    %105 = tpu.matmul %103, %104, %cst_54 {dimension_numbers = #tpu.dot_dimension_numbers<[1], [0], [0], [1], [0, 0, 1, 1], [], []>} : vector<64x64xbf16>, vector<64x28xbf16>, vector<64x28xf32> -> vector<64x28xf32>
    %c0_55 = arith.constant 0 : index
    %c5 = arith.constant 5 : index
    %106 = vector.load %arg4[%c0_55, %c5] : memref<64x14xf32, #tpu.memory_space<vmem>>, vector<64x1xf32>
    %107 = vector.broadcast %106 : vector<64x1xf32> to vector<64x28xf32>
    %108 = arith.addf %105, %107 : vector<64x28xf32>
    %cst_56 = arith.constant 0.000000e+00 : f32
    %109 = vector.broadcast %cst_56 : f32 to vector<64x28xf32>
    %110 = arith.cmpf ogt, %108, %109 : vector<64x28xf32>
    %cst_57 = arith.constant 0.000000e+00 : f32
    %111 = vector.broadcast %cst_57 : f32 to vector<64x28xf32>
    %112 = arith.minimumf %108, %111 : vector<64x28xf32>
    %113 = math.exp %112 : vector<64x28xf32>
    %cst_58 = arith.constant 1.000000e+00 : f32
    %114 = vector.broadcast %cst_58 : f32 to vector<64x28xf32>
    %115 = arith.subf %113, %114 : vector<64x28xf32>
    %116 = arith.select %110, %108, %115 : vector<64x28xi1>, vector<64x28xf32>
    %cst_59 = arith.constant 0.999994993 : f32
    %117 = vector.broadcast %cst_59 : f32 to vector<64x28xf32>
    %118 = arith.mulf %116, %117 : vector<64x28xf32>
    %119 = arith.truncf %118 : vector<64x28xf32> to vector<64x28xbf16>
    %cst_60 = arith.constant dense<0.000000e+00> : vector<64x768xf32>
    %120 = tpu.matmul %119, %1, %cst_60 {dimension_numbers = #tpu.dot_dimension_numbers<[1], [0], [0], [1], [0, 0, 1, 1], [], []>} : vector<64x28xbf16>, vector<28x768xbf16>, vector<64x768xf32> -> vector<64x768xf32>
    %121 = vector.extract_strided_slice %120 {offsets = [0, 0], sizes = [64, 384], strides = [1, 1]} : vector<64x768xf32> to vector<64x384xf32>
    %122 = vector.extract_strided_slice %120 {offsets = [0, 384], sizes = [64, 384], strides = [1, 1]} : vector<64x768xf32> to vector<64x384xf32>
    %c4_61 = arith.constant 4 : index
    %c0_62 = arith.constant 0 : index
    %c0_63 = arith.constant 0 : index
    %123 = vector.load %arg3[%c4_61, %c0_62, %c0_63] : memref<19x64x128xbf16, #tpu.memory_space<vmem>>, vector<1x64x128xbf16>
    %124 = vector.shape_cast %123 : vector<1x64x128xbf16> to vector<64x128xbf16>
    %125 = vector.extract_strided_slice %124 {offsets = [0, 0], sizes = [64, 64], strides = [1, 1]} : vector<64x128xbf16> to vector<64x64xbf16>
    %126 = arith.truncf %121 : vector<64x384xf32> to vector<64x384xbf16>
    %cst_64 = arith.constant dense<0.000000e+00> : vector<64x384xf32>
    %127 = tpu.matmul %125, %126, %cst_64 {dimension_numbers = #tpu.dot_dimension_numbers<[1], [0], [0], [1], [0, 0, 1, 1], [], []>} : vector<64x64xbf16>, vector<64x384xbf16>, vector<64x384xf32> -> vector<64x384xf32>
    %c5_65 = arith.constant 5 : index
    %c0_66 = arith.constant 0 : index
    %c0_67 = arith.constant 0 : index
    %128 = vector.load %arg3[%c5_65, %c0_66, %c0_67] : memref<19x64x128xbf16, #tpu.memory_space<vmem>>, vector<1x64x128xbf16>
    %129 = vector.shape_cast %128 : vector<1x64x128xbf16> to vector<64x128xbf16>
    %130 = vector.extract_strided_slice %129 {offsets = [0, 0], sizes = [64, 64], strides = [1, 1]} : vector<64x128xbf16> to vector<64x64xbf16>
    %131 = arith.truncf %122 : vector<64x384xf32> to vector<64x384xbf16>
    %cst_68 = arith.constant dense<0.000000e+00> : vector<64x384xf32>
    %132 = tpu.matmul %130, %131, %cst_68 {dimension_numbers = #tpu.dot_dimension_numbers<[1], [0], [0], [1], [0, 0, 1, 1], [], []>} : vector<64x64xbf16>, vector<64x384xbf16>, vector<64x384xf32> -> vector<64x384xf32>
    %133 = arith.addf %127, %132 : vector<64x384xf32>
    %c6 = arith.constant 6 : index
    %c0_69 = arith.constant 0 : index
    %c0_70 = arith.constant 0 : index
    %134 = vector.load %arg3[%c6, %c0_69, %c0_70] : memref<19x64x128xbf16, #tpu.memory_space<vmem>>, vector<1x64x128xbf16>
    %135 = vector.shape_cast %134 : vector<1x64x128xbf16> to vector<64x128xbf16>
    %136 = vector.extract_strided_slice %135 {offsets = [0, 0], sizes = [64, 64], strides = [1, 1]} : vector<64x128xbf16> to vector<64x64xbf16>
    %137 = arith.truncf %80 : vector<64x384xf32> to vector<64x384xbf16>
    %cst_71 = arith.constant dense<0.000000e+00> : vector<64x384xf32>
    %138 = tpu.matmul %136, %137, %cst_71 {dimension_numbers = #tpu.dot_dimension_numbers<[1], [0], [0], [1], [0, 0, 1, 1], [], []>} : vector<64x64xbf16>, vector<64x384xbf16>, vector<64x384xf32> -> vector<64x384xf32>
    %139 = arith.addf %133, %138 : vector<64x384xf32>
    %c0_72 = arith.constant 0 : index
    %c6_73 = arith.constant 6 : index
    %140 = vector.load %arg4[%c0_72, %c6_73] : memref<64x14xf32, #tpu.memory_space<vmem>>, vector<64x1xf32>
    %141 = vector.broadcast %140 : vector<64x1xf32> to vector<64x384xf32>
    %142 = arith.addf %139, %141 : vector<64x384xf32>
    %cst_74 = arith.constant 0.000000e+00 : f32
    %143 = vector.broadcast %cst_74 : f32 to vector<64x384xf32>
    %144 = arith.cmpf ogt, %142, %143 : vector<64x384xf32>
    %cst_75 = arith.constant 0.000000e+00 : f32
    %145 = vector.broadcast %cst_75 : f32 to vector<64x384xf32>
    %146 = arith.minimumf %142, %145 : vector<64x384xf32>
    %147 = math.exp %146 : vector<64x384xf32>
    %cst_76 = arith.constant 1.000000e+00 : f32
    %148 = vector.broadcast %cst_76 : f32 to vector<64x384xf32>
    %149 = arith.subf %147, %148 : vector<64x384xf32>
    %150 = arith.select %144, %142, %149 : vector<64x384xi1>, vector<64x384xf32>
    %c10 = arith.constant 10 : index
    %c0_77 = arith.constant 0 : index
    %c0_78 = arith.constant 0 : index
    %151 = vector.load %arg3[%c10, %c0_77, %c0_78] : memref<19x64x128xbf16, #tpu.memory_space<vmem>>, vector<1x64x128xbf16>
    %152 = vector.shape_cast %151 : vector<1x64x128xbf16> to vector<64x128xbf16>
    %153 = vector.extract_strided_slice %152 {offsets = [0, 0], sizes = [64, 64], strides = [1, 1]} : vector<64x128xbf16> to vector<64x64xbf16>
    %154 = arith.truncf %150 : vector<64x384xf32> to vector<64x384xbf16>
    %cst_79 = arith.constant dense<0.000000e+00> : vector<64x384xf32>
    %155 = tpu.matmul %153, %154, %cst_79 {dimension_numbers = #tpu.dot_dimension_numbers<[1], [0], [0], [1], [0, 0, 1, 1], [], []>} : vector<64x64xbf16>, vector<64x384xbf16>, vector<64x384xf32> -> vector<64x384xf32>
    %c0_80 = arith.constant 0 : index
    %c7_81 = arith.constant 7 : index
    %156 = vector.load %arg4[%c0_80, %c7_81] : memref<64x14xf32, #tpu.memory_space<vmem>>, vector<64x1xf32>
    %157 = vector.broadcast %156 : vector<64x1xf32> to vector<64x384xf32>
    %158 = arith.addf %155, %157 : vector<64x384xf32>
    %cst_82 = arith.constant 0.000000e+00 : f32
    %159 = vector.broadcast %cst_82 : f32 to vector<64x384xf32>
    %160 = arith.cmpf ogt, %158, %159 : vector<64x384xf32>
    %cst_83 = arith.constant 0.000000e+00 : f32
    %161 = vector.broadcast %cst_83 : f32 to vector<64x384xf32>
    %162 = arith.minimumf %158, %161 : vector<64x384xf32>
    %163 = math.exp %162 : vector<64x384xf32>
    %cst_84 = arith.constant 1.000000e+00 : f32
    %164 = vector.broadcast %cst_84 : f32 to vector<64x384xf32>
    %165 = arith.subf %163, %164 : vector<64x384xf32>
    %166 = arith.select %160, %158, %165 : vector<64x384xi1>, vector<64x384xf32>
    %cst_85 = arith.constant 0.999994993 : f32
    %167 = vector.broadcast %cst_85 : f32 to vector<64x384xf32>
    %168 = arith.mulf %166, %167 : vector<64x384xf32>
    %c11 = arith.constant 11 : index
    %c0_86 = arith.constant 0 : index
    %c0_87 = arith.constant 0 : index
    %169 = vector.load %arg3[%c11, %c0_86, %c0_87] : memref<19x64x128xbf16, #tpu.memory_space<vmem>>, vector<1x64x128xbf16>
    %170 = vector.shape_cast %169 : vector<1x64x128xbf16> to vector<64x128xbf16>
    %171 = vector.extract_strided_slice %170 {offsets = [0, 0], sizes = [2, 32], strides = [1, 1]} : vector<64x128xbf16> to vector<2x32xbf16>
    %172 = vector.extract_strided_slice %168 {offsets = [0, 0], sizes = [32, 384], strides = [1, 1]} : vector<64x384xf32> to vector<32x384xf32>
    %173 = arith.truncf %172 : vector<32x384xf32> to vector<32x384xbf16>
    %cst_88 = arith.constant dense<0.000000e+00> : vector<2x384xf32>
    %174 = tpu.matmul %171, %173, %cst_88 {dimension_numbers = #tpu.dot_dimension_numbers<[1], [0], [0], [1], [0, 0, 1, 1], [], []>} : vector<2x32xbf16>, vector<32x384xbf16>, vector<2x384xf32> -> vector<2x384xf32>
    %c0_89 = arith.constant 0 : index
    %c8_90 = arith.constant 8 : index
    %175 = vector.load %arg4[%c0_89, %c8_90] : memref<64x14xf32, #tpu.memory_space<vmem>>, vector<2x1xf32>
    %176 = vector.broadcast %175 : vector<2x1xf32> to vector<2x384xf32>
    %177 = arith.addf %174, %176 : vector<2x384xf32>
    %178 = vector.extract_strided_slice %177 {offsets = [0, 0], sizes = [2, 364], strides = [1, 1]} : vector<2x384xf32> to vector<2x364xf32>
    %c0_91 = arith.constant 0 : index
    %c0_92 = arith.constant 0 : index
    %179 = vector.load %arg5[%c0_91, %c0_92] : memref<2x364xf32, #tpu.memory_space<vmem>>, vector<2x364xf32>
    tpu.vector_store %arg5[%c0_91, %c0_92], %178 {strides = array<i32>} : memref<2x364xf32, #tpu.memory_space<vmem>>, vector<2x364xf32>,
    %180 = vector.extract_strided_slice %168 {offsets = [32, 0], sizes = [32, 364], strides = [1, 1]} : vector<64x384xf32> to vector<32x364xf32>
    %c0_93 = arith.constant 0 : index
    %c0_94 = arith.constant 0 : index
    %181 = vector.load %arg7[%c0_93, %c0_94] : memref<32x364xf32, #tpu.memory_space<vmem>>, vector<32x364xf32>
    tpu.vector_store %arg7[%c0_93, %c0_94], %180 {strides = array<i32>} : memref<32x364xf32, #tpu.memory_space<vmem>>, vector<32x364xf32>,
    %182 = vector.extract_strided_slice %177 {offsets = [0, 0], sizes = [1, 384], strides = [1, 1]} : vector<2x384xf32> to vector<1x384xf32>
    %183 = vector.extract_strided_slice %177 {offsets = [1, 0], sizes = [1, 384], strides = [1, 1]} : vector<2x384xf32> to vector<1x384xf32>
    %184 = arith.subf %182, %183 : vector<1x384xf32>
    %185 = math.exp %184 : vector<1x384xf32>
    %cst_95 = arith.constant 1.000000e+00 : f32
    %186 = vector.broadcast %cst_95 : f32 to vector<1x384xf32>
    %187 = arith.addf %186, %185 : vector<1x384xf32>
    %188 = tpu.reciprocal %187 {approx = true} : vector<1x384xf32> -> vector<1x384xf32>
    %cst_96 = arith.constant 1.000000e+00 : f32
    %189 = vector.broadcast %cst_96 : f32 to vector<1x384xf32>
    %190 = arith.subf %189, %188 : vector<1x384xf32>
    %191 = arith.truncf %0 : vector<2x28xf32> to vector<2x28xbf16>
    %cst_97 = arith.constant dense<0.000000e+00> : vector<2x768xf32>
    %192 = tpu.matmul %191, %1, %cst_97 {dimension_numbers = #tpu.dot_dimension_numbers<[1], [0], [0], [1], [0, 0, 1, 1], [], []>} : vector<2x28xbf16>, vector<28x768xbf16>, vector<2x768xf32> -> vector<2x768xf32>
    %193 = vector.extract_strided_slice %192 {offsets = [0, 0], sizes = [2, 384], strides = [1, 1]} : vector<2x768xf32> to vector<2x384xf32>
    %194 = vector.extract_strided_slice %192 {offsets = [0, 384], sizes = [2, 384], strides = [1, 1]} : vector<2x768xf32> to vector<2x384xf32>
    %c12 = arith.constant 12 : index
    %c0_98 = arith.constant 0 : index
    %c0_99 = arith.constant 0 : index
    %195 = vector.load %arg3[%c12, %c0_98, %c0_99] : memref<19x64x128xbf16, #tpu.memory_space<vmem>>, vector<1x64x128xbf16>
    %196 = vector.shape_cast %195 : vector<1x64x128xbf16> to vector<64x128xbf16>
    %197 = vector.extract_strided_slice %196 {offsets = [0, 0], sizes = [64, 2], strides = [1, 1]} : vector<64x128xbf16> to vector<64x2xbf16>
    %198 = arith.truncf %193 : vector<2x384xf32> to vector<2x384xbf16>
    %cst_100 = arith.constant dense<0.000000e+00> : vector<64x384xf32>
    %199 = tpu.matmul %197, %198, %cst_100 {dimension_numbers = #tpu.dot_dimension_numbers<[1], [0], [0], [1], [0, 0, 1, 1], [], []>} : vector<64x2xbf16>, vector<2x384xbf16>, vector<64x384xf32> -> vector<64x384xf32>
    %c13 = arith.constant 13 : index
    %c0_101 = arith.constant 0 : index
    %c0_102 = arith.constant 0 : index
    %200 = vector.load %arg3[%c13, %c0_101, %c0_102] : memref<19x64x128xbf16, #tpu.memory_space<vmem>>, vector<1x64x128xbf16>
    %201 = vector.shape_cast %200 : vector<1x64x128xbf16> to vector<64x128xbf16>
    %202 = vector.extract_strided_slice %201 {offsets = [0, 0], sizes = [64, 2], strides = [1, 1]} : vector<64x128xbf16> to vector<64x2xbf16>
    %203 = arith.truncf %194 : vector<2x384xf32> to vector<2x384xbf16>
    %cst_103 = arith.constant dense<0.000000e+00> : vector<64x384xf32>
    %204 = tpu.matmul %202, %203, %cst_103 {dimension_numbers = #tpu.dot_dimension_numbers<[1], [0], [0], [1], [0, 0, 1, 1], [], []>} : vector<64x2xbf16>, vector<2x384xbf16>, vector<64x384xf32> -> vector<64x384xf32>
    %205 = arith.addf %199, %204 : vector<64x384xf32>
    %c0_104 = arith.constant 0 : index
    %c9_105 = arith.constant 9 : index
    %206 = vector.load %arg4[%c0_104, %c9_105] : memref<64x14xf32, #tpu.memory_space<vmem>>, vector<64x1xf32>
    %207 = vector.broadcast %206 : vector<64x1xf32> to vector<64x384xf32>
    %208 = arith.addf %205, %207 : vector<64x384xf32>
    %cst_106 = arith.constant 0.000000e+00 : f32
    %209 = vector.broadcast %cst_106 : f32 to vector<64x384xf32>
    %210 = arith.maximumf %208, %209 : vector<64x384xf32>
    %c14 = arith.constant 14 : index
    %c0_107 = arith.constant 0 : index
    %c0_108 = arith.constant 0 : index
    %211 = vector.load %arg3[%c14, %c0_107, %c0_108] : memref<19x64x128xbf16, #tpu.memory_space<vmem>>, vector<1x64x128xbf16>
    %212 = vector.shape_cast %211 : vector<1x64x128xbf16> to vector<64x128xbf16>
    %213 = vector.extract_strided_slice %212 {offsets = [0, 0], sizes = [64, 64], strides = [1, 1]} : vector<64x128xbf16> to vector<64x64xbf16>
    %214 = arith.truncf %210 : vector<64x384xf32> to vector<64x384xbf16>
    %cst_109 = arith.constant dense<0.000000e+00> : vector<64x384xf32>
    %215 = tpu.matmul %213, %214, %cst_109 {dimension_numbers = #tpu.dot_dimension_numbers<[1], [0], [0], [1], [0, 0, 1, 1], [], []>} : vector<64x64xbf16>, vector<64x384xbf16>, vector<64x384xf32> -> vector<64x384xf32>
    %c0_110 = arith.constant 0 : index
    %c10_111 = arith.constant 10 : index
    %216 = vector.load %arg4[%c0_110, %c10_111] : memref<64x14xf32, #tpu.memory_space<vmem>>, vector<64x1xf32>
    %217 = vector.broadcast %216 : vector<64x1xf32> to vector<64x384xf32>
    %218 = arith.addf %215, %217 : vector<64x384xf32>
    %cst_112 = arith.constant 0.000000e+00 : f32
    %219 = vector.broadcast %cst_112 : f32 to vector<64x384xf32>
    %220 = arith.maximumf %218, %219 : vector<64x384xf32>
    %221 = vector.extract_strided_slice %220 {offsets = [32, 0], sizes = [32, 384], strides = [1, 1]} : vector<64x384xf32> to vector<32x384xf32>
    %222 = vector.broadcast %188 : vector<1x384xf32> to vector<32x384xf32>
    %223 = arith.mulf %221, %222 : vector<32x384xf32>
    %224 = vector.extract_strided_slice %220 {offsets = [0, 0], sizes = [32, 384], strides = [1, 1]} : vector<64x384xf32> to vector<32x384xf32>
    %225 = vector.broadcast %190 : vector<1x384xf32> to vector<32x384xf32>
    %226 = arith.mulf %224, %225 : vector<32x384xf32>
    %227 = arith.addf %223, %226 : vector<32x384xf32>
    %228 = arith.truncf %227 : vector<32x384xf32> to vector<32x384xbf16>
    %cst_113 = arith.constant dense<0.000000e+00> : vector<32x28xf32>
    %229 = tpu.matmul %228, %2, %cst_113 {dimension_numbers = #tpu.dot_dimension_numbers<[1], [0], [0], [1], [0, 0, 1, 1], [], []>} : vector<32x384xbf16>, vector<384x28xbf16>, vector<32x28xf32> -> vector<32x28xf32>
    %c15 = arith.constant 15 : index
    %c0_114 = arith.constant 0 : index
    %c0_115 = arith.constant 0 : index
    %230 = vector.load %arg3[%c15, %c0_114, %c0_115] : memref<19x64x128xbf16, #tpu.memory_space<vmem>>, vector<1x64x128xbf16>
    %231 = vector.shape_cast %230 : vector<1x64x128xbf16> to vector<64x128xbf16>
    %232 = vector.extract_strided_slice %231 {offsets = [0, 0], sizes = [32, 2], strides = [1, 1]} : vector<64x128xbf16> to vector<32x2xbf16>
    %233 = arith.truncf %0 : vector<2x28xf32> to vector<2x28xbf16>
    %cst_116 = arith.constant dense<0.000000e+00> : vector<32x28xf32>
    %234 = tpu.matmul %232, %233, %cst_116 {dimension_numbers = #tpu.dot_dimension_numbers<[1], [0], [0], [1], [0, 0, 1, 1], [], []>} : vector<32x2xbf16>, vector<2x28xbf16>, vector<32x28xf32> -> vector<32x28xf32>
    %c16 = arith.constant 16 : index
    %c0_117 = arith.constant 0 : index
    %c0_118 = arith.constant 0 : index
    %235 = vector.load %arg3[%c16, %c0_117, %c0_118] : memref<19x64x128xbf16, #tpu.memory_space<vmem>>, vector<1x64x128xbf16>
    %236 = vector.shape_cast %235 : vector<1x64x128xbf16> to vector<64x128xbf16>
    %237 = vector.extract_strided_slice %236 {offsets = [0, 0], sizes = [32, 32], strides = [1, 1]} : vector<64x128xbf16> to vector<32x32xbf16>
    %238 = arith.truncf %229 : vector<32x28xf32> to vector<32x28xbf16>
    %cst_119 = arith.constant dense<0.000000e+00> : vector<32x28xf32>
    %239 = tpu.matmul %237, %238, %cst_119 {dimension_numbers = #tpu.dot_dimension_numbers<[1], [0], [0], [1], [0, 0, 1, 1], [], []>} : vector<32x32xbf16>, vector<32x28xbf16>, vector<32x28xf32> -> vector<32x28xf32>
    %240 = arith.addf %234, %239 : vector<32x28xf32>
    %c0_120 = arith.constant 0 : index
    %c11_121 = arith.constant 11 : index
    %241 = vector.load %arg4[%c0_120, %c11_121] : memref<64x14xf32, #tpu.memory_space<vmem>>, vector<32x1xf32>
    %242 = vector.broadcast %241 : vector<32x1xf32> to vector<32x28xf32>
    %243 = arith.addf %240, %242 : vector<32x28xf32>
    %cst_122 = arith.constant 0.000000e+00 : f32
    %244 = vector.broadcast %cst_122 : f32 to vector<32x28xf32>
    %245 = arith.maximumf %243, %244 : vector<32x28xf32>
    %c17 = arith.constant 17 : index
    %c0_123 = arith.constant 0 : index
    %c0_124 = arith.constant 0 : index
    %246 = vector.load %arg3[%c17, %c0_123, %c0_124] : memref<19x64x128xbf16, #tpu.memory_space<vmem>>, vector<1x64x128xbf16>
    %247 = vector.shape_cast %246 : vector<1x64x128xbf16> to vector<64x128xbf16>
    %248 = vector.extract_strided_slice %247 {offsets = [0, 0], sizes = [32, 32], strides = [1, 1]} : vector<64x128xbf16> to vector<32x32xbf16>
    %249 = arith.truncf %245 : vector<32x28xf32> to vector<32x28xbf16>
    %cst_125 = arith.constant dense<0.000000e+00> : vector<32x28xf32>
    %250 = tpu.matmul %248, %249, %cst_125 {dimension_numbers = #tpu.dot_dimension_numbers<[1], [0], [0], [1], [0, 0, 1, 1], [], []>} : vector<32x32xbf16>, vector<32x28xbf16>, vector<32x28xf32> -> vector<32x28xf32>
    %c0_126 = arith.constant 0 : index
    %c12_127 = arith.constant 12 : index
    %251 = vector.load %arg4[%c0_126, %c12_127] : memref<64x14xf32, #tpu.memory_space<vmem>>, vector<32x1xf32>
    %252 = vector.broadcast %251 : vector<32x1xf32> to vector<32x28xf32>
    %253 = arith.addf %250, %252 : vector<32x28xf32>
    %cst_128 = arith.constant 0.000000e+00 : f32
    %254 = vector.broadcast %cst_128 : f32 to vector<32x28xf32>
    %255 = arith.maximumf %253, %254 : vector<32x28xf32>
    %c18 = arith.constant 18 : index
    %c0_129 = arith.constant 0 : index
    %c0_130 = arith.constant 0 : index
    %256 = vector.load %arg3[%c18, %c0_129, %c0_130] : memref<19x64x128xbf16, #tpu.memory_space<vmem>>, vector<1x64x128xbf16>
    %257 = vector.shape_cast %256 : vector<1x64x128xbf16> to vector<64x128xbf16>
    %258 = vector.extract_strided_slice %257 {offsets = [0, 0], sizes = [2, 32], strides = [1, 1]} : vector<64x128xbf16> to vector<2x32xbf16>
    %259 = arith.truncf %255 : vector<32x28xf32> to vector<32x28xbf16>
    %cst_131 = arith.constant dense<0.000000e+00> : vector<2x28xf32>
    %260 = tpu.matmul %258, %259, %cst_131 {dimension_numbers = #tpu.dot_dimension_numbers<[1], [0], [0], [1], [0, 0, 1, 1], [], []>} : vector<2x32xbf16>, vector<32x28xbf16>, vector<2x28xf32> -> vector<2x28xf32>
    %c0_132 = arith.constant 0 : index
    %c13_133 = arith.constant 13 : index
    %261 = vector.load %arg4[%c0_132, %c13_133] : memref<64x14xf32, #tpu.memory_space<vmem>>, vector<2x1xf32>
    %262 = vector.broadcast %261 : vector<2x1xf32> to vector<2x28xf32>
    %263 = arith.addf %260, %262 : vector<2x28xf32>
    %264 = arith.addf %0, %263 : vector<2x28xf32>
    %c0_134 = arith.constant 0 : index
    %c0_135 = arith.constant 0 : index
    %265 = vector.load %arg6[%c0_134, %c0_135] : memref<2x28xf32, #tpu.memory_space<vmem>>, vector<2x28xf32>
    tpu.vector_store %arg6[%c0_134, %c0_135], %264 {strides = array<i32>} : memref<2x28xf32, #tpu.memory_space<vmem>>, vector<2x28xf32>,
    return
  }
}

</mosaic_0001>

<llo_original>
// kernel: mul.62
$region0: #{mul.62}
  #allocation0 [shape = 's32[1]{0}', space=sflag, size = 0x4, scoped, tag = 'scoped memory for mul.62']
  %s0 = inlined_call_operand.vmem [shape: f32[2], index: 0, kind: input, shape index: {}]
  %s1 = inlined_call_operand.vmem [shape: f32[2,14,1], index: 1, kind: output, shape index: {}]
  // Predicated region
  $region2: #{mul.62} parent=0 // pred_check
    _
  $region3: #{mul.62} parent=0 // pred_check_branch
    %3 = sbr.rel (0) target = $region5
  $region4: #{mul.62} parent=0 // pred_region
    _
  $region5: #{mul.62} parent=0 // pred_fallthru
    _
  %v4 = vld [vmem:[%s0] ss:$0 sm:$0xff]
  %6 = vbcast.lane.b32.xlu0 %v4, 256
  %v7 = vpop.permute.xlu0 %6
  %8 = vst [vmem:[%s1] sm:$0x3] %v7

// kernel: fwd.1
$region0: #{fwd.1}
  #allocation0 [shape = 'u32[]', space=smem, size = 0x4, offset = 0x4, fixed_abs, tag = 'smem constant byte address 0x4 - core index']
  #allocation1 [shape = 'u32[144,128]{1,0:T(1,128)}', space=vmem, size = 0x12000, scoped, tag = 'internal scratch']
  %s0 = inlined_call_operand.vmem [shape: f32[2,28], index: 0, kind: input, shape index: {}]
  %s1 = inlined_call_operand.hbm [shape: bf16[28,768], index: 1, kind: input, shape index: {}]
  %s2 = inlined_call_operand.hbm [shape: bf16[384,28], index: 2, kind: input, shape index: {}]
  %s3 = inlined_call_operand.hbm [shape: bf16[19,64,128], index: 3, kind: input, shape index: {}]
  %s4 = inlined_call_operand.hbm [shape: f32[64,14], index: 4, kind: input, shape index: {}]
  %s5 = inlined_call_operand.vmem [shape: f32[2,364], index: 5, kind: output, shape index: {0}]
  %s6 = inlined_call_operand.vmem [shape: f32[2,28], index: 6, kind: output, shape index: {1}]
  %s7 = inlined_call_operand.vmem [shape: f32[32,364], index: 7, kind: output, shape index: {2}]
  %8 = xla_tuple %s5, %s6, %s7
  %s9 = sld [smem:[#allocation0]]
  $region62: #{fwd.1} parent=0
    _
  %s11 = ssub.s32 1, %s9
  %s12 = scalar_select 0, %s11, %s9
  $region1: #{fwd.1} parent=0
    #allocation2 [shape = 'u8[49152]{0}', space=vmem, size = 0xc000, scoped, tag = 'input window, operand 1, single buffered']
    #allocation3 [shape = 's32[1]{0}', space=sflag, size = 0x4, scoped, tag = 'scoped memory for fwd.1']
    #allocation4 [shape = 'u8[98304]{0}', space=vmem, size = 0x18000, scoped, tag = 'input window, operand 2, single buffered']
    #allocation5 [shape = 's32[1]{0}', space=sflag, size = 0x4, scoped, tag = 'scoped memory for fwd.1']
    #allocation6 [shape = 'u8[311296]{0}', space=vmem, size = 0x4c000, scoped, tag = 'input window, operand 3, single buffered']
    #allocation7 [shape = 'u8[32768]{0}', space=vmem, size = 0x8000, scoped, tag = 'input window, operand 4, single buffered']
    #allocation8 [shape = 's32[1]{0}', space=sflag, size = 0x4, scoped, tag = 'scoped memory for fwd.1']
    %13 = vsyncpa [#allocation3], 0
    %14 = vsyncpa [#allocation5], 0
    %15 = vsyncpa [#allocation8], 0
    // Predicated region
    $region2: #{fwd.1} parent=1 // pred_check
      _
    $region3: #{fwd.1} parent=1 // pred_check_branch
      %17 = sbr.rel (0) target = $region5
    $region4: #{fwd.1} parent=1 // pred_region
      _
    $region5: #{fwd.1} parent=1 // pred_fallthru
      _
    // Predicated region
    $region6: #{fwd.1} parent=1 // pred_check
      _
    $region7: #{fwd.1} parent=1 // pred_check_branch
      %19 = sbr.rel (0) target = $region9
    $region8: #{fwd.1} parent=1 // pred_region
      %s21 = ssub.s32 1536, 1536
      %22 = vsyncadd [#allocation3], %s21
      %s23 = sshll.u32 [#allocation2], 4
      %s24 = int_to_ptr.vmem [resolvable:$true] %s23
      %29 = dma.hbm_to_vmem [thread:$0]  %s1, 1536, %s24, [#allocation3], 384, 384, 24
    $region9: #{fwd.1} parent=1 // pred_fallthru
      _
    // Predicated region
    $region10: #{fwd.1} parent=1 // pred_check
      _
    $region11: #{fwd.1} parent=1 // pred_check_branch
      %31 = sbr.rel (0) target = $region13
    $region12: #{fwd.1} parent=1 // pred_region
      %s33 = ssub.s32 3072, 3072
      %34 = vsyncadd [#allocation5], %s33
      %s35 = sshll.u32 [#allocation4], 4
      %s36 = int_to_ptr.vmem [resolvable:$true] %s35
      %41 = dma.hbm_to_vmem [thread:$0]  %s2, 3072, %s36, [#allocation5], 64, 64, 4
    $region13: #{fwd.1} parent=1 // pred_fallthru
      _
    // Predicated region
    $region14: #{fwd.1} parent=1 // pred_check
      _
    $region15: #{fwd.1} parent=1 // pred_check_branch
      %43 = sbr.rel (0) target = $region17
    $region16: #{fwd.1} parent=1 // pred_region
      %s45 = ssub.s32 9728, 9728
      %46 = vsyncadd [#allocation5], %s45
      %s47 = sshll.u32 [#allocation6], 4
      %s48 = int_to_ptr.vmem [resolvable:$true] %s47
      %53 = dma.hbm_to_vmem [thread:$0]  %s3, 9728, %s48, [#allocation5], 64, 64, 4
    $region17: #{fwd.1} parent=1 // pred_fallthru
      _
    // Predicated region
    $region18: #{fwd.1} parent=1 // pred_check
      _
    $region19: #{fwd.1} parent=1 // pred_check_branch
      %55 = sbr.rel (0) target = $region21
    $region20: #{fwd.1} parent=1 // pred_region
      %s57 = ssub.s32 1024, 1024
      %58 = vsyncadd [#allocation8], %s57
      %s59 = sshll.u32 [#allocation7], 4
      %s60 = int_to_ptr.vmem [resolvable:$true] %s59
      %65 = dma.hbm_to_vmem [thread:$0]  %s4, 1024, %s60, [#allocation8], 128, 128, 8
    $region21: #{fwd.1} parent=1 // pred_fallthru
      _
    // Predicated region
    $region22: #{fwd.1} parent=1 // pred_check
      _
    $region23: #{fwd.1} parent=1 // pred_check_branch
      %67 = sbr.rel (0) target = $region25
    $region24: #{fwd.1} parent=1 // pred_region
      %68 = dma.done [#allocation3], 1536
    $region25: #{fwd.1} parent=1 // pred_fallthru
      _
    // Predicated region
    $region26: #{fwd.1} parent=1 // pred_check
      _
    $region27: #{fwd.1} parent=1 // pred_check_branch
      %70 = sbr.rel (0) target = $region29
    $region28: #{fwd.1} parent=1 // pred_region
      %71 = dma.done [#allocation5], 3072
    $region29: #{fwd.1} parent=1 // pred_fallthru
      _
    // Predicated region
    $region30: #{fwd.1} parent=1 // pred_check
      _
    $region31: #{fwd.1} parent=1 // pred_check_branch
      %73 = sbr.rel (0) target = $region33
    $region32: #{fwd.1} parent=1 // pred_region
      %74 = dma.done [#allocation5], 9728
    $region33: #{fwd.1} parent=1 // pred_fallthru
      _
    // Predicated region
    $region34: #{fwd.1} parent=1 // pred_check
      _
    $region35: #{fwd.1} parent=1 // pred_check_branch
      %76 = sbr.rel (0) target = $region37
    $region36: #{fwd.1} parent=1 // pred_region
      %77 = dma.done [#allocation8], 1024
    $region37: #{fwd.1} parent=1 // pred_fallthru
      _
    %v79 = vld [vmem:[%s0] sm:$0x3]
    %v80 = vld [vmem:[#allocation2] sm:$0xff]
    %v81 = vld [vmem:[#allocation2 + $0x8] sm:$0xff]
    %v82 = vld [vmem:[#allocation2 + $0x10] sm:$0xff]
    %v83 = vld [vmem:[#allocation2 + $0x18] sm:$0xff]
    %v84 = vld [vmem:[#allocation2 + $0x20] sm:$0xff]
    %v85 = vld [vmem:[#allocation2 + $0x28] sm:$0xff]
    %v86 = vld [vmem:[#allocation2 + $0x30] sm:$0xff]
    %v87 = vld [vmem:[#allocation2 + $0x38] sm:$0xff]
    %v88 = vld [vmem:[#allocation2 + $0x40] sm:$0xff]
    %v89 = vld [vmem:[#allocation2 + $0x48] sm:$0x33]
    %v90 = vld [vmem:[#allocation2 + $0x50] sm:$0x33]
    %v91 = vld [vmem:[#allocation2 + $0x58] sm:$0x33]
    %v92 = vld [vmem:[#allocation4] sm:$0xf]
    %v93 = vld [vmem:[#allocation4 + $0x4] sm:$0xf]
    %v94 = vld [vmem:[#allocation4 + $0x8] sm:$0xf]
    %v95 = vld [vmem:[#allocation4 + $0xc] sm:$0xf]
    %v96 = vld [vmem:[#allocation4 + $0x10] sm:$0xf]
    %v97 = vld [vmem:[#allocation4 + $0x14] sm:$0xf]
    %v98 = vld [vmem:[#allocation4 + $0x18] sm:$0xf]
    %v99 = vld [vmem:[#allocation4 + $0x1c] sm:$0xf]
    %v100 = vld [vmem:[#allocation4 + $0x20] sm:$0xf]
    %v101 = vld [vmem:[#allocation4 + $0x24] sm:$0xf]
    %v102 = vld [vmem:[#allocation4 + $0x28] sm:$0xf]
    %v103 = vld [vmem:[#allocation4 + $0x2c] sm:$0xf]
    %v104 = vld [vmem:[#allocation4 + $0x30] sm:$0xf]
    %v105 = vld [vmem:[#allocation4 + $0x34] sm:$0xf]
    %v106 = vld [vmem:[#allocation4 + $0x38] sm:$0xf]
    %v107 = vld [vmem:[#allocation4 + $0x3c] sm:$0xf]
    %v108 = vld [vmem:[#allocation4 + $0x40] sm:$0xf]
    %v109 = vld [vmem:[#allocation4 + $0x44] sm:$0xf]
    %v110 = vld [vmem:[#allocation4 + $0x48] sm:$0xf]
    %v111 = vld [vmem:[#allocation4 + $0x4c] sm:$0xf]
    %v112 = vld [vmem:[#allocation4 + $0x50] sm:$0xf]
    %v113 = vld [vmem:[#allocation4 + $0x54] sm:$0xf]
    %v114 = vld [vmem:[#allocation4 + $0x58] sm:$0xf]
    %v115 = vld [vmem:[#allocation4 + $0x5c] sm:$0xf]
    %v116 = vld [vmem:[#allocation4 + $0x60] sm:$0xf]
    %v117 = vld [vmem:[#allocation4 + $0x64] sm:$0xf]
    %v118 = vld [vmem:[#allocation4 + $0x68] sm:$0xf]
    %v119 = vld [vmem:[#allocation4 + $0x6c] sm:$0xf]
    %v120 = vld [vmem:[#allocation4 + $0x70] sm:$0xf]
    %v121 = vld [vmem:[#allocation4 + $0x74] sm:$0xf]
    %v122 = vld [vmem:[#allocation4 + $0x78] sm:$0xf]
    %v123 = vld [vmem:[#allocation4 + $0x7c] sm:$0xf]
    %v124 = vld [vmem:[#allocation4 + $0x80] sm:$0xf]
    %v125 = vld [vmem:[#allocation4 + $0x84] sm:$0xf]
    %v126 = vld [vmem:[#allocation4 + $0x88] sm:$0xf]
    %v127 = vld [vmem:[#allocation4 + $0x8c] sm:$0xf]
    %v128 = vld [vmem:[#allocation4 + $0x90] sm:$0xf]
    %v129 = vld [vmem:[#allocation4 + $0x94] sm:$0xf]
    %v130 = vld [vmem:[#allocation4 + $0x98] sm:$0xf]
    %v131 = vld [vmem:[#allocation4 + $0x9c] sm:$0xf]
    %v132 = vld [vmem:[#allocation4 + $0xa0] sm:$0xf]
    %v133 = vld [vmem:[#allocation4 + $0xa4] sm:$0xf]
    %v134 = vld [vmem:[#allocation4 + $0xa8] sm:$0xf]
    %v135 = vld [vmem:[#allocation4 + $0xac] sm:$0xf]
    %v136 = vld [vmem:[#allocation4 + $0xb0] sm:$0xf]
    %v137 = vld [vmem:[#allocation4 + $0xb4] sm:$0xf]
    %v138 = vld [vmem:[#allocation4 + $0xb8] sm:$0xf]
    %v139 = vld [vmem:[#allocation4 + $0xbc] sm:$0xf]
    %v140 = vld [vmem:[#allocation6] sm:$0xf]
    %v141 = vld [vmem:[#allocation6 + $0x4] sm:$0xf]
    %v142 = vld [vmem:[#allocation6 + $0x8] sm:$0xf]
    %v143 = vld [vmem:[#allocation6 + $0xc] sm:$0xf]
    %v144 = vld [vmem:[#allocation6 + $0x10] sm:$0xf]
    %v145 = vld [vmem:[#allocation6 + $0x14] sm:$0xf]
    %v146 = vld [vmem:[#allocation6 + $0x18] sm:$0xf]
    %v147 = vld [vmem:[#allocation6 + $0x1c] sm:$0xf]
    %v148 = vpack.c.bf16 %v79, %v79
    %v149 = vld [vmem:[#allocation7] sm:$0xff]
    %v150 = vld [vmem:[#allocation7 + $0x8] sm:$0xff]
    %v151 = vld [vmem:[#allocation7 + $0x10] sm:$0xff]
    %v152 = vld [vmem:[#allocation7 + $0x18] sm:$0xff]
    %v153 = vld [vmem:[#allocation7 + $0x20] sm:$0xff]
    %v154 = vld [vmem:[#allocation7 + $0x28] sm:$0xff]
    %v155 = vld [vmem:[#allocation7 + $0x30] sm:$0xff]
    %v156 = vld [vmem:[#allocation7 + $0x38] sm:$0xff]
    %158 = vset.pattern.permute.xlu0 0
    %159 = vperm.xlu0 %158, %v149
    %v160 = vpop.permute.xlu0 %159
    %163 = vset.pattern.permute.xlu0 0
    %164 = vperm.xlu0 %163, %v150
    %v165 = vpop.permute.xlu0 %164
    %168 = vset.pattern.permute.xlu0 0
    %169 = vperm.xlu0 %168, %v151
    %v170 = vpop.permute.xlu0 %169
    %173 = vset.pattern.permute.xlu0 0
    %174 = vperm.xlu0 %173, %v152
    %v175 = vpop.permute.xlu0 %174
    %178 = vset.pattern.permute.xlu0 0
    %179 = vperm.xlu0 %178, %v153
    %v180 = vpop.permute.xlu0 %179
    %183 = vset.pattern.permute.xlu0 0
    %184 = vperm.xlu0 %183, %v154
    %v185 = vpop.permute.xlu0 %184
    %188 = vset.pattern.permute.xlu0 0
    %189 = vperm.xlu0 %188, %v155
    %v190 = vpop.permute.xlu0 %189
    %193 = vset.pattern.permute.xlu0 0
    %194 = vperm.xlu0 %193, %v156
    %v195 = vpop.permute.xlu0 %194
    %v205 = vunpack.c.l.b16 %v140
    %v206 = vunpack.c.l.b16 %v141
    %v207 = vunpack.c.l.b16 %v142
    %v208 = vunpack.c.l.b16 %v143
    %v209 = vunpack.c.l.b16 %v144
    %v210 = vunpack.c.l.b16 %v145
    %v211 = vunpack.c.l.b16 %v146
    %v212 = vunpack.c.l.b16 %v147
    %v213 = vpack.c.b16 %v206, %v205
    %v214 = vpack.c.b16 %v208, %v207
    %v215 = vpack.c.b16 %v210, %v209
    %v216 = vpack.c.b16 %v212, %v211
    %vm217 = vcmask 15360
    %v219 = vsel %vm217, %v213, 0
    %v222 = vsel %vm217, %v214, 0
    %v225 = vsel %vm217, %v215, 0
    %v228 = vsel %vm217, %v216, 0
    %vm230 = vcmask 1040384
    %v232 = vsel %vm230, %v148, 0
    %234 = vmatprep.subr.bf16.mxu0 0
    %235 = vmatpush1.bf16.msra.mxu0 %v232
    %236 = vmatprep.subr.bf16.mxu0 0
    %237 = vmatpush1.bf16.msra.mxu0 0
    %238 = vmatprep.subr.bf16.mxu0 0
    %239 = vmatpush1.bf16.msra.mxu0 0
    %240 = vmatprep.subr.bf16.mxu0 0
    %241 = vmatpush1.bf16.msra.mxu0 0
    %242 = vmatprep.subr.bf16.mxu0 0
    %243 = vmatpush1.bf16.msra.mxu0 0
    %244 = vmatprep.subr.bf16.mxu0 0
    %245 = vmatpush1.bf16.msra.mxu0 0
    %246 = vmatprep.subr.bf16.mxu0 0
    %247 = vmatpush1.bf16.msra.mxu0 0
    %248 = vmatprep.subr.bf16.mxu0 0
    %249 = vmatpush1.bf16.msra.mxu0 0
    %250 = vmatprep.subr.bf16.mxu0 0
    %251 = vmatpush1.bf16.msra.mxu0 0
    %252 = vmatprep.subr.bf16.mxu0 0
    %253 = vmatpush1.bf16.msra.mxu0 0
    %254 = vmatprep.subr.bf16.mxu0 0
    %255 = vmatpush1.bf16.msra.mxu0 0
    %256 = vmatprep.subr.bf16.mxu0 0
    %257 = vmatpush1.bf16.msra.mxu0 0
    %258 = vmatprep.subr.bf16.mxu0 0
    %259 = vmatpush1.bf16.msra.mxu0 0
    %260 = vmatprep.subr.bf16.mxu0 0
    %261 = vmatpush1.bf16.msra.mxu0 0
    %262 = vmatprep.subr.bf16.mxu0 0
    %263 = vmatpush1.bf16.msra.mxu0 0
    %264 = vmatprep.subr.bf16.mxu0 0
    %265 = vmatpush1.bf16.msra.mxu0 0
    %266 = vmatprep.mubr.bf16.mxu0 0
    %267 = vmatmul.mubr.bf16.gmra.mrb[0].mxu0 %v219
    %v268 = vpop.f32.mrb[0].mxu0
    %v269 = vadd.f32 %v160, %v268
    %v270 = vpop.f32.mrb[0].mxu0
    %v271 = vpop.f32.mrb[0].mxu0
    %v272 = vadd.f32 %v165, %v271
    %v273 = vpop.f32.mrb[0].mxu0
    %274 = vmatprep.mubr.bf16.mxu0 0
    %275 = vmatmul.mubr.bf16.gmra.mrb[0].mxu0 %v222
    %v276 = vpop.f32.mrb[0].mxu0
    %v277 = vadd.f32 %v170, %v276
    %v278 = vpop.f32.mrb[0].mxu0
    %v279 = vpop.f32.mrb[0].mxu0
    %v280 = vadd.f32 %v175, %v279
    %v281 = vpop.f32.mrb[0].mxu0
    %282 = vmatprep.mubr.bf16.mxu0 0
    %283 = vmatmul.mubr.bf16.gmra.mrb[0].mxu0 %v225
    %v284 = vpop.f32.mrb[0].mxu0
    %v285 = vadd.f32 %v180, %v284
    %v286 = vpop.f32.mrb[0].mxu0
    %v287 = vpop.f32.mrb[0].mxu0
    %v288 = vadd.f32 %v185, %v287
    %v289 = vpop.f32.mrb[0].mxu0
    %290 = vmatprep.mubr.bf16.mxu0 0
    %291 = vmatmul.mubr.bf16.gmra.mrb[0].mxu0 %v228
    %v292 = vpop.f32.mrb[0].mxu0
    %v293 = vadd.f32 %v190, %v292
    %v294 = vpop.f32.mrb[0].mxu0
    %v295 = vpop.f32.mrb[0].mxu0
    %v296 = vadd.f32 %v195, %v295
    %v297 = vpop.f32.mrb[0].mxu0
    %298 = vdwg.mxu0
    %vm299 = vcmp.gt.f32.partialorder %v269, 0.0
    %vm300 = vcmp.gt.f32.partialorder %v272, 0.0
    %vm301 = vcmp.gt.f32.partialorder %v277, 0.0
    %vm302 = vcmp.gt.f32.partialorder %v280, 0.0
    %vm303 = vcmp.gt.f32.partialorder %v285, 0.0
    %vm304 = vcmp.gt.f32.partialorder %v288, 0.0
    %vm305 = vcmp.gt.f32.partialorder %v293, 0.0
    %vm306 = vcmp.gt.f32.partialorder %v296, 0.0
    %v307 = vmin.f32 %v269, 0.0
    %v308 = vmin.f32 %v272, 0.0
    %v309 = vmin.f32 %v277, 0.0
    %v310 = vmin.f32 %v280, 0.0
    %v311 = vmin.f32 %v285, 0.0
    %v312 = vmin.f32 %v288, 0.0
    %v313 = vmin.f32 %v293, 0.0
    %v314 = vmin.f32 %v296, 0.0
    %v315 = vmul.f32 %v307, 1.442695
    %v316 = vpow.pop %v315
    %v317 = vmul.f32 %v308, 1.442695
    %v318 = vpow.pop %v317
    %v319 = vmul.f32 %v309, 1.442695
    %v320 = vpow.pop %v319
    %v321 = vmul.f32 %v310, 1.442695
    %v322 = vpow.pop %v321
    %v323 = vmul.f32 %v311, 1.442695
    %v324 = vpow.pop %v323
    %v325 = vmul.f32 %v312, 1.442695
    %v326 = vpow.pop %v325
    %v327 = vmul.f32 %v313, 1.442695
    %v328 = vpow.pop %v327
    %v329 = vmul.f32 %v314, 1.442695
    %v330 = vpow.pop %v329
    %v331 = vsub.f32 %v316, 1.0
    %v332 = vsub.f32 %v318, 1.0
    %v333 = vsub.f32 %v320, 1.0
    %v334 = vsub.f32 %v322, 1.0
    %v335 = vsub.f32 %v324, 1.0
    %v336 = vsub.f32 %v326, 1.0
    %v337 = vsub.f32 %v328, 1.0
    %v338 = vsub.f32 %v330, 1.0
    %v339 = vsel %vm299, %v269, %v331
    %v340 = vsel %vm300, %v272, %v332
    %v341 = vsel %vm301, %v277, %v333
    %v342 = vsel %vm302, %v280, %v334
    %v343 = vsel %vm303, %v285, %v335
    %v344 = vsel %vm304, %v288, %v336
    %v345 = vsel %vm305, %v293, %v337
    %v346 = vsel %vm306, %v296, %v338
    %s347 = scalar_lea.vmem [#allocation6], 224
    %v348 = vld [vmem:[%s347] sm:$0xf]
    %v349 = vld [vmem:[%s347 + $0x4] sm:$0xf]
    %v350 = vld [vmem:[%s347 + $0x8] sm:$0xf]
    %v351 = vld [vmem:[%s347 + $0xc] sm:$0xf]
    %v352 = vld [vmem:[%s347 + $0x10] sm:$0xf]
    %v353 = vld [vmem:[%s347 + $0x14] sm:$0xf]
    %v354 = vld [vmem:[%s347 + $0x18] sm:$0xf]
    %v355 = vld [vmem:[%s347 + $0x1c] sm:$0xf]
    %v356 = vpack.c.bf16 %v340, %v339
    %v357 = vpack.c.bf16 %v342, %v341
    %v358 = vpack.c.bf16 %v344, %v343
    %v359 = vpack.c.bf16 %v346, %v345
    %360 = vset.pattern.permute.xlu0 1
    %361 = vperm.xlu0 %360, %v149
    %v362 = vpop.permute.xlu0 %361
    %364 = vset.pattern.permute.xlu0 1
    %365 = vperm.xlu0 %364, %v150
    %v366 = vpop.permute.xlu0 %365
    %368 = vset.pattern.permute.xlu0 1
    %369 = vperm.xlu0 %368, %v151
    %v370 = vpop.permute.xlu0 %369
    %372 = vset.pattern.permute.xlu0 1
    %373 = vperm.xlu0 %372, %v152
    %v374 = vpop.permute.xlu0 %373
    %376 = vset.pattern.permute.xlu0 1
    %377 = vperm.xlu0 %376, %v153
    %v378 = vpop.permute.xlu0 %377
    %380 = vset.pattern.permute.xlu0 1
    %381 = vperm.xlu0 %380, %v154
    %v382 = vpop.permute.xlu0 %381
    %384 = vset.pattern.permute.xlu0 1
    %385 = vperm.xlu0 %384, %v155
    %v386 = vpop.permute.xlu0 %385
    %388 = vset.pattern.permute.xlu0 1
    %389 = vperm.xlu0 %388, %v156
    %v390 = vpop.permute.xlu0 %389
    %v400 = vunpack.c.l.b16 %v348
    %v401 = vunpack.c.l.b16 %v349
    %v402 = vunpack.c.l.b16 %v350
    %v403 = vunpack.c.l.b16 %v351
    %v404 = vunpack.c.l.b16 %v352
    %v405 = vunpack.c.l.b16 %v353
    %v406 = vunpack.c.l.b16 %v354
    %v407 = vunpack.c.l.b16 %v355
    %v408 = vpack.c.b16 %v401, %v400
    %v409 = vpack.c.b16 %v403, %v402
    %v410 = vpack.c.b16 %v405, %v404
    %v411 = vpack.c.b16 %v407, %v406
    %vm412 = vcmask 523264
    %v414 = vsel %vm412, %v408, 0
    %v417 = vsel %vm412, %v409, 0
    %v420 = vsel %vm412, %v410, 0
    %v423 = vsel %vm412, %v411, 0
    %425 = vmatprep.subr.bf16.mxu0 0
    %426 = vmatpush1.bf16.msra.mxu0 %v356
    %427 = vmatprep.subr.bf16.mxu0 0
    %428 = vmatpush1.bf16.msra.mxu0 %v357
    %429 = vmatprep.subr.bf16.mxu0 0
    %430 = vmatpush1.bf16.msra.mxu0 %v358
    %431 = vmatprep.subr.bf16.mxu0 0
    %432 = vmatpush1.bf16.msra.mxu0 %v359
    %433 = vmatprep.subr.bf16.mxu0 0
    %434 = vmatpush1.bf16.msra.mxu0 0
    %435 = vmatprep.subr.bf16.mxu0 0
    %436 = vmatpush1.bf16.msra.mxu0 0
    %437 = vmatprep.subr.bf16.mxu0 0
    %438 = vmatpush1.bf16.msra.mxu0 0
    %439 = vmatprep.subr.bf16.mxu0 0
    %440 = vmatpush1.bf16.msra.mxu0 0
    %441 = vmatprep.subr.bf16.mxu0 0
    %442 = vmatpush1.bf16.msra.mxu0 0
    %443 = vmatprep.subr.bf16.mxu0 0
    %444 = vmatpush1.bf16.msra.mxu0 0
    %445 = vmatprep.subr.bf16.mxu0 0
    %446 = vmatpush1.bf16.msra.mxu0 0
    %447 = vmatprep.subr.bf16.mxu0 0
    %448 = vmatpush1.bf16.msra.mxu0 0
    %449 = vmatprep.subr.bf16.mxu0 0
    %450 = vmatpush1.bf16.msra.mxu0 0
    %451 = vmatprep.subr.bf16.mxu0 0
    %452 = vmatpush1.bf16.msra.mxu0 0
    %453 = vmatprep.subr.bf16.mxu0 0
    %454 = vmatpush1.bf16.msra.mxu0 0
    %455 = vmatprep.subr.bf16.mxu0 0
    %456 = vmatpush1.bf16.msra.mxu0 0
    %457 = vmatprep.mubr.bf16.mxu0 0
    %458 = vmatmul.mubr.bf16.gmra.mrb[0].mxu0 %v414
    %v459 = vpop.f32.mrb[0].mxu0
    %v460 = vadd.f32 %v362, %v459
    %v461 = vpop.f32.mrb[0].mxu0
    %v462 = vpop.f32.mrb[0].mxu0
    %v463 = vadd.f32 %v366, %v462
    %v464 = vpop.f32.mrb[0].mxu0
    %465 = vmatprep.mubr.bf16.mxu0 0
    %466 = vmatmul.mubr.bf16.gmra.mrb[0].mxu0 %v417
    %v467 = vpop.f32.mrb[0].mxu0
    %v468 = vadd.f32 %v370, %v467
    %v469 = vpop.f32.mrb[0].mxu0
    %v470 = vpop.f32.mrb[0].mxu0
    %v471 = vadd.f32 %v374, %v470
    %v472 = vpop.f32.mrb[0].mxu0
    %473 = vmatprep.mubr.bf16.mxu0 0
    %474 = vmatmul.mubr.bf16.gmra.mrb[0].mxu0 %v420
    %v475 = vpop.f32.mrb[0].mxu0
    %v476 = vadd.f32 %v378, %v475
    %v477 = vpop.f32.mrb[0].mxu0
    %v478 = vpop.f32.mrb[0].mxu0
    %v479 = vadd.f32 %v382, %v478
    %v480 = vpop.f32.mrb[0].mxu0
    %481 = vmatprep.mubr.bf16.mxu0 0
    %482 = vmatmul.mubr.bf16.gmra.mrb[0].mxu0 %v423
    %v483 = vpop.f32.mrb[0].mxu0
    %v484 = vadd.f32 %v386, %v483
    %v485 = vpop.f32.mrb[0].mxu0
    %v486 = vpop.f32.mrb[0].mxu0
    %v487 = vadd.f32 %v390, %v486
    %v488 = vpop.f32.mrb[0].mxu0
    %489 = vdwg.mxu0
    %vm490 = vcmp.gt.f32.partialorder %v460, 0.0
    %vm491 = vcmp.gt.f32.partialorder %v463, 0.0
    %vm492 = vcmp.gt.f32.partialorder %v468, 0.0
    %vm493 = vcmp.gt.f32.partialorder %v471, 0.0
    %vm494 = vcmp.gt.f32.partialorder %v476, 0.0
    %vm495 = vcmp.gt.f32.partialorder %v479, 0.0
    %vm496 = vcmp.gt.f32.partialorder %v484, 0.0
    %vm497 = vcmp.gt.f32.partialorder %v487, 0.0
    %v498 = vmin.f32 %v460, 0.0
    %v499 = vmin.f32 %v463, 0.0
    %v500 = vmin.f32 %v468, 0.0
    %v501 = vmin.f32 %v471, 0.0
    %v502 = vmin.f32 %v476, 0.0
    %v503 = vmin.f32 %v479, 0.0
    %v504 = vmin.f32 %v484, 0.0
    %v505 = vmin.f32 %v487, 0.0
    %v506 = vmul.f32 %v498, 1.442695
    %v507 = vpow.pop %v506
    %v508 = vmul.f32 %v499, 1.442695
    %v509 = vpow.pop %v508
    %v510 = vmul.f32 %v500, 1.442695
    %v511 = vpow.pop %v510
    %v512 = vmul.f32 %v501, 1.442695
    %v513 = vpow.pop %v512
    %v514 = vmul.f32 %v502, 1.442695
    %v515 = vpow.pop %v514
    %v516 = vmul.f32 %v503, 1.442695
    %v517 = vpow.pop %v516
    %v518 = vmul.f32 %v504, 1.442695
    %v519 = vpow.pop %v518
    %v520 = vmul.f32 %v505, 1.442695
    %v521 = vpow.pop %v520
    %v522 = vsub.f32 %v507, 1.0
    %v523 = vsub.f32 %v509, 1.0
    %v524 = vsub.f32 %v511, 1.0
    %v525 = vsub.f32 %v513, 1.0
    %v526 = vsub.f32 %v515, 1.0
    %v527 = vsub.f32 %v517, 1.0
    %v528 = vsub.f32 %v519, 1.0
    %v529 = vsub.f32 %v521, 1.0
    %v530 = vsel %vm490, %v460, %v522
    %v531 = vsel %vm491, %v463, %v523
    %v532 = vsel %vm492, %v468, %v524
    %v533 = vsel %vm493, %v471, %v525
    %v534 = vsel %vm494, %v476, %v526
    %v535 = vsel %vm495, %v479, %v527
    %v536 = vsel %vm496, %v484, %v528
    %v537 = vsel %vm497, %v487, %v529
    %v538 = vmul.f32 %v530, 0.999995
    %v539 = vmul.f32 %v531, 0.999995
    %v540 = vmul.f32 %v532, 0.999995
    %v541 = vmul.f32 %v533, 0.999995
    %v542 = vmul.f32 %v534, 0.999995
    %v543 = vmul.f32 %v535, 0.999995
    %v544 = vmul.f32 %v536, 0.999995
    %v545 = vmul.f32 %v537, 0.999995
    %v546 = vpack.c.bf16 %v539, %v538
    %v547 = vpack.c.bf16 %v541, %v540
    %v548 = vpack.c.bf16 %v543, %v542
    %v549 = vpack.c.bf16 %v545, %v544
    %v562 = vunpack.c.l.b16 %v80
    %v563 = vunpack.c.h.b16 %v80
    %v564 = vunpack.c.l.b16 %v81
    %v565 = vunpack.c.h.b16 %v81
    %v566 = vunpack.c.l.b16 %v82
    %v567 = vunpack.c.h.b16 %v82
    %v568 = vunpack.c.l.b16 %v83
    %v569 = vunpack.c.h.b16 %v83
    %v570 = vunpack.c.l.b16 %v84
    %v571 = vunpack.c.h.b16 %v84
    %v572 = vunpack.c.l.b16 %v85
    %v573 = vunpack.c.h.b16 %v85
    %v574 = vunpack.c.l.b16 %v86
    %v575 = vunpack.c.h.b16 %v86
    %v576 = vunpack.c.l.b16 %v87
    %v577 = vunpack.c.h.b16 %v87
    %v578 = vunpack.c.l.b16 %v88
    %v579 = vunpack.c.h.b16 %v88
    %v580 = vunpack.c.l.b16 %v89
    %v581 = vunpack.c.h.b16 %v89
    %v582 = vunpack.c.l.b16 %v90
    %v583 = vunpack.c.h.b16 %v90
    %v584 = vunpack.c.l.b16 %v91
    %v585 = vunpack.c.h.b16 %v91
    %v586 = vpack.c.b16 %v568, %v562
    %v587 = vpack.c.b16 %v569, %v563
    %v588 = vpack.c.b16 %v570, %v564
    %v589 = vpack.c.b16 %v571, %v565
    %v590 = vpack.c.b16 %v572, %v566
    %v591 = vpack.c.b16 %v573, %v567
    %v592 = vpack.c.b16 %v580, %v574
    %v593 = vpack.c.b16 %v581, %v575
    %v594 = vpack.c.b16 %v582, %v576
    %v595 = vpack.c.b16 %v583, %v577
    %v596 = vpack.c.b16 %v584, %v578
    %v597 = vpack.c.b16 %v585, %v579
    %vm604 = vcmask 228352
    %v606 = vsel %vm604, %v546, 0
    %v609 = vsel %vm604, %v547, 0
    %v612 = vsel %vm604, %v548, 0
    %v615 = vsel %vm604, %v549, 0
    %vm617 = vcmask 1045504
    %v619 = vsel %vm617, %v592, 0
    %v622 = vsel %vm617, %v593, 0
    %v625 = vsel %vm617, %v594, 0
    %v628 = vsel %vm617, %v595, 0
    %v631 = vsel %vm617, %v596, 0
    %v634 = vsel %vm617, %v597, 0
    %636 = vmatprep.subr.bf16.mxu0 %v587
    %637 = vmatpush1.bf16.msra.mxu0 %v586
    %638 = vmatprep.subr.bf16.mxu0 %v622
    %639 = vmatpush1.bf16.msra.mxu0 %v619
    %640 = vmatprep.subr.bf16.mxu0 0
    %641 = vmatpush1.bf16.msra.mxu0 0
    %642 = vmatprep.subr.bf16.mxu0 0
    %643 = vmatpush1.bf16.msra.mxu0 0
    %644 = vmatprep.subr.bf16.mxu0 0
    %645 = vmatpush1.bf16.msra.mxu0 0
    %646 = vmatprep.subr.bf16.mxu0 0
    %647 = vmatpush1.bf16.msra.mxu0 0
    %648 = vmatprep.subr.bf16.mxu0 0
    %649 = vmatpush1.bf16.msra.mxu0 0
    %650 = vmatprep.subr.bf16.mxu0 0
    %651 = vmatpush1.bf16.msra.mxu0 0
    %652 = vmatprep.subr.bf16.mxu0 0
    %653 = vmatpush1.bf16.msra.mxu0 0
    %654 = vmatprep.subr.bf16.mxu0 0
    %655 = vmatpush1.bf16.msra.mxu0 0
    %656 = vmatprep.subr.bf16.mxu0 0
    %657 = vmatpush1.bf16.msra.mxu0 0
    %658 = vmatprep.subr.bf16.mxu0 0
    %659 = vmatpush1.bf16.msra.mxu0 0
    %660 = vmatprep.subr.bf16.mxu0 0
    %661 = vmatpush1.bf16.msra.mxu0 0
    %662 = vmatprep.subr.bf16.mxu0 0
    %663 = vmatpush1.bf16.msra.mxu0 0
    %664 = vmatprep.subr.bf16.mxu0 0
    %665 = vmatpush1.bf16.msra.mxu0 0
    %666 = vmatprep.subr.bf16.mxu0 0
    %667 = vmatpush1.bf16.msra.mxu0 0
    %668 = vmatprep.mubr.bf16.mxu0 0
    %669 = vmatmul.mubr.bf16.gmra.mrb[0].mxu0 %v606
    %v670 = vpop.f32.mrb[0].mxu0
    %v671 = vadd.f32 0.0, %v670
    %v672 = vpop.f32.mrb[0].mxu0
    %v673 = vadd.f32 0.0, %v672
    %v674 = vpop.f32.mrb[0].mxu0
    %v675 = vadd.f32 0.0, %v674
    %v676 = vpop.f32.mrb[0].mxu0
    %v677 = vadd.f32 0.0, %v676
    %678 = vmatprep.mubr.bf16.mxu0 0
    %679 = vmatmul.mubr.bf16.gmra.mrb[0].mxu0 %v609
    %v680 = vpop.f32.mrb[0].mxu0
    %v681 = vadd.f32 0.0, %v680
    %v682 = vpop.f32.mrb[0].mxu0
    %v683 = vadd.f32 0.0, %v682
    %v684 = vpop.f32.mrb[0].mxu0
    %v685 = vadd.f32 0.0, %v684
    %v686 = vpop.f32.mrb[0].mxu0
    %v687 = vadd.f32 0.0, %v686
    %688 = vmatprep.mubr.bf16.mxu0 0
    %689 = vmatmul.mubr.bf16.gmra.mrb[0].mxu0 %v612
    %v690 = vpop.f32.mrb[0].mxu0
    %v691 = vadd.f32 0.0, %v690
    %v692 = vpop.f32.mrb[0].mxu0
    %v693 = vadd.f32 0.0, %v692
    %v694 = vpop.f32.mrb[0].mxu0
    %v695 = vadd.f32 0.0, %v694
    %v696 = vpop.f32.mrb[0].mxu0
    %v697 = vadd.f32 0.0, %v696
    %698 = vmatprep.mubr.bf16.mxu0 0
    %699 = vmatmul.mubr.bf16.gmra.mrb[0].mxu0 %v615
    %v700 = vpop.f32.mrb[0].mxu0
    %v701 = vadd.f32 0.0, %v700
    %v702 = vpop.f32.mrb[0].mxu0
    %v703 = vadd.f32 0.0, %v702
    %v704 = vpop.f32.mrb[0].mxu0
    %v705 = vadd.f32 0.0, %v704
    %v706 = vpop.f32.mrb[0].mxu0
    %v707 = vadd.f32 0.0, %v706
    %708 = vdwg.mxu0
    %709 = vmatprep.subr.bf16.mxu0 %v589
    %710 = vmatpush1.bf16.msra.mxu0 %v588
    %711 = vmatprep.subr.bf16.mxu0 %v628
    %712 = vmatpush1.bf16.msra.mxu0 %v625
    %713 = vmatprep.subr.bf16.mxu0 0
    %714 = vmatpush1.bf16.msra.mxu0 0
    %715 = vmatprep.subr.bf16.mxu0 0
    %716 = vmatpush1.bf16.msra.mxu0 0
    %717 = vmatprep.subr.bf16.mxu0 0
    %718 = vmatpush1.bf16.msra.mxu0 0
    %719 = vmatprep.subr.bf16.mxu0 0
    %720 = vmatpush1.bf16.msra.mxu0 0
    %721 = vmatprep.subr.bf16.mxu0 0
    %722 = vmatpush1.bf16.msra.mxu0 0
    %723 = vmatprep.subr.bf16.mxu0 0
    %724 = vmatpush1.bf16.msra.mxu0 0
    %725 = vmatprep.subr.bf16.mxu0 0
    %726 = vmatpush1.bf16.msra.mxu0 0
    %727 = vmatprep.subr.bf16.mxu0 0
    %728 = vmatpush1.bf16.msra.mxu0 0
    %729 = vmatprep.subr.bf16.mxu0 0
    %730 = vmatpush1.bf16.msra.mxu0 0
    %731 = vmatprep.subr.bf16.mxu0 0
    %732 = vmatpush1.bf16.msra.mxu0 0
    %733 = vmatprep.subr.bf16.mxu0 0
    %734 = vmatpush1.bf16.msra.mxu0 0
    %735 = vmatprep.subr.bf16.mxu0 0
    %736 = vmatpush1.bf16.msra.mxu0 0
    %737 = vmatprep.subr.bf16.mxu0 0
    %738 = vmatpush1.bf16.msra.mxu0 0
    %739 = vmatprep.subr.bf16.mxu0 0
    %740 = vmatpush1.bf16.msra.mxu0 0
    %741 = vmatprep.mubr.bf16.mxu0 0
    %742 = vmatmul.mubr.bf16.gmra.mrb[0].mxu0 %v606
    %v743 = vpop.f32.mrb[0].mxu0
    %v744 = vadd.f32 0.0, %v743
    %v745 = vpop.f32.mrb[0].mxu0
    %v746 = vadd.f32 0.0, %v745
    %v747 = vpop.f32.mrb[0].mxu0
    %v748 = vadd.f32 0.0, %v747
    %v749 = vpop.f32.mrb[0].mxu0
    %v750 = vadd.f32 0.0, %v749
    %751 = vmatprep.mubr.bf16.mxu0 0
    %752 = vmatmul.mubr.bf16.gmra.mrb[0].mxu0 %v609
    %v753 = vpop.f32.mrb[0].mxu0
    %v754 = vadd.f32 0.0, %v753
    %v755 = vpop.f32.mrb[0].mxu0
    %v756 = vadd.f32 0.0, %v755
    %v757 = vpop.f32.mrb[0].mxu0
    %v758 = vadd.f32 0.0, %v757
    %v759 = vpop.f32.mrb[0].mxu0
    %v760 = vadd.f32 0.0, %v759
    %761 = vmatprep.mubr.bf16.mxu0 0
    %762 = vmatmul.mubr.bf16.gmra.mrb[0].mxu0 %v612
    %v763 = vpop.f32.mrb[0].mxu0
    %v764 = vadd.f32 0.0, %v763
    %v765 = vpop.f32.mrb[0].mxu0
    %v766 = vadd.f32 0.0, %v765
    %v767 = vpop.f32.mrb[0].mxu0
    %v768 = vadd.f32 0.0, %v767
    %v769 = vpop.f32.mrb[0].mxu0
    %v770 = vadd.f32 0.0, %v769
    %771 = vmatprep.mubr.bf16.mxu0 0
    %772 = vmatmul.mubr.bf16.gmra.mrb[0].mxu0 %v615
    %v773 = vpop.f32.mrb[0].mxu0
    %v774 = vadd.f32 0.0, %v773
    %v775 = vpop.f32.mrb[0].mxu0
    %v776 = vadd.f32 0.0, %v775
    %v777 = vpop.f32.mrb[0].mxu0
    %v778 = vadd.f32 0.0, %v777
    %v779 = vpop.f32.mrb[0].mxu0
    %v780 = vadd.f32 0.0, %v779
    %781 = vdwg.mxu0
    %782 = vmatprep.subr.bf16.mxu0 %v591
    %783 = vmatpush1.bf16.msra.mxu0 %v590
    %784 = vmatprep.subr.bf16.mxu0 %v634
    %785 = vmatpush1.bf16.msra.mxu0 %v631
    %786 = vmatprep.subr.bf16.mxu0 0
    %787 = vmatpush1.bf16.msra.mxu0 0
    %788 = vmatprep.subr.bf16.mxu0 0
    %789 = vmatpush1.bf16.msra.mxu0 0
    %790 = vmatprep.subr.bf16.mxu0 0
    %791 = vmatpush1.bf16.msra.mxu0 0
    %792 = vmatprep.subr.bf16.mxu0 0
    %793 = vmatpush1.bf16.msra.mxu0 0
    %794 = vmatprep.subr.bf16.mxu0 0
    %795 = vmatpush1.bf16.msra.mxu0 0
    %796 = vmatprep.subr.bf16.mxu0 0
    %797 = vmatpush1.bf16.msra.mxu0 0
    %798 = vmatprep.subr.bf16.mxu0 0
    %799 = vmatpush1.bf16.msra.mxu0 0
    %800 = vmatprep.subr.bf16.mxu0 0
    %801 = vmatpush1.bf16.msra.mxu0 0
    %802 = vmatprep.subr.bf16.mxu0 0
    %803 = vmatpush1.bf16.msra.mxu0 0
    %804 = vmatprep.subr.bf16.mxu0 0
    %805 = vmatpush1.bf16.msra.mxu0 0
    %806 = vmatprep.subr.bf16.mxu0 0
    %807 = vmatpush1.bf16.msra.mxu0 0
    %808 = vmatprep.subr.bf16.mxu0 0
    %809 = vmatpush1.bf16.msra.mxu0 0
    %810 = vmatprep.subr.bf16.mxu0 0
    %811 = vmatpush1.bf16.msra.mxu0 0
    %812 = vmatprep.subr.bf16.mxu0 0
    %813 = vmatpush1.bf16.msra.mxu0 0
    %814 = vmatprep.mubr.bf16.mxu0 0
    %815 = vmatmul.mubr.bf16.gmra.mrb[0].mxu0 %v606
    %v816 = vpop.f32.mrb[0].mxu0
    %v817 = vadd.f32 0.0, %v816
    %v818 = vpop.f32.mrb[0].mxu0
    %v819 = vadd.f32 0.0, %v818
    %v820 = vpop.f32.mrb[0].mxu0
    %v821 = vadd.f32 0.0, %v820
    %v822 = vpop.f32.mrb[0].mxu0
    %v823 = vadd.f32 0.0, %v822
    %824 = vmatprep.mubr.bf16.mxu0 0
    %825 = vmatmul.mubr.bf16.gmra.mrb[0].mxu0 %v609
    %v826 = vpop.f32.mrb[0].mxu0
    %v827 = vadd.f32 0.0, %v826
    %v828 = vpop.f32.mrb[0].mxu0
    %v829 = vadd.f32 0.0, %v828
    %v830 = vpop.f32.mrb[0].mxu0
    %v831 = vadd.f32 0.0, %v830
    %v832 = vpop.f32.mrb[0].mxu0
    %v833 = vadd.f32 0.0, %v832
    %834 = vmatprep.mubr.bf16.mxu0 0
    %835 = vmatmul.mubr.bf16.gmra.mrb[0].mxu0 %v612
    %v836 = vpop.f32.mrb[0].mxu0
    %v837 = vadd.f32 0.0, %v836
    %v838 = vpop.f32.mrb[0].mxu0
    %v839 = vadd.f32 0.0, %v838
    %v840 = vpop.f32.mrb[0].mxu0
    %v841 = vadd.f32 0.0, %v840
    %v842 = vpop.f32.mrb[0].mxu0
    %v843 = vadd.f32 0.0, %v842
    %844 = vmatprep.mubr.bf16.mxu0 0
    %845 = vmatmul.mubr.bf16.gmra.mrb[0].mxu0 %v615
    %v846 = vpop.f32.mrb[0].mxu0
    %v847 = vadd.f32 0.0, %v846
    %v848 = vpop.f32.mrb[0].mxu0
    %v849 = vadd.f32 0.0, %v848
    %v850 = vpop.f32.mrb[0].mxu0
    %v851 = vadd.f32 0.0, %v850
    %v852 = vpop.f32.mrb[0].mxu0
    %v853 = vadd.f32 0.0, %v852
    %854 = vdwg.mxu0
    %s855 = scalar_lea.vmem [#allocation6], 32
    %v856 = vld [vmem:[%s855] sm:$0xf]
    %v857 = vld [vmem:[%s855 + $0x4] sm:$0xf]
    %v858 = vld [vmem:[%s855 + $0x8] sm:$0xf]
    %v859 = vld [vmem:[%s855 + $0xc] sm:$0xf]
    %v860 = vld [vmem:[%s855 + $0x10] sm:$0xf]
    %v861 = vld [vmem:[%s855 + $0x14] sm:$0xf]
    %v862 = vld [vmem:[%s855 + $0x18] sm:$0xf]
    %v863 = vld [vmem:[%s855 + $0x1c] sm:$0xf]
    %v864 = vpack.c.bf16 %v675, %v671
    %v865 = vpack.c.bf16 %v677, %v673
    %v866 = vpack.c.bf16 %v748, %v744
    %v867 = vpack.c.bf16 %v685, %v681
    %v868 = vpack.c.bf16 %v687, %v683
    %v869 = vpack.c.bf16 %v758, %v754
    %v870 = vpack.c.bf16 %v695, %v691
    %v871 = vpack.c.bf16 %v697, %v693
    %v872 = vpack.c.bf16 %v768, %v764
    %v873 = vpack.c.bf16 %v705, %v701
    %v874 = vpack.c.bf16 %v707, %v703
    %v875 = vpack.c.bf16 %v778, %v774
    %s876 = scalar_lea.vmem [#allocation6], 64
    %v877 = vld [vmem:[%s876] sm:$0xf]
    %v878 = vld [vmem:[%s876 + $0x4] sm:$0xf]
    %v879 = vld [vmem:[%s876 + $0x8] sm:$0xf]
    %v880 = vld [vmem:[%s876 + $0xc] sm:$0xf]
    %v881 = vld [vmem:[%s876 + $0x10] sm:$0xf]
    %v882 = vld [vmem:[%s876 + $0x14] sm:$0xf]
    %v883 = vld [vmem:[%s876 + $0x18] sm:$0xf]
    %v884 = vld [vmem:[%s876 + $0x1c] sm:$0xf]
    %v885 = vpack.c.bf16 %v750, %v746
    %v886 = vpack.c.bf16 %v821, %v817
    %v887 = vpack.c.bf16 %v823, %v819
    %v888 = vpack.c.bf16 %v760, %v756
    %v889 = vpack.c.bf16 %v831, %v827
    %v890 = vpack.c.bf16 %v833, %v829
    %v891 = vpack.c.bf16 %v770, %v766
    %v892 = vpack.c.bf16 %v841, %v837
    %v893 = vpack.c.bf16 %v843, %v839
    %v894 = vpack.c.bf16 %v780, %v776
    %v895 = vpack.c.bf16 %v851, %v847
    %v896 = vpack.c.bf16 %v853, %v849
    %v905 = vunpack.c.l.b16 %v877
    %v906 = vunpack.c.l.b16 %v878
    %v907 = vunpack.c.l.b16 %v879
    %v908 = vunpack.c.l.b16 %v880
    %v909 = vunpack.c.l.b16 %v881
    %v910 = vunpack.c.l.b16 %v882
    %v911 = vunpack.c.l.b16 %v883
    %v912 = vunpack.c.l.b16 %v884
    %v913 = vpack.c.b16 %v906, %v905
    %v914 = vpack.c.b16 %v908, %v907
    %v915 = vpack.c.b16 %v910, %v909
    %v916 = vpack.c.b16 %v912, %v911
    %v918 = vsel %vm412, %v913, 0
    %v921 = vsel %vm412, %v914, 0
    %v924 = vsel %vm412, %v915, 0
    %v927 = vsel %vm412, %v916, 0
    %929 = vmatprep.subr.bf16.mxu0 %v886
    %930 = vmatpush1.bf16.msra.mxu0 %v885
    %931 = vmatprep.subr.bf16.mxu0 %v889
    %932 = vmatpush1.bf16.msra.mxu0 %v888
    %933 = vmatprep.subr.bf16.mxu0 %v892
    %934 = vmatpush1.bf16.msra.mxu0 %v891
    %935 = vmatprep.subr.bf16.mxu0 %v895
    %936 = vmatpush1.bf16.msra.mxu0 %v894
    %937 = vmatprep.subr.bf16.mxu0 0
    %938 = vmatpush1.bf16.msra.mxu0 0
    %939 = vmatprep.subr.bf16.mxu0 0
    %940 = vmatpush1.bf16.msra.mxu0 0
    %941 = vmatprep.subr.bf16.mxu0 0
    %942 = vmatpush1.bf16.msra.mxu0 0
    %943 = vmatprep.subr.bf16.mxu0 0
    %944 = vmatpush1.bf16.msra.mxu0 0
    %945 = vmatprep.subr.bf16.mxu0 0
    %946 = vmatpush1.bf16.msra.mxu0 0
    %947 = vmatprep.subr.bf16.mxu0 0
    %948 = vmatpush1.bf16.msra.mxu0 0
    %949 = vmatprep.subr.bf16.mxu0 0
    %950 = vmatpush1.bf16.msra.mxu0 0
    %951 = vmatprep.subr.bf16.mxu0 0
    %952 = vmatpush1.bf16.msra.mxu0 0
    %953 = vmatprep.subr.bf16.mxu0 0
    %954 = vmatpush1.bf16.msra.mxu0 0
    %955 = vmatprep.subr.bf16.mxu0 0
    %956 = vmatpush1.bf16.msra.mxu0 0
    %957 = vmatprep.subr.bf16.mxu0 0
    %958 = vmatpush1.bf16.msra.mxu0 0
    %959 = vmatprep.subr.bf16.mxu0 0
    %960 = vmatpush1.bf16.msra.mxu0 0
    %961 = vmatprep.mubr.bf16.mxu0 0
    %962 = vmatmul.mubr.bf16.gmra.mrb[0].mxu0 %v918
    %v963 = vpop.f32.mrb[0].mxu0
    %v964 = vadd.f32 0.0, %v963
    %v965 = vpop.f32.mrb[0].mxu0
    %v966 = vadd.f32 0.0, %v965
    %v967 = vpop.f32.mrb[0].mxu0
    %v968 = vadd.f32 0.0, %v967
    %v969 = vpop.f32.mrb[0].mxu0
    %v970 = vadd.f32 0.0, %v969
    %971 = vmatprep.mubr.bf16.mxu0 0
    %972 = vmatmul.mubr.bf16.gmra.mrb[0].mxu0 %v921
    %v973 = vpop.f32.mrb[0].mxu0
    %v974 = vadd.f32 0.0, %v973
    %v975 = vpop.f32.mrb[0].mxu0
    %v976 = vadd.f32 0.0, %v975
    %v977 = vpop.f32.mrb[0].mxu0
    %v978 = vadd.f32 0.0, %v977
    %v979 = vpop.f32.mrb[0].mxu0
    %v980 = vadd.f32 0.0, %v979
    %981 = vmatprep.mubr.bf16.mxu0 0
    %982 = vmatmul.mubr.bf16.gmra.mrb[0].mxu0 %v924
    %v983 = vpop.f32.mrb[0].mxu0
    %v984 = vadd.f32 0.0, %v983
    %v985 = vpop.f32.mrb[0].mxu0
    %v986 = vadd.f32 0.0, %v985
    %v987 = vpop.f32.mrb[0].mxu0
    %v988 = vadd.f32 0.0, %v987
    %v989 = vpop.f32.mrb[0].mxu0
    %v990 = vadd.f32 0.0, %v989
    %991 = vmatprep.mubr.bf16.mxu0 0
    %992 = vmatmul.mubr.bf16.gmra.mrb[0].mxu0 %v927
    %v993 = vpop.f32.mrb[0].mxu0
    %v994 = vadd.f32 0.0, %v993
    %v995 = vpop.f32.mrb[0].mxu0
    %v996 = vadd.f32 0.0, %v995
    %v997 = vpop.f32.mrb[0].mxu0
    %v998 = vadd.f32 0.0, %v997
    %v999 = vpop.f32.mrb[0].mxu0
    %v1000 = vadd.f32 0.0, %v999
    %1001 = vdwg.mxu0
    %1002 = vmatprep.subr.bf16.mxu0 0
    %1003 = vmatpush1.bf16.msra.mxu0 %v887
    %1004 = vmatprep.subr.bf16.mxu0 0
    %1005 = vmatpush1.bf16.msra.mxu0 %v890
    %1006 = vmatprep.subr.bf16.mxu0 0
    %1007 = vmatpush1.bf16.msra.mxu0 %v893
    %1008 = vmatprep.subr.bf16.mxu0 0
    %1009 = vmatpush1.bf16.msra.mxu0 %v896
    %1010 = vmatprep.subr.bf16.mxu0 0
    %1011 = vmatpush1.bf16.msra.mxu0 0
    %1012 = vmatprep.subr.bf16.mxu0 0
    %1013 = vmatpush1.bf16.msra.mxu0 0
    %1014 = vmatprep.subr.bf16.mxu0 0
    %1015 = vmatpush1.bf16.msra.mxu0 0
    %1016 = vmatprep.subr.bf16.mxu0 0
    %1017 = vmatpush1.bf16.msra.mxu0 0
    %1018 = vmatprep.subr.bf16.mxu0 0
    %1019 = vmatpush1.bf16.msra.mxu0 0
    %1020 = vmatprep.subr.bf16.mxu0 0
    %1021 = vmatpush1.bf16.msra.mxu0 0
    %1022 = vmatprep.subr.bf16.mxu0 0
    %1023 = vmatpush1.bf16.msra.mxu0 0
    %1024 = vmatprep.subr.bf16.mxu0 0
    %1025 = vmatpush1.bf16.msra.mxu0 0
    %1026 = vmatprep.subr.bf16.mxu0 0
    %1027 = vmatpush1.bf16.msra.mxu0 0
    %1028 = vmatprep.subr.bf16.mxu0 0
    %1029 = vmatpush1.bf16.msra.mxu0 0
    %1030 = vmatprep.subr.bf16.mxu0 0
    %1031 = vmatpush1.bf16.msra.mxu0 0
    %1032 = vmatprep.subr.bf16.mxu0 0
    %1033 = vmatpush1.bf16.msra.mxu0 0
    %1034 = vmatprep.mubr.bf16.mxu0 0
    %1035 = vmatmul.mubr.bf16.gmra.mrb[0].mxu0 %v918
    %v1036 = vpop.f32.mrb[0].mxu0
    %v1037 = vadd.f32 0.0, %v1036
    %v1038 = vpop.f32.mrb[0].mxu0
    %v1039 = vpop.f32.mrb[0].mxu0
    %v1040 = vadd.f32 0.0, %v1039
    %v1041 = vpop.f32.mrb[0].mxu0
    %1042 = vmatprep.mubr.bf16.mxu0 0
    %1043 = vmatmul.mubr.bf16.gmra.mrb[0].mxu0 %v921
    %v1044 = vpop.f32.mrb[0].mxu0
    %v1045 = vadd.f32 0.0, %v1044
    %v1046 = vpop.f32.mrb[0].mxu0
    %v1047 = vpop.f32.mrb[0].mxu0
    %v1048 = vadd.f32 0.0, %v1047
    %v1049 = vpop.f32.mrb[0].mxu0
    %1050 = vmatprep.mubr.bf16.mxu0 0
    %1051 = vmatmul.mubr.bf16.gmra.mrb[0].mxu0 %v924
    %v1052 = vpop.f32.mrb[0].mxu0
    %v1053 = vadd.f32 0.0, %v1052
    %v1054 = vpop.f32.mrb[0].mxu0
    %v1055 = vpop.f32.mrb[0].mxu0
    %v1056 = vadd.f32 0.0, %v1055
    %v1057 = vpop.f32.mrb[0].mxu0
    %1058 = vmatprep.mubr.bf16.mxu0 0
    %1059 = vmatmul.mubr.bf16.gmra.mrb[0].mxu0 %v927
    %v1060 = vpop.f32.mrb[0].mxu0
    %v1061 = vadd.f32 0.0, %v1060
    %v1062 = vpop.f32.mrb[0].mxu0
    %v1063 = vpop.f32.mrb[0].mxu0
    %v1064 = vadd.f32 0.0, %v1063
    %v1065 = vpop.f32.mrb[0].mxu0
    %1066 = vdwg.mxu0
    %v1075 = vunpack.c.l.b16 %v856
    %v1076 = vunpack.c.l.b16 %v857
    %v1077 = vunpack.c.l.b16 %v858
    %v1078 = vunpack.c.l.b16 %v859
    %v1079 = vunpack.c.l.b16 %v860
    %v1080 = vunpack.c.l.b16 %v861
    %v1081 = vunpack.c.l.b16 %v862
    %v1082 = vunpack.c.l.b16 %v863
    %v1083 = vpack.c.b16 %v1076, %v1075
    %v1084 = vpack.c.b16 %v1078, %v1077
    %v1085 = vpack.c.b16 %v1080, %v1079
    %v1086 = vpack.c.b16 %v1082, %v1081
    %v1088 = vsel %vm412, %v1083, 0
    %v1091 = vsel %vm412, %v1084, 0
    %v1094 = vsel %vm412, %v1085, 0
    %v1097 = vsel %vm412, %v1086, 0
    %1099 = vmatprep.subr.bf16.mxu0 %v865
    %1100 = vmatpush1.bf16.msra.mxu0 %v864
    %1101 = vmatprep.subr.bf16.mxu0 %v868
    %1102 = vmatpush1.bf16.msra.mxu0 %v867
    %1103 = vmatprep.subr.bf16.mxu0 %v871
    %1104 = vmatpush1.bf16.msra.mxu0 %v870
    %1105 = vmatprep.subr.bf16.mxu0 %v874
    %1106 = vmatpush1.bf16.msra.mxu0 %v873
    %1107 = vmatprep.subr.bf16.mxu0 0
    %1108 = vmatpush1.bf16.msra.mxu0 0
    %1109 = vmatprep.subr.bf16.mxu0 0
    %1110 = vmatpush1.bf16.msra.mxu0 0
    %1111 = vmatprep.subr.bf16.mxu0 0
    %1112 = vmatpush1.bf16.msra.mxu0 0
    %1113 = vmatprep.subr.bf16.mxu0 0
    %1114 = vmatpush1.bf16.msra.mxu0 0
    %1115 = vmatprep.subr.bf16.mxu0 0
    %1116 = vmatpush1.bf16.msra.mxu0 0
    %1117 = vmatprep.subr.bf16.mxu0 0
    %1118 = vmatpush1.bf16.msra.mxu0 0
    %1119 = vmatprep.subr.bf16.mxu0 0
    %1120 = vmatpush1.bf16.msra.mxu0 0
    %1121 = vmatprep.subr.bf16.mxu0 0
    %1122 = vmatpush1.bf16.msra.mxu0 0
    %1123 = vmatprep.subr.bf16.mxu0 0
    %1124 = vmatpush1.bf16.msra.mxu0 0
    %1125 = vmatprep.subr.bf16.mxu0 0
    %1126 = vmatpush1.bf16.msra.mxu0 0
    %1127 = vmatprep.subr.bf16.mxu0 0
    %1128 = vmatpush1.bf16.msra.mxu0 0
    %1129 = vmatprep.subr.bf16.mxu0 0
    %1130 = vmatpush1.bf16.msra.mxu0 0
    %1131 = vmatprep.mubr.bf16.mxu0 0
    %1132 = vmatmul.mubr.bf16.gmra.mrb[0].mxu0 %v1088
    %v1133 = vpop.f32.mrb[0].mxu0
    %v1134 = vadd.f32 %v964, %v1133
    %v1135 = vpop.f32.mrb[0].mxu0
    %v1136 = vadd.f32 %v966, %v1135
    %v1137 = vpop.f32.mrb[0].mxu0
    %v1138 = vadd.f32 %v968, %v1137
    %v1139 = vpop.f32.mrb[0].mxu0
    %v1140 = vadd.f32 %v970, %v1139
    %1141 = vmatprep.mubr.bf16.mxu0 0
    %1142 = vmatmul.mubr.bf16.gmra.mrb[0].mxu0 %v1091
    %v1143 = vpop.f32.mrb[0].mxu0
    %v1144 = vadd.f32 %v974, %v1143
    %v1145 = vpop.f32.mrb[0].mxu0
    %v1146 = vadd.f32 %v976, %v1145
    %v1147 = vpop.f32.mrb[0].mxu0
    %v1148 = vadd.f32 %v978, %v1147
    %v1149 = vpop.f32.mrb[0].mxu0
    %v1150 = vadd.f32 %v980, %v1149
    %1151 = vmatprep.mubr.bf16.mxu0 0
    %1152 = vmatmul.mubr.bf16.gmra.mrb[0].mxu0 %v1094
    %v1153 = vpop.f32.mrb[0].mxu0
    %v1154 = vadd.f32 %v984, %v1153
    %v1155 = vpop.f32.mrb[0].mxu0
    %v1156 = vadd.f32 %v986, %v1155
    %v1157 = vpop.f32.mrb[0].mxu0
    %v1158 = vadd.f32 %v988, %v1157
    %v1159 = vpop.f32.mrb[0].mxu0
    %v1160 = vadd.f32 %v990, %v1159
    %1161 = vmatprep.mubr.bf16.mxu0 0
    %1162 = vmatmul.mubr.bf16.gmra.mrb[0].mxu0 %v1097
    %v1163 = vpop.f32.mrb[0].mxu0
    %v1164 = vadd.f32 %v994, %v1163
    %v1165 = vpop.f32.mrb[0].mxu0
    %v1166 = vadd.f32 %v996, %v1165
    %v1167 = vpop.f32.mrb[0].mxu0
    %v1168 = vadd.f32 %v998, %v1167
    %v1169 = vpop.f32.mrb[0].mxu0
    %v1170 = vadd.f32 %v1000, %v1169
    %1171 = vdwg.mxu0
    %1172 = vmatprep.subr.bf16.mxu0 0
    %1173 = vmatpush1.bf16.msra.mxu0 %v866
    %1174 = vmatprep.subr.bf16.mxu0 0
    %1175 = vmatpush1.bf16.msra.mxu0 %v869
    %1176 = vmatprep.subr.bf16.mxu0 0
    %1177 = vmatpush1.bf16.msra.mxu0 %v872
    %1178 = vmatprep.subr.bf16.mxu0 0
    %1179 = vmatpush1.bf16.msra.mxu0 %v875
    %1180 = vmatprep.subr.bf16.mxu0 0
    %1181 = vmatpush1.bf16.msra.mxu0 0
    %1182 = vmatprep.subr.bf16.mxu0 0
    %1183 = vmatpush1.bf16.msra.mxu0 0
    %1184 = vmatprep.subr.bf16.mxu0 0
    %1185 = vmatpush1.bf16.msra.mxu0 0
    %1186 = vmatprep.subr.bf16.mxu0 0
    %1187 = vmatpush1.bf16.msra.mxu0 0
    %1188 = vmatprep.subr.bf16.mxu0 0
    %1189 = vmatpush1.bf16.msra.mxu0 0
    %1190 = vmatprep.subr.bf16.mxu0 0
    %1191 = vmatpush1.bf16.msra.mxu0 0
    %1192 = vmatprep.subr.bf16.mxu0 0
    %1193 = vmatpush1.bf16.msra.mxu0 0
    %1194 = vmatprep.subr.bf16.mxu0 0
    %1195 = vmatpush1.bf16.msra.mxu0 0
    %1196 = vmatprep.subr.bf16.mxu0 0
    %1197 = vmatpush1.bf16.msra.mxu0 0
    %1198 = vmatprep.subr.bf16.mxu0 0
    %1199 = vmatpush1.bf16.msra.mxu0 0
    %1200 = vmatprep.subr.bf16.mxu0 0
    %1201 = vmatpush1.bf16.msra.mxu0 0
    %1202 = vmatprep.subr.bf16.mxu0 0
    %1203 = vmatpush1.bf16.msra.mxu0 0
    %1204 = vmatprep.mubr.bf16.mxu0 0
    %1205 = vmatmul.mubr.bf16.gmra.mrb[0].mxu0 %v1088
    %v1206 = vpop.f32.mrb[0].mxu0
    %v1207 = vadd.f32 %v1037, %v1206
    %v1208 = vpop.f32.mrb[0].mxu0
    %v1209 = vpop.f32.mrb[0].mxu0
    %v1210 = vadd.f32 %v1040, %v1209
    %v1211 = vpop.f32.mrb[0].mxu0
    %1212 = vmatprep.mubr.bf16.mxu0 0
    %1213 = vmatmul.mubr.bf16.gmra.mrb[0].mxu0 %v1091
    %v1214 = vpop.f32.mrb[0].mxu0
    %v1215 = vadd.f32 %v1045, %v1214
    %v1216 = vpop.f32.mrb[0].mxu0
    %v1217 = vpop.f32.mrb[0].mxu0
    %v1218 = vadd.f32 %v1048, %v1217
    %v1219 = vpop.f32.mrb[0].mxu0
    %1220 = vmatprep.mubr.bf16.mxu0 0
    %1221 = vmatmul.mubr.bf16.gmra.mrb[0].mxu0 %v1094
    %v1222 = vpop.f32.mrb[0].mxu0
    %v1223 = vadd.f32 %v1053, %v1222
    %v1224 = vpop.f32.mrb[0].mxu0
    %v1225 = vpop.f32.mrb[0].mxu0
    %v1226 = vadd.f32 %v1056, %v1225
    %v1227 = vpop.f32.mrb[0].mxu0
    %1228 = vmatprep.mubr.bf16.mxu0 0
    %1229 = vmatmul.mubr.bf16.gmra.mrb[0].mxu0 %v1097
    %v1230 = vpop.f32.mrb[0].mxu0
    %v1231 = vadd.f32 %v1061, %v1230
    %v1232 = vpop.f32.mrb[0].mxu0
    %v1233 = vpop.f32.mrb[0].mxu0
    %v1234 = vadd.f32 %v1064, %v1233
    %v1235 = vpop.f32.mrb[0].mxu0
    %1236 = vdwg.mxu0
    %1237 = vset.pattern.permute.xlu0 2
    %1238 = vperm.xlu0 %1237, %v149
    %v1239 = vpop.permute.xlu0 %1238
    %1241 = vset.pattern.permute.xlu0 2
    %1242 = vperm.xlu0 %1241, %v150
    %v1243 = vpop.permute.xlu0 %1242
    %1245 = vset.pattern.permute.xlu0 2
    %1246 = vperm.xlu0 %1245, %v151
    %v1247 = vpop.permute.xlu0 %1246
    %1249 = vset.pattern.permute.xlu0 2
    %1250 = vperm.xlu0 %1249, %v152
    %v1251 = vpop.permute.xlu0 %1250
    %1253 = vset.pattern.permute.xlu0 2
    %1254 = vperm.xlu0 %1253, %v153
    %v1255 = vpop.permute.xlu0 %1254
    %1257 = vset.pattern.permute.xlu0 2
    %1258 = vperm.xlu0 %1257, %v154
    %v1259 = vpop.permute.xlu0 %1258
    %1261 = vset.pattern.permute.xlu0 2
    %1262 = vperm.xlu0 %1261, %v155
    %v1263 = vpop.permute.xlu0 %1262
    %1265 = vset.pattern.permute.xlu0 2
    %1266 = vperm.xlu0 %1265, %v156
    %v1267 = vpop.permute.xlu0 %1266
    %v1269 = vadd.f32 %v1134, %v1239
    %v1270 = vadd.f32 %v1136, %v1239
    %v1271 = vadd.f32 %v1207, %v1239
    %v1272 = vadd.f32 %v1138, %v1243
    %v1273 = vadd.f32 %v1140, %v1243
    %v1274 = vadd.f32 %v1210, %v1243
    %v1275 = vadd.f32 %v1144, %v1247
    %v1276 = vadd.f32 %v1146, %v1247
    %v1277 = vadd.f32 %v1215, %v1247
    %v1278 = vadd.f32 %v1148, %v1251
    %v1279 = vadd.f32 %v1150, %v1251
    %v1280 = vadd.f32 %v1218, %v1251
    %v1281 = vadd.f32 %v1154, %v1255
    %v1282 = vadd.f32 %v1156, %v1255
    %v1283 = vadd.f32 %v1223, %v1255
    %v1284 = vadd.f32 %v1158, %v1259
    %v1285 = vadd.f32 %v1160, %v1259
    %v1286 = vadd.f32 %v1226, %v1259
    %v1287 = vadd.f32 %v1164, %v1263
    %v1288 = vadd.f32 %v1166, %v1263
    %v1289 = vadd.f32 %v1231, %v1263
    %v1290 = vadd.f32 %v1168, %v1267
    %v1291 = vadd.f32 %v1170, %v1267
    %v1292 = vadd.f32 %v1234, %v1267
    %vm1293 = vcmp.gt.f32.partialorder %v1269, 0.0
    %vm1294 = vcmp.gt.f32.partialorder %v1270, 0.0
    %vm1295 = vcmp.gt.f32.partialorder %v1271, 0.0
    %vm1296 = vcmp.gt.f32.partialorder %v1272, 0.0
    %vm1297 = vcmp.gt.f32.partialorder %v1273, 0.0
    %vm1298 = vcmp.gt.f32.partialorder %v1274, 0.0
    %vm1299 = vcmp.gt.f32.partialorder %v1275, 0.0
    %vm1300 = vcmp.gt.f32.partialorder %v1276, 0.0
    %vm1301 = vcmp.gt.f32.partialorder %v1277, 0.0
    %vm1302 = vcmp.gt.f32.partialorder %v1278, 0.0
    %vm1303 = vcmp.gt.f32.partialorder %v1279, 0.0
    %vm1304 = vcmp.gt.f32.partialorder %v1280, 0.0
    %vm1305 = vcmp.gt.f32.partialorder %v1281, 0.0
    %vm1306 = vcmp.gt.f32.partialorder %v1282, 0.0
    %vm1307 = vcmp.gt.f32.partialorder %v1283, 0.0
    %vm1308 = vcmp.gt.f32.partialorder %v1284, 0.0
    %vm1309 = vcmp.gt.f32.partialorder %v1285, 0.0
    %vm1310 = vcmp.gt.f32.partialorder %v1286, 0.0
    %vm1311 = vcmp.gt.f32.partialorder %v1287, 0.0
    %vm1312 = vcmp.gt.f32.partialorder %v1288, 0.0
    %vm1313 = vcmp.gt.f32.partialorder %v1289, 0.0
    %vm1314 = vcmp.gt.f32.partialorder %v1290, 0.0
    %vm1315 = vcmp.gt.f32.partialorder %v1291, 0.0
    %vm1316 = vcmp.gt.f32.partialorder %v1292, 0.0
    %v1317 = vmin.f32 %v1269, 0.0
    %v1318 = vmin.f32 %v1270, 0.0
    %v1319 = vmin.f32 %v1271, 0.0
    %v1320 = vmin.f32 %v1272, 0.0
    %v1321 = vmin.f32 %v1273, 0.0
    %v1322 = vmin.f32 %v1274, 0.0
    %v1323 = vmin.f32 %v1275, 0.0
    %v1324 = vmin.f32 %v1276, 0.0
    %v1325 = vmin.f32 %v1277, 0.0
    %v1326 = vmin.f32 %v1278, 0.0
    %v1327 = vmin.f32 %v1279, 0.0
    %v1328 = vmin.f32 %v1280, 0.0
    %v1329 = vmin.f32 %v1281, 0.0
    %v1330 = vmin.f32 %v1282, 0.0
    %v1331 = vmin.f32 %v1283, 0.0
    %v1332 = vmin.f32 %v1284, 0.0
    %v1333 = vmin.f32 %v1285, 0.0
    %v1334 = vmin.f32 %v1286, 0.0
    %v1335 = vmin.f32 %v1287, 0.0
    %v1336 = vmin.f32 %v1288, 0.0
    %v1337 = vmin.f32 %v1289, 0.0
    %v1338 = vmin.f32 %v1290, 0.0
    %v1339 = vmin.f32 %v1291, 0.0
    %v1340 = vmin.f32 %v1292, 0.0
    %v1341 = vmul.f32 %v1317, 1.442695
    %v1342 = vpow.pop %v1341
    %v1343 = vmul.f32 %v1318, 1.442695
    %v1344 = vpow.pop %v1343
    %v1345 = vmul.f32 %v1319, 1.442695
    %v1346 = vpow.pop %v1345
    %v1347 = vmul.f32 %v1320, 1.442695
    %v1348 = vpow.pop %v1347
    %v1349 = vmul.f32 %v1321, 1.442695
    %v1350 = vpow.pop %v1349
    %v1351 = vmul.f32 %v1322, 1.442695
    %v1352 = vpow.pop %v1351
    %v1353 = vmul.f32 %v1323, 1.442695
    %v1354 = vpow.pop %v1353
    %v1355 = vmul.f32 %v1324, 1.442695
    %v1356 = vpow.pop %v1355
    %v1357 = vmul.f32 %v1325, 1.442695
    %v1358 = vpow.pop %v1357
    %v1359 = vmul.f32 %v1326, 1.442695
    %v1360 = vpow.pop %v1359
    %v1361 = vmul.f32 %v1327, 1.442695
    %v1362 = vpow.pop %v1361
    %v1363 = vmul.f32 %v1328, 1.442695
    %v1364 = vpow.pop %v1363
    %v1365 = vmul.f32 %v1329, 1.442695
    %v1366 = vpow.pop %v1365
    %v1367 = vmul.f32 %v1330, 1.442695
    %v1368 = vpow.pop %v1367
    %v1369 = vmul.f32 %v1331, 1.442695
    %v1370 = vpow.pop %v1369
    %v1371 = vmul.f32 %v1332, 1.442695
    %v1372 = vpow.pop %v1371
    %v1373 = vmul.f32 %v1333, 1.442695
    %v1374 = vpow.pop %v1373
    %v1375 = vmul.f32 %v1334, 1.442695
    %v1376 = vpow.pop %v1375
    %v1377 = vmul.f32 %v1335, 1.442695
    %v1378 = vpow.pop %v1377
    %v1379 = vmul.f32 %v1336, 1.442695
    %v1380 = vpow.pop %v1379
    %v1381 = vmul.f32 %v1337, 1.442695
    %v1382 = vpow.pop %v1381
    %v1383 = vmul.f32 %v1338, 1.442695
    %v1384 = vpow.pop %v1383
    %v1385 = vmul.f32 %v1339, 1.442695
    %v1386 = vpow.pop %v1385
    %v1387 = vmul.f32 %v1340, 1.442695
    %v1388 = vpow.pop %v1387
    %v1389 = vsub.f32 %v1342, 1.0
    %v1390 = vsub.f32 %v1344, 1.0
    %v1391 = vsub.f32 %v1346, 1.0
    %v1392 = vsub.f32 %v1348, 1.0
    %v1393 = vsub.f32 %v1350, 1.0
    %v1394 = vsub.f32 %v1352, 1.0
    %v1395 = vsub.f32 %v1354, 1.0
    %v1396 = vsub.f32 %v1356, 1.0
    %v1397 = vsub.f32 %v1358, 1.0
    %v1398 = vsub.f32 %v1360, 1.0
    %v1399 = vsub.f32 %v1362, 1.0
    %v1400 = vsub.f32 %v1364, 1.0
    %v1401 = vsub.f32 %v1366, 1.0
    %v1402 = vsub.f32 %v1368, 1.0
    %v1403 = vsub.f32 %v1370, 1.0
    %v1404 = vsub.f32 %v1372, 1.0
    %v1405 = vsub.f32 %v1374, 1.0
    %v1406 = vsub.f32 %v1376, 1.0
    %v1407 = vsub.f32 %v1378, 1.0
    %v1408 = vsub.f32 %v1380, 1.0
    %v1409 = vsub.f32 %v1382, 1.0
    %v1410 = vsub.f32 %v1384, 1.0
    %v1411 = vsub.f32 %v1386, 1.0
    %v1412 = vsub.f32 %v1388, 1.0
    %v1413 = vsel %vm1293, %v1269, %v1389
    %v1414 = vsel %vm1294, %v1270, %v1390
    %v1415 = vsel %vm1295, %v1271, %v1391
    %v1416 = vsel %vm1296, %v1272, %v1392
    %v1417 = vsel %vm1297, %v1273, %v1393
    %v1418 = vsel %vm1298, %v1274, %v1394
    %v1419 = vsel %vm1299, %v1275, %v1395
    %v1420 = vsel %vm1300, %v1276, %v1396
    %v1421 = vsel %vm1301, %v1277, %v1397
    %v1422 = vsel %vm1302, %v1278, %v1398
    %v1423 = vsel %vm1303, %v1279, %v1399
    %v1424 = vsel %vm1304, %v1280, %v1400
    %v1425 = vsel %vm1305, %v1281, %v1401
    %v1426 = vsel %vm1306, %v1282, %v1402
    %v1427 = vsel %vm1307, %v1283, %v1403
    %v1428 = vsel %vm1308, %v1284, %v1404
    %v1429 = vsel %vm1309, %v1285, %v1405
    %v1430 = vsel %vm1310, %v1286, %v1406
    %v1431 = vsel %vm1311, %v1287, %v1407
    %v1432 = vsel %vm1312, %v1288, %v1408
    %v1433 = vsel %vm1313, %v1289, %v1409
    %v1434 = vsel %vm1314, %v1290, %v1410
    %v1435 = vsel %vm1315, %v1291, %v1411
    %v1436 = vsel %vm1316, %v1292, %v1412
    %s1437 = scalar_lea.vmem [#allocation6], 256
    %v1438 = vld [vmem:[%s1437] sm:$0xf]
    %v1439 = vld [vmem:[%s1437 + $0x4] sm:$0xf]
    %v1440 = vld [vmem:[%s1437 + $0x8] sm:$0xf]
    %v1441 = vld [vmem:[%s1437 + $0xc] sm:$0xf]
    %v1442 = vld [vmem:[%s1437 + $0x10] sm:$0xf]
    %v1443 = vld [vmem:[%s1437 + $0x14] sm:$0xf]
    %v1444 = vld [vmem:[%s1437 + $0x18] sm:$0xf]
    %v1445 = vld [vmem:[%s1437 + $0x1c] sm:$0xf]
    %v1446 = vpack.c.bf16 %v1416, %v1413
    %v1447 = vpack.c.bf16 %v1417, %v1414
    %v1448 = vpack.c.bf16 %v1418, %v1415
    %v1449 = vpack.c.bf16 %v1422, %v1419
    %v1450 = vpack.c.bf16 %v1423, %v1420
    %v1451 = vpack.c.bf16 %v1424, %v1421
    %v1452 = vpack.c.bf16 %v1428, %v1425
    %v1453 = vpack.c.bf16 %v1429, %v1426
    %v1454 = vpack.c.bf16 %v1430, %v1427
    %v1455 = vpack.c.bf16 %v1434, %v1431
    %v1456 = vpack.c.bf16 %v1435, %v1432
    %v1457 = vpack.c.bf16 %v1436, %v1433
    %1458 = vset.pattern.permute.xlu0 3
    %1459 = vperm.xlu0 %1458, %v149
    %v1460 = vpop.permute.xlu0 %1459
    %1462 = vset.pattern.permute.xlu0 3
    %1463 = vperm.xlu0 %1462, %v150
    %v1464 = vpop.permute.xlu0 %1463
    %1466 = vset.pattern.permute.xlu0 3
    %1467 = vperm.xlu0 %1466, %v151
    %v1468 = vpop.permute.xlu0 %1467
    %1470 = vset.pattern.permute.xlu0 3
    %1471 = vperm.xlu0 %1470, %v152
    %v1472 = vpop.permute.xlu0 %1471
    %1474 = vset.pattern.permute.xlu0 3
    %1475 = vperm.xlu0 %1474, %v153
    %v1476 = vpop.permute.xlu0 %1475
    %1478 = vset.pattern.permute.xlu0 3
    %1479 = vperm.xlu0 %1478, %v154
    %v1480 = vpop.permute.xlu0 %1479
    %1482 = vset.pattern.permute.xlu0 3
    %1483 = vperm.xlu0 %1482, %v155
    %v1484 = vpop.permute.xlu0 %1483
    %1486 = vset.pattern.permute.xlu0 3
    %1487 = vperm.xlu0 %1486, %v156
    %v1488 = vpop.permute.xlu0 %1487
    %v1498 = vunpack.c.l.b16 %v1438
    %v1499 = vunpack.c.l.b16 %v1439
    %v1500 = vunpack.c.l.b16 %v1440
    %v1501 = vunpack.c.l.b16 %v1441
    %v1502 = vunpack.c.l.b16 %v1442
    %v1503 = vunpack.c.l.b16 %v1443
    %v1504 = vunpack.c.l.b16 %v1444
    %v1505 = vunpack.c.l.b16 %v1445
    %v1506 = vpack.c.b16 %v1499, %v1498
    %v1507 = vpack.c.b16 %v1501, %v1500
    %v1508 = vpack.c.b16 %v1503, %v1502
    %v1509 = vpack.c.b16 %v1505, %v1504
    %v1511 = vsel %vm412, %v1506, 0
    %v1514 = vsel %vm412, %v1507, 0
    %v1517 = vsel %vm412, %v1508, 0
    %v1520 = vsel %vm412, %v1509, 0
    %1522 = vmatprep.subr.bf16.mxu0 %v1447
    %1523 = vmatpush1.bf16.msra.mxu0 %v1446
    %1524 = vmatprep.subr.bf16.mxu0 %v1450
    %1525 = vmatpush1.bf16.msra.mxu0 %v1449
    %1526 = vmatprep.subr.bf16.mxu0 %v1453
    %1527 = vmatpush1.bf16.msra.mxu0 %v1452
    %1528 = vmatprep.subr.bf16.mxu0 %v1456
    %1529 = vmatpush1.bf16.msra.mxu0 %v1455
    %1530 = vmatprep.subr.bf16.mxu0 0
    %1531 = vmatpush1.bf16.msra.mxu0 0
    %1532 = vmatprep.subr.bf16.mxu0 0
    %1533 = vmatpush1.bf16.msra.mxu0 0
    %1534 = vmatprep.subr.bf16.mxu0 0
    %1535 = vmatpush1.bf16.msra.mxu0 0
    %1536 = vmatprep.subr.bf16.mxu0 0
    %1537 = vmatpush1.bf16.msra.mxu0 0
    %1538 = vmatprep.subr.bf16.mxu0 0
    %1539 = vmatpush1.bf16.msra.mxu0 0
    %1540 = vmatprep.subr.bf16.mxu0 0
    %1541 = vmatpush1.bf16.msra.mxu0 0
    %1542 = vmatprep.subr.bf16.mxu0 0
    %1543 = vmatpush1.bf16.msra.mxu0 0
    %1544 = vmatprep.subr.bf16.mxu0 0
    %1545 = vmatpush1.bf16.msra.mxu0 0
    %1546 = vmatprep.subr.bf16.mxu0 0
    %1547 = vmatpush1.bf16.msra.mxu0 0
    %1548 = vmatprep.subr.bf16.mxu0 0
    %1549 = vmatpush1.bf16.msra.mxu0 0
    %1550 = vmatprep.subr.bf16.mxu0 0
    %1551 = vmatpush1.bf16.msra.mxu0 0
    %1552 = vmatprep.subr.bf16.mxu0 0
    %1553 = vmatpush1.bf16.msra.mxu0 0
    %1554 = vmatprep.mubr.bf16.mxu0 0
    %1555 = vmatmul.mubr.bf16.gmra.mrb[0].mxu0 %v1511
    %v1556 = vpop.f32.mrb[0].mxu0
    %v1557 = vadd.f32 %v1460, %v1556
    %v1558 = vpop.f32.mrb[0].mxu0
    %v1559 = vadd.f32 %v1460, %v1558
    %v1560 = vpop.f32.mrb[0].mxu0
    %v1561 = vadd.f32 %v1464, %v1560
    %v1562 = vpop.f32.mrb[0].mxu0
    %v1563 = vadd.f32 %v1464, %v1562
    %1564 = vmatprep.mubr.bf16.mxu0 0
    %1565 = vmatmul.mubr.bf16.gmra.mrb[0].mxu0 %v1514
    %v1566 = vpop.f32.mrb[0].mxu0
    %v1567 = vadd.f32 %v1468, %v1566
    %v1568 = vpop.f32.mrb[0].mxu0
    %v1569 = vadd.f32 %v1468, %v1568
    %v1570 = vpop.f32.mrb[0].mxu0
    %v1571 = vadd.f32 %v1472, %v1570
    %v1572 = vpop.f32.mrb[0].mxu0
    %v1573 = vadd.f32 %v1472, %v1572
    %1574 = vmatprep.mubr.bf16.mxu0 0
    %1575 = vmatmul.mubr.bf16.gmra.mrb[0].mxu0 %v1517
    %v1576 = vpop.f32.mrb[0].mxu0
    %v1577 = vadd.f32 %v1476, %v1576
    %v1578 = vpop.f32.mrb[0].mxu0
    %v1579 = vadd.f32 %v1476, %v1578
    %v1580 = vpop.f32.mrb[0].mxu0
    %v1581 = vadd.f32 %v1480, %v1580
    %v1582 = vpop.f32.mrb[0].mxu0
    %v1583 = vadd.f32 %v1480, %v1582
    %1584 = vmatprep.mubr.bf16.mxu0 0
    %1585 = vmatmul.mubr.bf16.gmra.mrb[0].mxu0 %v1520
    %v1586 = vpop.f32.mrb[0].mxu0
    %v1587 = vadd.f32 %v1484, %v1586
    %v1588 = vpop.f32.mrb[0].mxu0
    %v1589 = vadd.f32 %v1484, %v1588
    %v1590 = vpop.f32.mrb[0].mxu0
    %v1591 = vadd.f32 %v1488, %v1590
    %v1592 = vpop.f32.mrb[0].mxu0
    %v1593 = vadd.f32 %v1488, %v1592
    %1594 = vdwg.mxu0
    %1595 = vmatprep.subr.bf16.mxu0 0
    %1596 = vmatpush1.bf16.msra.mxu0 %v1448
    %1597 = vmatprep.subr.bf16.mxu0 0
    %1598 = vmatpush1.bf16.msra.mxu0 %v1451
    %1599 = vmatprep.subr.bf16.mxu0 0
    %1600 = vmatpush1.bf16.msra.mxu0 %v1454
    %1601 = vmatprep.subr.bf16.mxu0 0
    %1602 = vmatpush1.bf16.msra.mxu0 %v1457
    %1603 = vmatprep.subr.bf16.mxu0 0
    %1604 = vmatpush1.bf16.msra.mxu0 0
    %1605 = vmatprep.subr.bf16.mxu0 0
    %1606 = vmatpush1.bf16.msra.mxu0 0
    %1607 = vmatprep.subr.bf16.mxu0 0
    %1608 = vmatpush1.bf16.msra.mxu0 0
    %1609 = vmatprep.subr.bf16.mxu0 0
    %1610 = vmatpush1.bf16.msra.mxu0 0
    %1611 = vmatprep.subr.bf16.mxu0 0
    %1612 = vmatpush1.bf16.msra.mxu0 0
    %1613 = vmatprep.subr.bf16.mxu0 0
    %1614 = vmatpush1.bf16.msra.mxu0 0
    %1615 = vmatprep.subr.bf16.mxu0 0
    %1616 = vmatpush1.bf16.msra.mxu0 0
    %1617 = vmatprep.subr.bf16.mxu0 0
    %1618 = vmatpush1.bf16.msra.mxu0 0
    %1619 = vmatprep.subr.bf16.mxu0 0
    %1620 = vmatpush1.bf16.msra.mxu0 0
    %1621 = vmatprep.subr.bf16.mxu0 0
    %1622 = vmatpush1.bf16.msra.mxu0 0
    %1623 = vmatprep.subr.bf16.mxu0 0
    %1624 = vmatpush1.bf16.msra.mxu0 0
    %1625 = vmatprep.subr.bf16.mxu0 0
    %1626 = vmatpush1.bf16.msra.mxu0 0
    %1627 = vmatprep.mubr.bf16.mxu0 0
    %1628 = vmatmul.mubr.bf16.gmra.mrb[0].mxu0 %v1511
    %v1629 = vpop.f32.mrb[0].mxu0
    %v1630 = vadd.f32 %v1460, %v1629
    %v1631 = vpop.f32.mrb[0].mxu0
    %v1632 = vpop.f32.mrb[0].mxu0
    %v1633 = vadd.f32 %v1464, %v1632
    %v1634 = vpop.f32.mrb[0].mxu0
    %1635 = vmatprep.mubr.bf16.mxu0 0
    %1636 = vmatmul.mubr.bf16.gmra.mrb[0].mxu0 %v1514
    %v1637 = vpop.f32.mrb[0].mxu0
    %v1638 = vadd.f32 %v1468, %v1637
    %v1639 = vpop.f32.mrb[0].mxu0
    %v1640 = vpop.f32.mrb[0].mxu0
    %v1641 = vadd.f32 %v1472, %v1640
    %v1642 = vpop.f32.mrb[0].mxu0
    %1643 = vmatprep.mubr.bf16.mxu0 0
    %1644 = vmatmul.mubr.bf16.gmra.mrb[0].mxu0 %v1517
    %v1645 = vpop.f32.mrb[0].mxu0
    %v1646 = vadd.f32 %v1476, %v1645
    %v1647 = vpop.f32.mrb[0].mxu0
    %v1648 = vpop.f32.mrb[0].mxu0
    %v1649 = vadd.f32 %v1480, %v1648
    %v1650 = vpop.f32.mrb[0].mxu0
    %1651 = vmatprep.mubr.bf16.mxu0 0
    %1652 = vmatmul.mubr.bf16.gmra.mrb[0].mxu0 %v1520
    %v1653 = vpop.f32.mrb[0].mxu0
    %v1654 = vadd.f32 %v1484, %v1653
    %v1655 = vpop.f32.mrb[0].mxu0
    %v1656 = vpop.f32.mrb[0].mxu0
    %v1657 = vadd.f32 %v1488, %v1656
    %v1658 = vpop.f32.mrb[0].mxu0
    %1659 = vdwg.mxu0
    %vm1660 = vcmp.gt.f32.partialorder %v1557, 0.0
    %vm1661 = vcmp.gt.f32.partialorder %v1559, 0.0
    %vm1662 = vcmp.gt.f32.partialorder %v1630, 0.0
    %vm1663 = vcmp.gt.f32.partialorder %v1561, 0.0
    %vm1664 = vcmp.gt.f32.partialorder %v1563, 0.0
    %vm1665 = vcmp.gt.f32.partialorder %v1633, 0.0
    %vm1666 = vcmp.gt.f32.partialorder %v1567, 0.0
    %vm1667 = vcmp.gt.f32.partialorder %v1569, 0.0
    %vm1668 = vcmp.gt.f32.partialorder %v1638, 0.0
    %vm1669 = vcmp.gt.f32.partialorder %v1571, 0.0
    %vm1670 = vcmp.gt.f32.partialorder %v1573, 0.0
    %vm1671 = vcmp.gt.f32.partialorder %v1641, 0.0
    %vm1672 = vcmp.gt.f32.partialorder %v1577, 0.0
    %vm1673 = vcmp.gt.f32.partialorder %v1579, 0.0
    %vm1674 = vcmp.gt.f32.partialorder %v1646, 0.0
    %vm1675 = vcmp.gt.f32.partialorder %v1581, 0.0
    %vm1676 = vcmp.gt.f32.partialorder %v1583, 0.0
    %vm1677 = vcmp.gt.f32.partialorder %v1649, 0.0
    %vm1678 = vcmp.gt.f32.partialorder %v1587, 0.0
    %vm1679 = vcmp.gt.f32.partialorder %v1589, 0.0
    %vm1680 = vcmp.gt.f32.partialorder %v1654, 0.0
    %vm1681 = vcmp.gt.f32.partialorder %v1591, 0.0
    %vm1682 = vcmp.gt.f32.partialorder %v1593, 0.0
    %vm1683 = vcmp.gt.f32.partialorder %v1657, 0.0
    %v1684 = vmin.f32 %v1557, 0.0
    %v1685 = vmin.f32 %v1559, 0.0
    %v1686 = vmin.f32 %v1630, 0.0
    %v1687 = vmin.f32 %v1561, 0.0
    %v1688 = vmin.f32 %v1563, 0.0
    %v1689 = vmin.f32 %v1633, 0.0
    %v1690 = vmin.f32 %v1567, 0.0
    %v1691 = vmin.f32 %v1569, 0.0
    %v1692 = vmin.f32 %v1638, 0.0
    %v1693 = vmin.f32 %v1571, 0.0
    %v1694 = vmin.f32 %v1573, 0.0
    %v1695 = vmin.f32 %v1641, 0.0
    %v1696 = vmin.f32 %v1577, 0.0
    %v1697 = vmin.f32 %v1579, 0.0
    %v1698 = vmin.f32 %v1646, 0.0
    %v1699 = vmin.f32 %v1581, 0.0
    %v1700 = vmin.f32 %v1583, 0.0
    %v1701 = vmin.f32 %v1649, 0.0
    %v1702 = vmin.f32 %v1587, 0.0
    %v1703 = vmin.f32 %v1589, 0.0
    %v1704 = vmin.f32 %v1654, 0.0
    %v1705 = vmin.f32 %v1591, 0.0
    %v1706 = vmin.f32 %v1593, 0.0
    %v1707 = vmin.f32 %v1657, 0.0
    %v1708 = vmul.f32 %v1684, 1.442695
    %v1709 = vpow.pop %v1708
    %v1710 = vmul.f32 %v1685, 1.442695
    %v1711 = vpow.pop %v1710
    %v1712 = vmul.f32 %v1686, 1.442695
    %v1713 = vpow.pop %v1712
    %v1714 = vmul.f32 %v1687, 1.442695
    %v1715 = vpow.pop %v1714
    %v1716 = vmul.f32 %v1688, 1.442695
    %v1717 = vpow.pop %v1716
    %v1718 = vmul.f32 %v1689, 1.442695
    %v1719 = vpow.pop %v1718
    %v1720 = vmul.f32 %v1690, 1.442695
    %v1721 = vpow.pop %v1720
    %v1722 = vmul.f32 %v1691, 1.442695
    %v1723 = vpow.pop %v1722
    %v1724 = vmul.f32 %v1692, 1.442695
    %v1725 = vpow.pop %v1724
    %v1726 = vmul.f32 %v1693, 1.442695
    %v1727 = vpow.pop %v1726
    %v1728 = vmul.f32 %v1694, 1.442695
    %v1729 = vpow.pop %v1728
    %v1730 = vmul.f32 %v1695, 1.442695
    %v1731 = vpow.pop %v1730
    %v1732 = vmul.f32 %v1696, 1.442695
    %v1733 = vpow.pop %v1732
    %v1734 = vmul.f32 %v1697, 1.442695
    %v1735 = vpow.pop %v1734
    %v1736 = vmul.f32 %v1698, 1.442695
    %v1737 = vpow.pop %v1736
    %v1738 = vmul.f32 %v1699, 1.442695
    %v1739 = vpow.pop %v1738
    %v1740 = vmul.f32 %v1700, 1.442695
    %v1741 = vpow.pop %v1740
    %v1742 = vmul.f32 %v1701, 1.442695
    %v1743 = vpow.pop %v1742
    %v1744 = vmul.f32 %v1702, 1.442695
    %v1745 = vpow.pop %v1744
    %v1746 = vmul.f32 %v1703, 1.442695
    %v1747 = vpow.pop %v1746
    %v1748 = vmul.f32 %v1704, 1.442695
    %v1749 = vpow.pop %v1748
    %v1750 = vmul.f32 %v1705, 1.442695
    %v1751 = vpow.pop %v1750
    %v1752 = vmul.f32 %v1706, 1.442695
    %v1753 = vpow.pop %v1752
    %v1754 = vmul.f32 %v1707, 1.442695
    %v1755 = vpow.pop %v1754
    %v1756 = vsub.f32 %v1709, 1.0
    %v1757 = vsub.f32 %v1711, 1.0
    %v1758 = vsub.f32 %v1713, 1.0
    %v1759 = vsub.f32 %v1715, 1.0
    %v1760 = vsub.f32 %v1717, 1.0
    %v1761 = vsub.f32 %v1719, 1.0
    %v1762 = vsub.f32 %v1721, 1.0
    %v1763 = vsub.f32 %v1723, 1.0
    %v1764 = vsub.f32 %v1725, 1.0
    %v1765 = vsub.f32 %v1727, 1.0
    %v1766 = vsub.f32 %v1729, 1.0
    %v1767 = vsub.f32 %v1731, 1.0
    %v1768 = vsub.f32 %v1733, 1.0
    %v1769 = vsub.f32 %v1735, 1.0
    %v1770 = vsub.f32 %v1737, 1.0
    %v1771 = vsub.f32 %v1739, 1.0
    %v1772 = vsub.f32 %v1741, 1.0
    %v1773 = vsub.f32 %v1743, 1.0
    %v1774 = vsub.f32 %v1745, 1.0
    %v1775 = vsub.f32 %v1747, 1.0
    %v1776 = vsub.f32 %v1749, 1.0
    %v1777 = vsub.f32 %v1751, 1.0
    %v1778 = vsub.f32 %v1753, 1.0
    %v1779 = vsub.f32 %v1755, 1.0
    %v1780 = vsel %vm1660, %v1557, %v1756
    %v1781 = vsel %vm1661, %v1559, %v1757
    %v1782 = vsel %vm1662, %v1630, %v1758
    %v1783 = vsel %vm1663, %v1561, %v1759
    %v1784 = vsel %vm1664, %v1563, %v1760
    %v1785 = vsel %vm1665, %v1633, %v1761
    %v1786 = vsel %vm1666, %v1567, %v1762
    %v1787 = vsel %vm1667, %v1569, %v1763
    %v1788 = vsel %vm1668, %v1638, %v1764
    %v1789 = vsel %vm1669, %v1571, %v1765
    %v1790 = vsel %vm1670, %v1573, %v1766
    %v1791 = vsel %vm1671, %v1641, %v1767
    %v1792 = vsel %vm1672, %v1577, %v1768
    %v1793 = vsel %vm1673, %v1579, %v1769
    %v1794 = vsel %vm1674, %v1646, %v1770
    %v1795 = vsel %vm1675, %v1581, %v1771
    %v1796 = vsel %vm1676, %v1583, %v1772
    %v1797 = vsel %vm1677, %v1649, %v1773
    %v1798 = vsel %vm1678, %v1587, %v1774
    %v1799 = vsel %vm1679, %v1589, %v1775
    %v1800 = vsel %vm1680, %v1654, %v1776
    %v1801 = vsel %vm1681, %v1591, %v1777
    %v1802 = vsel %vm1682, %v1593, %v1778
    %v1803 = vsel %vm1683, %v1657, %v1779
    %v1804 = vmul.f32 %v1780, 0.999995
    %v1805 = vmul.f32 %v1781, 0.999995
    %v1806 = vmul.f32 %v1782, 0.999995
    %v1807 = vmul.f32 %v1783, 0.999995
    %v1808 = vmul.f32 %v1784, 0.999995
    %v1809 = vmul.f32 %v1785, 0.999995
    %v1810 = vmul.f32 %v1786, 0.999995
    %v1811 = vmul.f32 %v1787, 0.999995
    %v1812 = vmul.f32 %v1788, 0.999995
    %v1813 = vmul.f32 %v1789, 0.999995
    %v1814 = vmul.f32 %v1790, 0.999995
    %v1815 = vmul.f32 %v1791, 0.999995
    %v1816 = vmul.f32 %v1792, 0.999995
    %v1817 = vmul.f32 %v1793, 0.999995
    %v1818 = vmul.f32 %v1794, 0.999995
    %v1819 = vmul.f32 %v1795, 0.999995
    %v1820 = vmul.f32 %v1796, 0.999995
    %v1821 = vmul.f32 %v1797, 0.999995
    %v1822 = vmul.f32 %v1798, 0.999995
    %v1823 = vmul.f32 %v1799, 0.999995
    %v1824 = vmul.f32 %v1800, 0.999995
    %v1825 = vmul.f32 %v1801, 0.999995
    %v1826 = vmul.f32 %v1802, 0.999995
    %v1827 = vmul.f32 %v1803, 0.999995
    %s1828 = scalar_lea.vmem [#allocation6], 96
    %v1829 = vld [vmem:[%s1828] sm:$0xf]
    %v1830 = vld [vmem:[%s1828 + $0x4] sm:$0xf]
    %v1831 = vld [vmem:[%s1828 + $0x8] sm:$0xf]
    %v1832 = vld [vmem:[%s1828 + $0xc] sm:$0xf]
    %v1833 = vld [vmem:[%s1828 + $0x10] sm:$0xf]
    %v1834 = vld [vmem:[%s1828 + $0x14] sm:$0xf]
    %v1835 = vld [vmem:[%s1828 + $0x18] sm:$0xf]
    %v1836 = vld [vmem:[%s1828 + $0x1c] sm:$0xf]
    %v1837 = vpack.c.bf16 %v1807, %v1804
    %v1838 = vpack.c.bf16 %v1808, %v1805
    %v1839 = vpack.c.bf16 %v1809, %v1806
    %v1840 = vpack.c.bf16 %v1813, %v1810
    %v1841 = vpack.c.bf16 %v1814, %v1811
    %v1842 = vpack.c.bf16 %v1815, %v1812
    %v1843 = vpack.c.bf16 %v1819, %v1816
    %v1844 = vpack.c.bf16 %v1820, %v1817
    %v1845 = vpack.c.bf16 %v1821, %v1818
    %v1846 = vpack.c.bf16 %v1825, %v1822
    %v1847 = vpack.c.bf16 %v1826, %v1823
    %v1848 = vpack.c.bf16 %v1827, %v1824
    %v1897 = vunpack.c.l.b16 %v92
    %v1898 = vunpack.c.l.b16 %v93
    %v1899 = vunpack.c.l.b16 %v94
    %v1900 = vunpack.c.l.b16 %v95
    %v1901 = vunpack.c.l.b16 %v96
    %v1902 = vunpack.c.l.b16 %v97
    %v1903 = vunpack.c.l.b16 %v98
    %v1904 = vunpack.c.l.b16 %v99
    %v1905 = vunpack.c.l.b16 %v100
    %v1906 = vunpack.c.l.b16 %v101
    %v1907 = vunpack.c.l.b16 %v102
    %v1908 = vunpack.c.l.b16 %v103
    %v1909 = vunpack.c.l.b16 %v104
    %v1910 = vunpack.c.l.b16 %v105
    %v1911 = vunpack.c.l.b16 %v106
    %v1912 = vunpack.c.l.b16 %v107
    %v1913 = vunpack.c.l.b16 %v108
    %v1914 = vunpack.c.l.b16 %v109
    %v1915 = vunpack.c.l.b16 %v110
    %v1916 = vunpack.c.l.b16 %v111
    %v1917 = vunpack.c.l.b16 %v112
    %v1918 = vunpack.c.l.b16 %v113
    %v1919 = vunpack.c.l.b16 %v114
    %v1920 = vunpack.c.l.b16 %v115
    %v1921 = vunpack.c.l.b16 %v116
    %v1922 = vunpack.c.l.b16 %v117
    %v1923 = vunpack.c.l.b16 %v118
    %v1924 = vunpack.c.l.b16 %v119
    %v1925 = vunpack.c.l.b16 %v120
    %v1926 = vunpack.c.l.b16 %v121
    %v1927 = vunpack.c.l.b16 %v122
    %v1928 = vunpack.c.l.b16 %v123
    %v1929 = vunpack.c.l.b16 %v124
    %v1930 = vunpack.c.l.b16 %v125
    %v1931 = vunpack.c.l.b16 %v126
    %v1932 = vunpack.c.l.b16 %v127
    %v1933 = vunpack.c.l.b16 %v128
    %v1934 = vunpack.c.l.b16 %v129
    %v1935 = vunpack.c.l.b16 %v130
    %v1936 = vunpack.c.l.b16 %v131
    %v1937 = vunpack.c.l.b16 %v132
    %v1938 = vunpack.c.l.b16 %v133
    %v1939 = vunpack.c.l.b16 %v134
    %v1940 = vunpack.c.l.b16 %v135
    %v1941 = vunpack.c.l.b16 %v136
    %v1942 = vunpack.c.l.b16 %v137
    %v1943 = vunpack.c.l.b16 %v138
    %v1944 = vunpack.c.l.b16 %v139
    %v1945 = vpack.c.b16 %v1898, %v1897
    %v1946 = vpack.c.b16 %v1900, %v1899
    %v1947 = vpack.c.b16 %v1902, %v1901
    %v1948 = vpack.c.b16 %v1904, %v1903
    %v1949 = vpack.c.b16 %v1906, %v1905
    %v1950 = vpack.c.b16 %v1908, %v1907
    %v1951 = vpack.c.b16 %v1910, %v1909
    %v1952 = vpack.c.b16 %v1912, %v1911
    %v1953 = vpack.c.b16 %v1914, %v1913
    %v1954 = vpack.c.b16 %v1916, %v1915
    %v1955 = vpack.c.b16 %v1918, %v1917
    %v1956 = vpack.c.b16 %v1920, %v1919
    %v1957 = vpack.c.b16 %v1922, %v1921
    %v1958 = vpack.c.b16 %v1924, %v1923
    %v1959 = vpack.c.b16 %v1926, %v1925
    %v1960 = vpack.c.b16 %v1928, %v1927
    %v1961 = vpack.c.b16 %v1930, %v1929
    %v1962 = vpack.c.b16 %v1932, %v1931
    %v1963 = vpack.c.b16 %v1934, %v1933
    %v1964 = vpack.c.b16 %v1936, %v1935
    %v1965 = vpack.c.b16 %v1938, %v1937
    %v1966 = vpack.c.b16 %v1940, %v1939
    %v1967 = vpack.c.b16 %v1942, %v1941
    %v1968 = vpack.c.b16 %v1944, %v1943
    %1993 = vmatprep.subr.bf16.mxu0 0
    %1994 = vmatpush1.bf16.msra.mxu0 %v1945
    %1995 = vmatprep.subr.bf16.mxu0 0
    %1996 = vmatpush1.bf16.msra.mxu0 %v1946
    %1997 = vmatprep.subr.bf16.mxu0 0
    %1998 = vmatpush1.bf16.msra.mxu0 %v1947
    %1999 = vmatprep.subr.bf16.mxu0 0
    %2000 = vmatpush1.bf16.msra.mxu0 %v1948
    %2001 = vmatprep.subr.bf16.mxu0 0
    %2002 = vmatpush1.bf16.msra.mxu0 %v1949
    %2003 = vmatprep.subr.bf16.mxu0 0
    %2004 = vmatpush1.bf16.msra.mxu0 %v1950
    %2005 = vmatprep.subr.bf16.mxu0 0
    %2006 = vmatpush1.bf16.msra.mxu0 %v1951
    %2007 = vmatprep.subr.bf16.mxu0 0
    %2008 = vmatpush1.bf16.msra.mxu0 %v1952
    %2009 = vmatprep.subr.bf16.mxu0 0
    %2010 = vmatpush1.bf16.msra.mxu0 %v1953
    %2011 = vmatprep.subr.bf16.mxu0 0
    %2012 = vmatpush1.bf16.msra.mxu0 %v1954
    %2013 = vmatprep.subr.bf16.mxu0 0
    %2014 = vmatpush1.bf16.msra.mxu0 %v1955
    %2015 = vmatprep.subr.bf16.mxu0 0
    %2016 = vmatpush1.bf16.msra.mxu0 %v1956
    %2017 = vmatprep.subr.bf16.mxu0 0
    %2018 = vmatpush1.bf16.msra.mxu0 %v1957
    %2019 = vmatprep.subr.bf16.mxu0 0
    %2020 = vmatpush1.bf16.msra.mxu0 %v1958
    %2021 = vmatprep.subr.bf16.mxu0 0
    %2022 = vmatpush1.bf16.msra.mxu0 %v1959
    %2023 = vmatprep.subr.bf16.mxu0 0
    %2024 = vmatpush1.bf16.msra.mxu0 %v1960
    %2025 = vmatprep.mubr.bf16.mxu0 %v1838
    %2026 = vmatmul.mubr.bf16.gmra.mrb[0].mxu0 %v1837
    %v2027 = vpop.f32.mrb[0].mxu0
    %v2028 = vadd.f32 0.0, %v2027
    %v2029 = vpop.f32.mrb[0].mxu0
    %v2030 = vpop.f32.mrb[0].mxu0
    %v2031 = vadd.f32 0.0, %v2030
    %v2032 = vpop.f32.mrb[0].mxu0
    %2033 = vmatprep.mubr.bf16.mxu0 %v1841
    %2034 = vmatmul.mubr.bf16.gmra.mrb[0].mxu0 %v1840
    %v2035 = vpop.f32.mrb[0].mxu0
    %v2036 = vadd.f32 0.0, %v2035
    %v2037 = vpop.f32.mrb[0].mxu0
    %v2038 = vpop.f32.mrb[0].mxu0
    %v2039 = vadd.f32 0.0, %v2038
    %v2040 = vpop.f32.mrb[0].mxu0
    %2041 = vmatprep.mubr.bf16.mxu0 %v1844
    %2042 = vmatmul.mubr.bf16.gmra.mrb[0].mxu0 %v1843
    %v2043 = vpop.f32.mrb[0].mxu0
    %v2044 = vadd.f32 0.0, %v2043
    %v2045 = vpop.f32.mrb[0].mxu0
    %v2046 = vpop.f32.mrb[0].mxu0
    %v2047 = vadd.f32 0.0, %v2046
    %v2048 = vpop.f32.mrb[0].mxu0
    %2049 = vmatprep.mubr.bf16.mxu0 %v1847
    %2050 = vmatmul.mubr.bf16.gmra.mrb[0].mxu0 %v1846
    %v2051 = vpop.f32.mrb[0].mxu0
    %v2052 = vadd.f32 0.0, %v2051
    %v2053 = vpop.f32.mrb[0].mxu0
    %v2054 = vpop.f32.mrb[0].mxu0
    %v2055 = vadd.f32 0.0, %v2054
    %v2056 = vpop.f32.mrb[0].mxu0
    %2057 = vdwg.mxu0
    %2058 = vmatprep.subr.bf16.mxu0 0
    %2059 = vmatpush1.bf16.msra.mxu0 %v1961
    %2060 = vmatprep.subr.bf16.mxu0 0
    %2061 = vmatpush1.bf16.msra.mxu0 %v1962
    %2062 = vmatprep.subr.bf16.mxu0 0
    %2063 = vmatpush1.bf16.msra.mxu0 %v1963
    %2064 = vmatprep.subr.bf16.mxu0 0
    %2065 = vmatpush1.bf16.msra.mxu0 %v1964
    %2066 = vmatprep.subr.bf16.mxu0 0
    %2067 = vmatpush1.bf16.msra.mxu0 %v1965
    %2068 = vmatprep.subr.bf16.mxu0 0
    %2069 = vmatpush1.bf16.msra.mxu0 %v1966
    %2070 = vmatprep.subr.bf16.mxu0 0
    %2071 = vmatpush1.bf16.msra.mxu0 %v1967
    %2072 = vmatprep.subr.bf16.mxu0 0
    %2073 = vmatpush1.bf16.msra.mxu0 %v1968
    %2074 = vmatprep.subr.bf16.mxu0 0
    %2075 = vmatpush1.bf16.msra.mxu0 0
    %2076 = vmatprep.subr.bf16.mxu0 0
    %2077 = vmatpush1.bf16.msra.mxu0 0
    %2078 = vmatprep.subr.bf16.mxu0 0
    %2079 = vmatpush1.bf16.msra.mxu0 0
    %2080 = vmatprep.subr.bf16.mxu0 0
    %2081 = vmatpush1.bf16.msra.mxu0 0
    %2082 = vmatprep.subr.bf16.mxu0 0
    %2083 = vmatpush1.bf16.msra.mxu0 0
    %2084 = vmatprep.subr.bf16.mxu0 0
    %2085 = vmatpush1.bf16.msra.mxu0 0
    %2086 = vmatprep.subr.bf16.mxu0 0
    %2087 = vmatpush1.bf16.msra.mxu0 0
    %2088 = vmatprep.subr.bf16.mxu0 0
    %2089 = vmatpush1.bf16.msra.mxu0 0
    %2090 = vmatprep.mubr.bf16.mxu0 0
    %2091 = vmatmul.mubr.bf16.gmra.mrb[0].mxu0 %v1839
    %v2092 = vpop.f32.mrb[0].mxu0
    %v2093 = vadd.f32 %v2028, %v2092
    %v2094 = vpop.f32.mrb[0].mxu0
    %v2095 = vpop.f32.mrb[0].mxu0
    %v2096 = vadd.f32 %v2031, %v2095
    %v2097 = vpop.f32.mrb[0].mxu0
    %2098 = vmatprep.mubr.bf16.mxu0 0
    %2099 = vmatmul.mubr.bf16.gmra.mrb[0].mxu0 %v1842
    %v2100 = vpop.f32.mrb[0].mxu0
    %v2101 = vadd.f32 %v2036, %v2100
    %v2102 = vpop.f32.mrb[0].mxu0
    %v2103 = vpop.f32.mrb[0].mxu0
    %v2104 = vadd.f32 %v2039, %v2103
    %v2105 = vpop.f32.mrb[0].mxu0
    %2106 = vmatprep.mubr.bf16.mxu0 0
    %2107 = vmatmul.mubr.bf16.gmra.mrb[0].mxu0 %v1845
    %v2108 = vpop.f32.mrb[0].mxu0
    %v2109 = vadd.f32 %v2044, %v2108
    %v2110 = vpop.f32.mrb[0].mxu0
    %v2111 = vpop.f32.mrb[0].mxu0
    %v2112 = vadd.f32 %v2047, %v2111
    %v2113 = vpop.f32.mrb[0].mxu0
    %2114 = vmatprep.mubr.bf16.mxu0 0
    %2115 = vmatmul.mubr.bf16.gmra.mrb[0].mxu0 %v1848
    %v2116 = vpop.f32.mrb[0].mxu0
    %v2117 = vadd.f32 %v2052, %v2116
    %v2118 = vpop.f32.mrb[0].mxu0
    %v2119 = vpop.f32.mrb[0].mxu0
    %v2120 = vadd.f32 %v2055, %v2119
    %v2121 = vpop.f32.mrb[0].mxu0
    %2122 = vdwg.mxu0
    %v2123 = vpack.c.bf16 %v2096, %v2093
    %v2124 = vpack.c.bf16 %v2104, %v2101
    %v2125 = vpack.c.bf16 %v2112, %v2109
    %v2126 = vpack.c.bf16 %v2120, %v2117
    %v2135 = vunpack.c.l.b16 %v1829
    %v2136 = vunpack.c.l.b16 %v1830
    %v2137 = vunpack.c.l.b16 %v1831
    %v2138 = vunpack.c.l.b16 %v1832
    %v2139 = vunpack.c.l.b16 %v1833
    %v2140 = vunpack.c.l.b16 %v1834
    %v2141 = vunpack.c.l.b16 %v1835
    %v2142 = vunpack.c.l.b16 %v1836
    %v2143 = vpack.c.b16 %v2136, %v2135
    %v2144 = vpack.c.b16 %v2138, %v2137
    %v2145 = vpack.c.b16 %v2140, %v2139
    %v2146 = vpack.c.b16 %v2142, %v2141
    %v2148 = vsel %vm412, %v2143, 0
    %v2151 = vsel %vm412, %v2144, 0
    %v2154 = vsel %vm412, %v2145, 0
    %v2157 = vsel %vm412, %v2146, 0
    %2159 = vmatprep.subr.bf16.mxu0 0
    %2160 = vmatpush1.bf16.msra.mxu0 %v2123
    %2161 = vmatprep.subr.bf16.mxu0 0
    %2162 = vmatpush1.bf16.msra.mxu0 %v2124
    %2163 = vmatprep.subr.bf16.mxu0 0
    %2164 = vmatpush1.bf16.msra.mxu0 %v2125
    %2165 = vmatprep.subr.bf16.mxu0 0
    %2166 = vmatpush1.bf16.msra.mxu0 %v2126
    %2167 = vmatprep.subr.bf16.mxu0 0
    %2168 = vmatpush1.bf16.msra.mxu0 0
    %2169 = vmatprep.subr.bf16.mxu0 0
    %2170 = vmatpush1.bf16.msra.mxu0 0
    %2171 = vmatprep.subr.bf16.mxu0 0
    %2172 = vmatpush1.bf16.msra.mxu0 0
    %2173 = vmatprep.subr.bf16.mxu0 0
    %2174 = vmatpush1.bf16.msra.mxu0 0
    %2175 = vmatprep.subr.bf16.mxu0 0
    %2176 = vmatpush1.bf16.msra.mxu0 0
    %2177 = vmatprep.subr.bf16.mxu0 0
    %2178 = vmatpush1.bf16.msra.mxu0 0
    %2179 = vmatprep.subr.bf16.mxu0 0
    %2180 = vmatpush1.bf16.msra.mxu0 0
    %2181 = vmatprep.subr.bf16.mxu0 0
    %2182 = vmatpush1.bf16.msra.mxu0 0
    %2183 = vmatprep.subr.bf16.mxu0 0
    %2184 = vmatpush1.bf16.msra.mxu0 0
    %2185 = vmatprep.subr.bf16.mxu0 0
    %2186 = vmatpush1.bf16.msra.mxu0 0
    %2187 = vmatprep.subr.bf16.mxu0 0
    %2188 = vmatpush1.bf16.msra.mxu0 0
    %2189 = vmatprep.subr.bf16.mxu0 0
    %2190 = vmatpush1.bf16.msra.mxu0 0
    %2191 = vmatprep.mubr.bf16.mxu0 0
    %2192 = vmatmul.mubr.bf16.gmra.mrb[0].mxu0 %v2148
    %v2193 = vpop.f32.mrb[0].mxu0
    %v2194 = vadd.f32 0.0, %v2193
    %v2195 = vpop.f32.mrb[0].mxu0
    %v2196 = vpop.f32.mrb[0].mxu0
    %v2197 = vadd.f32 0.0, %v2196
    %v2198 = vpop.f32.mrb[0].mxu0
    %2199 = vmatprep.mubr.bf16.mxu0 0
    %2200 = vmatmul.mubr.bf16.gmra.mrb[0].mxu0 %v2151
    %v2201 = vpop.f32.mrb[0].mxu0
    %v2202 = vadd.f32 0.0, %v2201
    %v2203 = vpop.f32.mrb[0].mxu0
    %v2204 = vpop.f32.mrb[0].mxu0
    %v2205 = vadd.f32 0.0, %v2204
    %v2206 = vpop.f32.mrb[0].mxu0
    %2207 = vmatprep.mubr.bf16.mxu0 0
    %2208 = vmatmul.mubr.bf16.gmra.mrb[0].mxu0 %v2154
    %v2209 = vpop.f32.mrb[0].mxu0
    %v2210 = vadd.f32 0.0, %v2209
    %v2211 = vpop.f32.mrb[0].mxu0
    %v2212 = vpop.f32.mrb[0].mxu0
    %v2213 = vadd.f32 0.0, %v2212
    %v2214 = vpop.f32.mrb[0].mxu0
    %2215 = vmatprep.mubr.bf16.mxu0 0
    %2216 = vmatmul.mubr.bf16.gmra.mrb[0].mxu0 %v2157
    %v2217 = vpop.f32.mrb[0].mxu0
    %v2218 = vadd.f32 0.0, %v2217
    %v2219 = vpop.f32.mrb[0].mxu0
    %v2220 = vpop.f32.mrb[0].mxu0
    %v2221 = vadd.f32 0.0, %v2220
    %v2222 = vpop.f32.mrb[0].mxu0
    %2223 = vdwg.mxu0
    %v2224 = vmul.f32 %v2194, 0.071428575
    %v2225 = vmul.f32 %v2197, 0.071428575
    %v2226 = vmul.f32 %v2202, 0.071428575
    %v2227 = vmul.f32 %v2205, 0.071428575
    %v2228 = vmul.f32 %v2210, 0.071428575
    %v2229 = vmul.f32 %v2213, 0.071428575
    %v2230 = vmul.f32 %v2218, 0.071428575
    %v2231 = vmul.f32 %v2221, 0.071428575
    %2232 = vset.pattern.permute.xlu0 4
    %2233 = vperm.xlu0 %2232, %v149
    %v2234 = vpop.permute.xlu0 %2233
    %2236 = vset.pattern.permute.xlu0 4
    %2237 = vperm.xlu0 %2236, %v150
    %v2238 = vpop.permute.xlu0 %2237
    %2240 = vset.pattern.permute.xlu0 4
    %2241 = vperm.xlu0 %2240, %v151
    %v2242 = vpop.permute.xlu0 %2241
    %2244 = vset.pattern.permute.xlu0 4
    %2245 = vperm.xlu0 %2244, %v152
    %v2246 = vpop.permute.xlu0 %2245
    %2248 = vset.pattern.permute.xlu0 4
    %2249 = vperm.xlu0 %2248, %v153
    %v2250 = vpop.permute.xlu0 %2249
    %2252 = vset.pattern.permute.xlu0 4
    %2253 = vperm.xlu0 %2252, %v154
    %v2254 = vpop.permute.xlu0 %2253
    %2256 = vset.pattern.permute.xlu0 4
    %2257 = vperm.xlu0 %2256, %v155
    %v2258 = vpop.permute.xlu0 %2257
    %2260 = vset.pattern.permute.xlu0 4
    %2261 = vperm.xlu0 %2260, %v156
    %v2262 = vpop.permute.xlu0 %2261
    %v2264 = vadd.f32 %v2224, %v2234
    %v2265 = vadd.f32 %v2225, %v2238
    %v2266 = vadd.f32 %v2226, %v2242
    %v2267 = vadd.f32 %v2227, %v2246
    %v2268 = vadd.f32 %v2228, %v2250
    %v2269 = vadd.f32 %v2229, %v2254
    %v2270 = vadd.f32 %v2230, %v2258
    %v2271 = vadd.f32 %v2231, %v2262
    %vm2272 = vcmp.gt.f32.partialorder %v2264, 0.0
    %vm2273 = vcmp.gt.f32.partialorder %v2265, 0.0
    %vm2274 = vcmp.gt.f32.partialorder %v2266, 0.0
    %vm2275 = vcmp.gt.f32.partialorder %v2267, 0.0
    %vm2276 = vcmp.gt.f32.partialorder %v2268, 0.0
    %vm2277 = vcmp.gt.f32.partialorder %v2269, 0.0
    %vm2278 = vcmp.gt.f32.partialorder %v2270, 0.0
    %vm2279 = vcmp.gt.f32.partialorder %v2271, 0.0
    %v2280 = vmin.f32 %v2264, 0.0
    %v2281 = vmin.f32 %v2265, 0.0
    %v2282 = vmin.f32 %v2266, 0.0
    %v2283 = vmin.f32 %v2267, 0.0
    %v2284 = vmin.f32 %v2268, 0.0
    %v2285 = vmin.f32 %v2269, 0.0
    %v2286 = vmin.f32 %v2270, 0.0
    %v2287 = vmin.f32 %v2271, 0.0
    %v2288 = vmul.f32 %v2280, 1.442695
    %v2289 = vpow.pop %v2288
    %v2290 = vmul.f32 %v2281, 1.442695
    %v2291 = vpow.pop %v2290
    %v2292 = vmul.f32 %v2282, 1.442695
    %v2293 = vpow.pop %v2292
    %v2294 = vmul.f32 %v2283, 1.442695
    %v2295 = vpow.pop %v2294
    %v2296 = vmul.f32 %v2284, 1.442695
    %v2297 = vpow.pop %v2296
    %v2298 = vmul.f32 %v2285, 1.442695
    %v2299 = vpow.pop %v2298
    %v2300 = vmul.f32 %v2286, 1.442695
    %v2301 = vpow.pop %v2300
    %v2302 = vmul.f32 %v2287, 1.442695
    %v2303 = vpow.pop %v2302
    %v2304 = vsub.f32 %v2289, 1.0
    %v2305 = vsub.f32 %v2291, 1.0
    %v2306 = vsub.f32 %v2293, 1.0
    %v2307 = vsub.f32 %v2295, 1.0
    %v2308 = vsub.f32 %v2297, 1.0
    %v2309 = vsub.f32 %v2299, 1.0
    %v2310 = vsub.f32 %v2301, 1.0
    %v2311 = vsub.f32 %v2303, 1.0
    %v2312 = vsel %vm2272, %v2264, %v2304
    %v2313 = vsel %vm2273, %v2265, %v2305
    %v2314 = vsel %vm2274, %v2266, %v2306
    %v2315 = vsel %vm2275, %v2267, %v2307
    %v2316 = vsel %vm2276, %v2268, %v2308
    %v2317 = vsel %vm2277, %v2269, %v2309
    %v2318 = vsel %vm2278, %v2270, %v2310
    %v2319 = vsel %vm2279, %v2271, %v2311
    %s2320 = scalar_lea.vmem [#allocation6], 288
    %v2321 = vld [vmem:[%s2320] sm:$0xf]
    %v2322 = vld [vmem:[%s2320 + $0x4] sm:$0xf]
    %v2323 = vld [vmem:[%s2320 + $0x8] sm:$0xf]
    %v2324 = vld [vmem:[%s2320 + $0xc] sm:$0xf]
    %v2325 = vld [vmem:[%s2320 + $0x10] sm:$0xf]
    %v2326 = vld [vmem:[%s2320 + $0x14] sm:$0xf]
    %v2327 = vld [vmem:[%s2320 + $0x18] sm:$0xf]
    %v2328 = vld [vmem:[%s2320 + $0x1c] sm:$0xf]
    %v2329 = vpack.c.bf16 %v2313, %v2312
    %v2330 = vpack.c.bf16 %v2315, %v2314
    %v2331 = vpack.c.bf16 %v2317, %v2316
    %v2332 = vpack.c.bf16 %v2319, %v2318
    %2333 = vset.pattern.permute.xlu0 5
    %2334 = vperm.xlu0 %2333, %v149
    %v2335 = vpop.permute.xlu0 %2334
    %2337 = vset.pattern.permute.xlu0 5
    %2338 = vperm.xlu0 %2337, %v150
    %v2339 = vpop.permute.xlu0 %2338
    %2341 = vset.pattern.permute.xlu0 5
    %2342 = vperm.xlu0 %2341, %v151
    %v2343 = vpop.permute.xlu0 %2342
    %2345 = vset.pattern.permute.xlu0 5
    %2346 = vperm.xlu0 %2345, %v152
    %v2347 = vpop.permute.xlu0 %2346
    %2349 = vset.pattern.permute.xlu0 5
    %2350 = vperm.xlu0 %2349, %v153
    %v2351 = vpop.permute.xlu0 %2350
    %2353 = vset.pattern.permute.xlu0 5
    %2354 = vperm.xlu0 %2353, %v154
    %v2355 = vpop.permute.xlu0 %2354
    %2357 = vset.pattern.permute.xlu0 5
    %2358 = vperm.xlu0 %2357, %v155
    %v2359 = vpop.permute.xlu0 %2358
    %2361 = vset.pattern.permute.xlu0 5
    %2362 = vperm.xlu0 %2361, %v156
    %v2363 = vpop.permute.xlu0 %2362
    %v2373 = vunpack.c.l.b16 %v2321
    %v2374 = vunpack.c.l.b16 %v2322
    %v2375 = vunpack.c.l.b16 %v2323
    %v2376 = vunpack.c.l.b16 %v2324
    %v2377 = vunpack.c.l.b16 %v2325
    %v2378 = vunpack.c.l.b16 %v2326
    %v2379 = vunpack.c.l.b16 %v2327
    %v2380 = vunpack.c.l.b16 %v2328
    %v2381 = vpack.c.b16 %v2374, %v2373
    %v2382 = vpack.c.b16 %v2376, %v2375
    %v2383 = vpack.c.b16 %v2378, %v2377
    %v2384 = vpack.c.b16 %v2380, %v2379
    %v2386 = vsel %vm412, %v2381, 0
    %v2389 = vsel %vm412, %v2382, 0
    %v2392 = vsel %vm412, %v2383, 0
    %v2395 = vsel %vm412, %v2384, 0
    %2397 = vmatprep.subr.bf16.mxu0 0
    %2398 = vmatpush1.bf16.msra.mxu0 %v2329
    %2399 = vmatprep.subr.bf16.mxu0 0
    %2400 = vmatpush1.bf16.msra.mxu0 %v2330
    %2401 = vmatprep.subr.bf16.mxu0 0
    %2402 = vmatpush1.bf16.msra.mxu0 %v2331
    %2403 = vmatprep.subr.bf16.mxu0 0
    %2404 = vmatpush1.bf16.msra.mxu0 %v2332
    %2405 = vmatprep.subr.bf16.mxu0 0
    %2406 = vmatpush1.bf16.msra.mxu0 0
    %2407 = vmatprep.subr.bf16.mxu0 0
    %2408 = vmatpush1.bf16.msra.mxu0 0
    %2409 = vmatprep.subr.bf16.mxu0 0
    %2410 = vmatpush1.bf16.msra.mxu0 0
    %2411 = vmatprep.subr.bf16.mxu0 0
    %2412 = vmatpush1.bf16.msra.mxu0 0
    %2413 = vmatprep.subr.bf16.mxu0 0
    %2414 = vmatpush1.bf16.msra.mxu0 0
    %2415 = vmatprep.subr.bf16.mxu0 0
    %2416 = vmatpush1.bf16.msra.mxu0 0
    %2417 = vmatprep.subr.bf16.mxu0 0
    %2418 = vmatpush1.bf16.msra.mxu0 0
    %2419 = vmatprep.subr.bf16.mxu0 0
    %2420 = vmatpush1.bf16.msra.mxu0 0
    %2421 = vmatprep.subr.bf16.mxu0 0
    %2422 = vmatpush1.bf16.msra.mxu0 0
    %2423 = vmatprep.subr.bf16.mxu0 0
    %2424 = vmatpush1.bf16.msra.mxu0 0
    %2425 = vmatprep.subr.bf16.mxu0 0
    %2426 = vmatpush1.bf16.msra.mxu0 0
    %2427 = vmatprep.subr.bf16.mxu0 0
    %2428 = vmatpush1.bf16.msra.mxu0 0
    %2429 = vmatprep.mubr.bf16.mxu0 0
    %2430 = vmatmul.mubr.bf16.gmra.mrb[0].mxu0 %v2386
    %v2431 = vpop.f32.mrb[0].mxu0
    %v2432 = vadd.f32 %v2335, %v2431
    %v2433 = vpop.f32.mrb[0].mxu0
    %v2434 = vpop.f32.mrb[0].mxu0
    %v2435 = vadd.f32 %v2339, %v2434
    %v2436 = vpop.f32.mrb[0].mxu0
    %2437 = vmatprep.mubr.bf16.mxu0 0
    %2438 = vmatmul.mubr.bf16.gmra.mrb[0].mxu0 %v2389
    %v2439 = vpop.f32.mrb[0].mxu0
    %v2440 = vadd.f32 %v2343, %v2439
    %v2441 = vpop.f32.mrb[0].mxu0
    %v2442 = vpop.f32.mrb[0].mxu0
    %v2443 = vadd.f32 %v2347, %v2442
    %v2444 = vpop.f32.mrb[0].mxu0
    %2445 = vmatprep.mubr.bf16.mxu0 0
    %2446 = vmatmul.mubr.bf16.gmra.mrb[0].mxu0 %v2392
    %v2447 = vpop.f32.mrb[0].mxu0
    %v2448 = vadd.f32 %v2351, %v2447
    %v2449 = vpop.f32.mrb[0].mxu0
    %v2450 = vpop.f32.mrb[0].mxu0
    %v2451 = vadd.f32 %v2355, %v2450
    %v2452 = vpop.f32.mrb[0].mxu0
    %2453 = vmatprep.mubr.bf16.mxu0 0
    %2454 = vmatmul.mubr.bf16.gmra.mrb[0].mxu0 %v2395
    %v2455 = vpop.f32.mrb[0].mxu0
    %v2456 = vadd.f32 %v2359, %v2455
    %v2457 = vpop.f32.mrb[0].mxu0
    %v2458 = vpop.f32.mrb[0].mxu0
    %v2459 = vadd.f32 %v2363, %v2458
    %v2460 = vpop.f32.mrb[0].mxu0
    %2461 = vdwg.mxu0
    %vm2462 = vcmp.gt.f32.partialorder %v2432, 0.0
    %vm2463 = vcmp.gt.f32.partialorder %v2435, 0.0
    %vm2464 = vcmp.gt.f32.partialorder %v2440, 0.0
    %vm2465 = vcmp.gt.f32.partialorder %v2443, 0.0
    %vm2466 = vcmp.gt.f32.partialorder %v2448, 0.0
    %vm2467 = vcmp.gt.f32.partialorder %v2451, 0.0
    %vm2468 = vcmp.gt.f32.partialorder %v2456, 0.0
    %vm2469 = vcmp.gt.f32.partialorder %v2459, 0.0
    %v2470 = vmin.f32 %v2432, 0.0
    %v2471 = vmin.f32 %v2435, 0.0
    %v2472 = vmin.f32 %v2440, 0.0
    %v2473 = vmin.f32 %v2443, 0.0
    %v2474 = vmin.f32 %v2448, 0.0
    %v2475 = vmin.f32 %v2451, 0.0
    %v2476 = vmin.f32 %v2456, 0.0
    %v2477 = vmin.f32 %v2459, 0.0
    %v2478 = vmul.f32 %v2470, 1.442695
    %v2479 = vpow.pop %v2478
    %v2480 = vmul.f32 %v2471, 1.442695
    %v2481 = vpow.pop %v2480
    %v2482 = vmul.f32 %v2472, 1.442695
    %v2483 = vpow.pop %v2482
    %v2484 = vmul.f32 %v2473, 1.442695
    %v2485 = vpow.pop %v2484
    %v2486 = vmul.f32 %v2474, 1.442695
    %v2487 = vpow.pop %v2486
    %v2488 = vmul.f32 %v2475, 1.442695
    %v2489 = vpow.pop %v2488
    %v2490 = vmul.f32 %v2476, 1.442695
    %v2491 = vpow.pop %v2490
    %v2492 = vmul.f32 %v2477, 1.442695
    %v2493 = vpow.pop %v2492
    %v2494 = vsub.f32 %v2479, 1.0
    %v2495 = vsub.f32 %v2481, 1.0
    %v2496 = vsub.f32 %v2483, 1.0
    %v2497 = vsub.f32 %v2485, 1.0
    %v2498 = vsub.f32 %v2487, 1.0
    %v2499 = vsub.f32 %v2489, 1.0
    %v2500 = vsub.f32 %v2491, 1.0
    %v2501 = vsub.f32 %v2493, 1.0
    %v2502 = vsel %vm2462, %v2432, %v2494
    %v2503 = vsel %vm2463, %v2435, %v2495
    %v2504 = vsel %vm2464, %v2440, %v2496
    %v2505 = vsel %vm2465, %v2443, %v2497
    %v2506 = vsel %vm2466, %v2448, %v2498
    %v2507 = vsel %vm2467, %v2451, %v2499
    %v2508 = vsel %vm2468, %v2456, %v2500
    %v2509 = vsel %vm2469, %v2459, %v2501
    %v2510 = vmul.f32 %v2502, 0.999995
    %v2511 = vmul.f32 %v2503, 0.999995
    %v2512 = vmul.f32 %v2504, 0.999995
    %v2513 = vmul.f32 %v2505, 0.999995
    %v2514 = vmul.f32 %v2506, 0.999995
    %v2515 = vmul.f32 %v2507, 0.999995
    %v2516 = vmul.f32 %v2508, 0.999995
    %v2517 = vmul.f32 %v2509, 0.999995
    %v2518 = vpack.c.bf16 %v2511, %v2510
    %v2519 = vpack.c.bf16 %v2513, %v2512
    %v2520 = vpack.c.bf16 %v2515, %v2514
    %v2521 = vpack.c.bf16 %v2517, %v2516
    %v2523 = vsel %vm604, %v2518, 0
    %v2526 = vsel %vm604, %v2519, 0
    %v2529 = vsel %vm604, %v2520, 0
    %v2532 = vsel %vm604, %v2521, 0
    %2534 = vmatprep.subr.bf16.mxu0 %v587
    %2535 = vmatpush1.bf16.msra.mxu0 %v586
    %2536 = vmatprep.subr.bf16.mxu0 %v622
    %2537 = vmatpush1.bf16.msra.mxu0 %v619
    %2538 = vmatprep.subr.bf16.mxu0 0
    %2539 = vmatpush1.bf16.msra.mxu0 0
    %2540 = vmatprep.subr.bf16.mxu0 0
    %2541 = vmatpush1.bf16.msra.mxu0 0
    %2542 = vmatprep.subr.bf16.mxu0 0
    %2543 = vmatpush1.bf16.msra.mxu0 0
    %2544 = vmatprep.subr.bf16.mxu0 0
    %2545 = vmatpush1.bf16.msra.mxu0 0
    %2546 = vmatprep.subr.bf16.mxu0 0
    %2547 = vmatpush1.bf16.msra.mxu0 0
    %2548 = vmatprep.subr.bf16.mxu0 0
    %2549 = vmatpush1.bf16.msra.mxu0 0
    %2550 = vmatprep.subr.bf16.mxu0 0
    %2551 = vmatpush1.bf16.msra.mxu0 0
    %2552 = vmatprep.subr.bf16.mxu0 0
    %2553 = vmatpush1.bf16.msra.mxu0 0
    %2554 = vmatprep.subr.bf16.mxu0 0
    %2555 = vmatpush1.bf16.msra.mxu0 0
    %2556 = vmatprep.subr.bf16.mxu0 0
    %2557 = vmatpush1.bf16.msra.mxu0 0
    %2558 = vmatprep.subr.bf16.mxu0 0
    %2559 = vmatpush1.bf16.msra.mxu0 0
    %2560 = vmatprep.subr.bf16.mxu0 0
    %2561 = vmatpush1.bf16.msra.mxu0 0
    %2562 = vmatprep.subr.bf16.mxu0 0
    %2563 = vmatpush1.bf16.msra.mxu0 0
    %2564 = vmatprep.subr.bf16.mxu0 0
    %2565 = vmatpush1.bf16.msra.mxu0 0
    %2566 = vmatprep.mubr.bf16.mxu0 0
    %2567 = vmatmul.mubr.bf16.gmra.mrb[0].mxu0 %v2523
    %v2568 = vpop.f32.mrb[0].mxu0
    %v2569 = vadd.f32 0.0, %v2568
    %v2570 = vpop.f32.mrb[0].mxu0
    %v2571 = vadd.f32 0.0, %v2570
    %v2572 = vpop.f32.mrb[0].mxu0
    %v2573 = vadd.f32 0.0, %v2572
    %v2574 = vpop.f32.mrb[0].mxu0
    %v2575 = vadd.f32 0.0, %v2574
    %2576 = vmatprep.mubr.bf16.mxu0 0
    %2577 = vmatmul.mubr.bf16.gmra.mrb[0].mxu0 %v2526
    %v2578 = vpop.f32.mrb[0].mxu0
    %v2579 = vadd.f32 0.0, %v2578
    %v2580 = vpop.f32.mrb[0].mxu0
    %v2581 = vadd.f32 0.0, %v2580
    %v2582 = vpop.f32.mrb[0].mxu0
    %v2583 = vadd.f32 0.0, %v2582
    %v2584 = vpop.f32.mrb[0].mxu0
    %v2585 = vadd.f32 0.0, %v2584
    %2586 = vmatprep.mubr.bf16.mxu0 0
    %2587 = vmatmul.mubr.bf16.gmra.mrb[0].mxu0 %v2529
    %v2588 = vpop.f32.mrb[0].mxu0
    %v2589 = vadd.f32 0.0, %v2588
    %v2590 = vpop.f32.mrb[0].mxu0
    %v2591 = vadd.f32 0.0, %v2590
    %v2592 = vpop.f32.mrb[0].mxu0
    %v2593 = vadd.f32 0.0, %v2592
    %v2594 = vpop.f32.mrb[0].mxu0
    %v2595 = vadd.f32 0.0, %v2594
    %2596 = vmatprep.mubr.bf16.mxu0 0
    %2597 = vmatmul.mubr.bf16.gmra.mrb[0].mxu0 %v2532
    %v2598 = vpop.f32.mrb[0].mxu0
    %v2599 = vadd.f32 0.0, %v2598
    %v2600 = vpop.f32.mrb[0].mxu0
    %v2601 = vadd.f32 0.0, %v2600
    %v2602 = vpop.f32.mrb[0].mxu0
    %v2603 = vadd.f32 0.0, %v2602
    %v2604 = vpop.f32.mrb[0].mxu0
    %v2605 = vadd.f32 0.0, %v2604
    %2606 = vdwg.mxu0
    %2607 = vmatprep.subr.bf16.mxu0 %v589
    %2608 = vmatpush1.bf16.msra.mxu0 %v588
    %2609 = vmatprep.subr.bf16.mxu0 %v628
    %2610 = vmatpush1.bf16.msra.mxu0 %v625
    %2611 = vmatprep.subr.bf16.mxu0 0
    %2612 = vmatpush1.bf16.msra.mxu0 0
    %2613 = vmatprep.subr.bf16.mxu0 0
    %2614 = vmatpush1.bf16.msra.mxu0 0
    %2615 = vmatprep.subr.bf16.mxu0 0
    %2616 = vmatpush1.bf16.msra.mxu0 0
    %2617 = vmatprep.subr.bf16.mxu0 0
    %2618 = vmatpush1.bf16.msra.mxu0 0
    %2619 = vmatprep.subr.bf16.mxu0 0
    %2620 = vmatpush1.bf16.msra.mxu0 0
    %2621 = vmatprep.subr.bf16.mxu0 0
    %2622 = vmatpush1.bf16.msra.mxu0 0
    %2623 = vmatprep.subr.bf16.mxu0 0
    %2624 = vmatpush1.bf16.msra.mxu0 0
    %2625 = vmatprep.subr.bf16.mxu0 0
    %2626 = vmatpush1.bf16.msra.mxu0 0
    %2627 = vmatprep.subr.bf16.mxu0 0
    %2628 = vmatpush1.bf16.msra.mxu0 0
    %2629 = vmatprep.subr.bf16.mxu0 0
    %2630 = vmatpush1.bf16.msra.mxu0 0
    %2631 = vmatprep.subr.bf16.mxu0 0
    %2632 = vmatpush1.bf16.msra.mxu0 0
    %2633 = vmatprep.subr.bf16.mxu0 0
    %2634 = vmatpush1.bf16.msra.mxu0 0
    %2635 = vmatprep.subr.bf16.mxu0 0
    %2636 = vmatpush1.bf16.msra.mxu0 0
    %2637 = vmatprep.subr.bf16.mxu0 0
    %2638 = vmatpush1.bf16.msra.mxu0 0
    %2639 = vmatprep.mubr.bf16.mxu0 0
    %2640 = vmatmul.mubr.bf16.gmra.mrb[0].mxu0 %v2523
    %v2641 = vpop.f32.mrb[0].mxu0
    %v2642 = vadd.f32 0.0, %v2641
    %v2643 = vpop.f32.mrb[0].mxu0
    %v2644 = vadd.f32 0.0, %v2643
    %v2645 = vpop.f32.mrb[0].mxu0
    %v2646 = vadd.f32 0.0, %v2645
    %v2647 = vpop.f32.mrb[0].mxu0
    %v2648 = vadd.f32 0.0, %v2647
    %2649 = vmatprep.mubr.bf16.mxu0 0
    %2650 = vmatmul.mubr.bf16.gmra.mrb[0].mxu0 %v2526
    %v2651 = vpop.f32.mrb[0].mxu0
    %v2652 = vadd.f32 0.0, %v2651
    %v2653 = vpop.f32.mrb[0].mxu0
    %v2654 = vadd.f32 0.0, %v2653
    %v2655 = vpop.f32.mrb[0].mxu0
    %v2656 = vadd.f32 0.0, %v2655
    %v2657 = vpop.f32.mrb[0].mxu0
    %v2658 = vadd.f32 0.0, %v2657
    %2659 = vmatprep.mubr.bf16.mxu0 0
    %2660 = vmatmul.mubr.bf16.gmra.mrb[0].mxu0 %v2529
    %v2661 = vpop.f32.mrb[0].mxu0
    %v2662 = vadd.f32 0.0, %v2661
    %v2663 = vpop.f32.mrb[0].mxu0
    %v2664 = vadd.f32 0.0, %v2663
    %v2665 = vpop.f32.mrb[0].mxu0
    %v2666 = vadd.f32 0.0, %v2665
    %v2667 = vpop.f32.mrb[0].mxu0
    %v2668 = vadd.f32 0.0, %v2667
    %2669 = vmatprep.mubr.bf16.mxu0 0
    %2670 = vmatmul.mubr.bf16.gmra.mrb[0].mxu0 %v2532
    %v2671 = vpop.f32.mrb[0].mxu0
    %v2672 = vadd.f32 0.0, %v2671
    %v2673 = vpop.f32.mrb[0].mxu0
    %v2674 = vadd.f32 0.0, %v2673
    %v2675 = vpop.f32.mrb[0].mxu0
    %v2676 = vadd.f32 0.0, %v2675
    %v2677 = vpop.f32.mrb[0].mxu0
    %v2678 = vadd.f32 0.0, %v2677
    %2679 = vdwg.mxu0
    %2680 = vmatprep.subr.bf16.mxu0 %v591
    %2681 = vmatpush1.bf16.msra.mxu0 %v590
    %2682 = vmatprep.subr.bf16.mxu0 %v634
    %2683 = vmatpush1.bf16.msra.mxu0 %v631
    %2684 = vmatprep.subr.bf16.mxu0 0
    %2685 = vmatpush1.bf16.msra.mxu0 0
    %2686 = vmatprep.subr.bf16.mxu0 0
    %2687 = vmatpush1.bf16.msra.mxu0 0
    %2688 = vmatprep.subr.bf16.mxu0 0
    %2689 = vmatpush1.bf16.msra.mxu0 0
    %2690 = vmatprep.subr.bf16.mxu0 0
    %2691 = vmatpush1.bf16.msra.mxu0 0
    %2692 = vmatprep.subr.bf16.mxu0 0
    %2693 = vmatpush1.bf16.msra.mxu0 0
    %2694 = vmatprep.subr.bf16.mxu0 0
    %2695 = vmatpush1.bf16.msra.mxu0 0
    %2696 = vmatprep.subr.bf16.mxu0 0
    %2697 = vmatpush1.bf16.msra.mxu0 0
    %2698 = vmatprep.subr.bf16.mxu0 0
    %2699 = vmatpush1.bf16.msra.mxu0 0
    %2700 = vmatprep.subr.bf16.mxu0 0
    %2701 = vmatpush1.bf16.msra.mxu0 0
    %2702 = vmatprep.subr.bf16.mxu0 0
    %2703 = vmatpush1.bf16.msra.mxu0 0
    %2704 = vmatprep.subr.bf16.mxu0 0
    %2705 = vmatpush1.bf16.msra.mxu0 0
    %2706 = vmatprep.subr.bf16.mxu0 0
    %2707 = vmatpush1.bf16.msra.mxu0 0
    %2708 = vmatprep.subr.bf16.mxu0 0
    %2709 = vmatpush1.bf16.msra.mxu0 0
    %2710 = vmatprep.subr.bf16.mxu0 0
    %2711 = vmatpush1.bf16.msra.mxu0 0
    %2712 = vmatprep.mubr.bf16.mxu0 0
    %2713 = vmatmul.mubr.bf16.gmra.mrb[0].mxu0 %v2523
    %v2714 = vpop.f32.mrb[0].mxu0
    %v2715 = vadd.f32 0.0, %v2714
    %v2716 = vpop.f32.mrb[0].mxu0
    %v2717 = vadd.f32 0.0, %v2716
    %v2718 = vpop.f32.mrb[0].mxu0
    %v2719 = vadd.f32 0.0, %v2718
    %v2720 = vpop.f32.mrb[0].mxu0
    %v2721 = vadd.f32 0.0, %v2720
    %2722 = vmatprep.mubr.bf16.mxu0 0
    %2723 = vmatmul.mubr.bf16.gmra.mrb[0].mxu0 %v2526
    %v2724 = vpop.f32.mrb[0].mxu0
    %v2725 = vadd.f32 0.0, %v2724
    %v2726 = vpop.f32.mrb[0].mxu0
    %v2727 = vadd.f32 0.0, %v2726
    %v2728 = vpop.f32.mrb[0].mxu0
    %v2729 = vadd.f32 0.0, %v2728
    %v2730 = vpop.f32.mrb[0].mxu0
    %v2731 = vadd.f32 0.0, %v2730
    %2732 = vmatprep.mubr.bf16.mxu0 0
    %2733 = vmatmul.mubr.bf16.gmra.mrb[0].mxu0 %v2529
    %v2734 = vpop.f32.mrb[0].mxu0
    %v2735 = vadd.f32 0.0, %v2734
    %v2736 = vpop.f32.mrb[0].mxu0
    %v2737 = vadd.f32 0.0, %v2736
    %v2738 = vpop.f32.mrb[0].mxu0
    %v2739 = vadd.f32 0.0, %v2738
    %v2740 = vpop.f32.mrb[0].mxu0
    %v2741 = vadd.f32 0.0, %v2740
    %2742 = vmatprep.mubr.bf16.mxu0 0
    %2743 = vmatmul.mubr.bf16.gmra.mrb[0].mxu0 %v2532
    %v2744 = vpop.f32.mrb[0].mxu0
    %v2745 = vadd.f32 0.0, %v2744
    %v2746 = vpop.f32.mrb[0].mxu0
    %v2747 = vadd.f32 0.0, %v2746
    %v2748 = vpop.f32.mrb[0].mxu0
    %v2749 = vadd.f32 0.0, %v2748
    %v2750 = vpop.f32.mrb[0].mxu0
    %v2751 = vadd.f32 0.0, %v2750
    %2752 = vdwg.mxu0
    %s2753 = scalar_lea.vmem [#allocation6], 128
    %v2754 = vld [vmem:[%s2753] sm:$0xf]
    %v2755 = vld [vmem:[%s2753 + $0x4] sm:$0xf]
    %v2756 = vld [vmem:[%s2753 + $0x8] sm:$0xf]
    %v2757 = vld [vmem:[%s2753 + $0xc] sm:$0xf]
    %v2758 = vld [vmem:[%s2753 + $0x10] sm:$0xf]
    %v2759 = vld [vmem:[%s2753 + $0x14] sm:$0xf]
    %v2760 = vld [vmem:[%s2753 + $0x18] sm:$0xf]
    %v2761 = vld [vmem:[%s2753 + $0x1c] sm:$0xf]
    %v2762 = vpack.c.bf16 %v2573, %v2569
    %v2763 = vpack.c.bf16 %v2575, %v2571
    %v2764 = vpack.c.bf16 %v2646, %v2642
    %v2765 = vpack.c.bf16 %v2583, %v2579
    %v2766 = vpack.c.bf16 %v2585, %v2581
    %v2767 = vpack.c.bf16 %v2656, %v2652
    %v2768 = vpack.c.bf16 %v2593, %v2589
    %v2769 = vpack.c.bf16 %v2595, %v2591
    %v2770 = vpack.c.bf16 %v2666, %v2662
    %v2771 = vpack.c.bf16 %v2603, %v2599
    %v2772 = vpack.c.bf16 %v2605, %v2601
    %v2773 = vpack.c.bf16 %v2676, %v2672
    %s2774 = scalar_lea.vmem [#allocation6], 160
    %v2775 = vld [vmem:[%s2774] sm:$0xf]
    %v2776 = vld [vmem:[%s2774 + $0x4] sm:$0xf]
    %v2777 = vld [vmem:[%s2774 + $0x8] sm:$0xf]
    %v2778 = vld [vmem:[%s2774 + $0xc] sm:$0xf]
    %v2779 = vld [vmem:[%s2774 + $0x10] sm:$0xf]
    %v2780 = vld [vmem:[%s2774 + $0x14] sm:$0xf]
    %v2781 = vld [vmem:[%s2774 + $0x18] sm:$0xf]
    %v2782 = vld [vmem:[%s2774 + $0x1c] sm:$0xf]
    %v2783 = vpack.c.bf16 %v2648, %v2644
    %v2784 = vpack.c.bf16 %v2719, %v2715
    %v2785 = vpack.c.bf16 %v2721, %v2717
    %v2786 = vpack.c.bf16 %v2658, %v2654
    %v2787 = vpack.c.bf16 %v2729, %v2725
    %v2788 = vpack.c.bf16 %v2731, %v2727
    %v2789 = vpack.c.bf16 %v2668, %v2664
    %v2790 = vpack.c.bf16 %v2739, %v2735
    %v2791 = vpack.c.bf16 %v2741, %v2737
    %v2792 = vpack.c.bf16 %v2678, %v2674
    %v2793 = vpack.c.bf16 %v2749, %v2745
    %v2794 = vpack.c.bf16 %v2751, %v2747
    %v2803 = vunpack.c.l.b16 %v2775
    %v2804 = vunpack.c.l.b16 %v2776
    %v2805 = vunpack.c.l.b16 %v2777
    %v2806 = vunpack.c.l.b16 %v2778
    %v2807 = vunpack.c.l.b16 %v2779
    %v2808 = vunpack.c.l.b16 %v2780
    %v2809 = vunpack.c.l.b16 %v2781
    %v2810 = vunpack.c.l.b16 %v2782
    %v2811 = vpack.c.b16 %v2804, %v2803
    %v2812 = vpack.c.b16 %v2806, %v2805
    %v2813 = vpack.c.b16 %v2808, %v2807
    %v2814 = vpack.c.b16 %v2810, %v2809
    %v2816 = vsel %vm412, %v2811, 0
    %v2819 = vsel %vm412, %v2812, 0
    %v2822 = vsel %vm412, %v2813, 0
    %v2825 = vsel %vm412, %v2814, 0
    %2827 = vmatprep.subr.bf16.mxu0 %v2784
    %2828 = vmatpush1.bf16.msra.mxu0 %v2783
    %2829 = vmatprep.subr.bf16.mxu0 %v2787
    %2830 = vmatpush1.bf16.msra.mxu0 %v2786
    %2831 = vmatprep.subr.bf16.mxu0 %v2790
    %2832 = vmatpush1.bf16.msra.mxu0 %v2789
    %2833 = vmatprep.subr.bf16.mxu0 %v2793
    %2834 = vmatpush1.bf16.msra.mxu0 %v2792
    %2835 = vmatprep.subr.bf16.mxu0 0
    %2836 = vmatpush1.bf16.msra.mxu0 0
    %2837 = vmatprep.subr.bf16.mxu0 0
    %2838 = vmatpush1.bf16.msra.mxu0 0
    %2839 = vmatprep.subr.bf16.mxu0 0
    %2840 = vmatpush1.bf16.msra.mxu0 0
    %2841 = vmatprep.subr.bf16.mxu0 0
    %2842 = vmatpush1.bf16.msra.mxu0 0
    %2843 = vmatprep.subr.bf16.mxu0 0
    %2844 = vmatpush1.bf16.msra.mxu0 0
    %2845 = vmatprep.subr.bf16.mxu0 0
    %2846 = vmatpush1.bf16.msra.mxu0 0
    %2847 = vmatprep.subr.bf16.mxu0 0
    %2848 = vmatpush1.bf16.msra.mxu0 0
    %2849 = vmatprep.subr.bf16.mxu0 0
    %2850 = vmatpush1.bf16.msra.mxu0 0
    %2851 = vmatprep.subr.bf16.mxu0 0
    %2852 = vmatpush1.bf16.msra.mxu0 0
    %2853 = vmatprep.subr.bf16.mxu0 0
    %2854 = vmatpush1.bf16.msra.mxu0 0
    %2855 = vmatprep.subr.bf16.mxu0 0
    %2856 = vmatpush1.bf16.msra.mxu0 0
    %2857 = vmatprep.subr.bf16.mxu0 0
    %2858 = vmatpush1.bf16.msra.mxu0 0
    %2859 = vmatprep.mubr.bf16.mxu0 0
    %2860 = vmatmul.mubr.bf16.gmra.mrb[0].mxu0 %v2816
    %v2861 = vpop.f32.mrb[0].mxu0
    %v2862 = vadd.f32 0.0, %v2861
    %v2863 = vpop.f32.mrb[0].mxu0
    %v2864 = vadd.f32 0.0, %v2863
    %v2865 = vpop.f32.mrb[0].mxu0
    %v2866 = vadd.f32 0.0, %v2865
    %v2867 = vpop.f32.mrb[0].mxu0
    %v2868 = vadd.f32 0.0, %v2867
    %2869 = vmatprep.mubr.bf16.mxu0 0
    %2870 = vmatmul.mubr.bf16.gmra.mrb[0].mxu0 %v2819
    %v2871 = vpop.f32.mrb[0].mxu0
    %v2872 = vadd.f32 0.0, %v2871
    %v2873 = vpop.f32.mrb[0].mxu0
    %v2874 = vadd.f32 0.0, %v2873
    %v2875 = vpop.f32.mrb[0].mxu0
    %v2876 = vadd.f32 0.0, %v2875
    %v2877 = vpop.f32.mrb[0].mxu0
    %v2878 = vadd.f32 0.0, %v2877
    %2879 = vmatprep.mubr.bf16.mxu0 0
    %2880 = vmatmul.mubr.bf16.gmra.mrb[0].mxu0 %v2822
    %v2881 = vpop.f32.mrb[0].mxu0
    %v2882 = vadd.f32 0.0, %v2881
    %v2883 = vpop.f32.mrb[0].mxu0
    %v2884 = vadd.f32 0.0, %v2883
    %v2885 = vpop.f32.mrb[0].mxu0
    %v2886 = vadd.f32 0.0, %v2885
    %v2887 = vpop.f32.mrb[0].mxu0
    %v2888 = vadd.f32 0.0, %v2887
    %2889 = vmatprep.mubr.bf16.mxu0 0
    %2890 = vmatmul.mubr.bf16.gmra.mrb[0].mxu0 %v2825
    %v2891 = vpop.f32.mrb[0].mxu0
    %v2892 = vadd.f32 0.0, %v2891
    %v2893 = vpop.f32.mrb[0].mxu0
    %v2894 = vadd.f32 0.0, %v2893
    %v2895 = vpop.f32.mrb[0].mxu0
    %v2896 = vadd.f32 0.0, %v2895
    %v2897 = vpop.f32.mrb[0].mxu0
    %v2898 = vadd.f32 0.0, %v2897
    %2899 = vdwg.mxu0
    %2900 = vmatprep.subr.bf16.mxu0 0
    %2901 = vmatpush1.bf16.msra.mxu0 %v2785
    %2902 = vmatprep.subr.bf16.mxu0 0
    %2903 = vmatpush1.bf16.msra.mxu0 %v2788
    %2904 = vmatprep.subr.bf16.mxu0 0
    %2905 = vmatpush1.bf16.msra.mxu0 %v2791
    %2906 = vmatprep.subr.bf16.mxu0 0
    %2907 = vmatpush1.bf16.msra.mxu0 %v2794
    %2908 = vmatprep.subr.bf16.mxu0 0
    %2909 = vmatpush1.bf16.msra.mxu0 0
    %2910 = vmatprep.subr.bf16.mxu0 0
    %2911 = vmatpush1.bf16.msra.mxu0 0
    %2912 = vmatprep.subr.bf16.mxu0 0
    %2913 = vmatpush1.bf16.msra.mxu0 0
    %2914 = vmatprep.subr.bf16.mxu0 0
    %2915 = vmatpush1.bf16.msra.mxu0 0
    %2916 = vmatprep.subr.bf16.mxu0 0
    %2917 = vmatpush1.bf16.msra.mxu0 0
    %2918 = vmatprep.subr.bf16.mxu0 0
    %2919 = vmatpush1.bf16.msra.mxu0 0
    %2920 = vmatprep.subr.bf16.mxu0 0
    %2921 = vmatpush1.bf16.msra.mxu0 0
    %2922 = vmatprep.subr.bf16.mxu0 0
    %2923 = vmatpush1.bf16.msra.mxu0 0
    %2924 = vmatprep.subr.bf16.mxu0 0
    %2925 = vmatpush1.bf16.msra.mxu0 0
    %2926 = vmatprep.subr.bf16.mxu0 0
    %2927 = vmatpush1.bf16.msra.mxu0 0
    %2928 = vmatprep.subr.bf16.mxu0 0
    %2929 = vmatpush1.bf16.msra.mxu0 0
    %2930 = vmatprep.subr.bf16.mxu0 0
    %2931 = vmatpush1.bf16.msra.mxu0 0
    %2932 = vmatprep.mubr.bf16.mxu0 0
    %2933 = vmatmul.mubr.bf16.gmra.mrb[0].mxu0 %v2816
    %v2934 = vpop.f32.mrb[0].mxu0
    %v2935 = vadd.f32 0.0, %v2934
    %v2936 = vpop.f32.mrb[0].mxu0
    %v2937 = vpop.f32.mrb[0].mxu0
    %v2938 = vadd.f32 0.0, %v2937
    %v2939 = vpop.f32.mrb[0].mxu0
    %2940 = vmatprep.mubr.bf16.mxu0 0
    %2941 = vmatmul.mubr.bf16.gmra.mrb[0].mxu0 %v2819
    %v2942 = vpop.f32.mrb[0].mxu0
    %v2943 = vadd.f32 0.0, %v2942
    %v2944 = vpop.f32.mrb[0].mxu0
    %v2945 = vpop.f32.mrb[0].mxu0
    %v2946 = vadd.f32 0.0, %v2945
    %v2947 = vpop.f32.mrb[0].mxu0
    %2948 = vmatprep.mubr.bf16.mxu0 0
    %2949 = vmatmul.mubr.bf16.gmra.mrb[0].mxu0 %v2822
    %v2950 = vpop.f32.mrb[0].mxu0
    %v2951 = vadd.f32 0.0, %v2950
    %v2952 = vpop.f32.mrb[0].mxu0
    %v2953 = vpop.f32.mrb[0].mxu0
    %v2954 = vadd.f32 0.0, %v2953
    %v2955 = vpop.f32.mrb[0].mxu0
    %2956 = vmatprep.mubr.bf16.mxu0 0
    %2957 = vmatmul.mubr.bf16.gmra.mrb[0].mxu0 %v2825
    %v2958 = vpop.f32.mrb[0].mxu0
    %v2959 = vadd.f32 0.0, %v2958
    %v2960 = vpop.f32.mrb[0].mxu0
    %v2961 = vpop.f32.mrb[0].mxu0
    %v2962 = vadd.f32 0.0, %v2961
    %v2963 = vpop.f32.mrb[0].mxu0
    %2964 = vdwg.mxu0
    %v2973 = vunpack.c.l.b16 %v2754
    %v2974 = vunpack.c.l.b16 %v2755
    %v2975 = vunpack.c.l.b16 %v2756
    %v2976 = vunpack.c.l.b16 %v2757
    %v2977 = vunpack.c.l.b16 %v2758
    %v2978 = vunpack.c.l.b16 %v2759
    %v2979 = vunpack.c.l.b16 %v2760
    %v2980 = vunpack.c.l.b16 %v2761
    %v2981 = vpack.c.b16 %v2974, %v2973
    %v2982 = vpack.c.b16 %v2976, %v2975
    %v2983 = vpack.c.b16 %v2978, %v2977
    %v2984 = vpack.c.b16 %v2980, %v2979
    %v2986 = vsel %vm412, %v2981, 0
    %v2989 = vsel %vm412, %v2982, 0
    %v2992 = vsel %vm412, %v2983, 0
    %v2995 = vsel %vm412, %v2984, 0
    %2997 = vmatprep.subr.bf16.mxu0 %v2763
    %2998 = vmatpush1.bf16.msra.mxu0 %v2762
    %2999 = vmatprep.subr.bf16.mxu0 %v2766
    %3000 = vmatpush1.bf16.msra.mxu0 %v2765
    %3001 = vmatprep.subr.bf16.mxu0 %v2769
    %3002 = vmatpush1.bf16.msra.mxu0 %v2768
    %3003 = vmatprep.subr.bf16.mxu0 %v2772
    %3004 = vmatpush1.bf16.msra.mxu0 %v2771
    %3005 = vmatprep.subr.bf16.mxu0 0
    %3006 = vmatpush1.bf16.msra.mxu0 0
    %3007 = vmatprep.subr.bf16.mxu0 0
    %3008 = vmatpush1.bf16.msra.mxu0 0
    %3009 = vmatprep.subr.bf16.mxu0 0
    %3010 = vmatpush1.bf16.msra.mxu0 0
    %3011 = vmatprep.subr.bf16.mxu0 0
    %3012 = vmatpush1.bf16.msra.mxu0 0
    %3013 = vmatprep.subr.bf16.mxu0 0
    %3014 = vmatpush1.bf16.msra.mxu0 0
    %3015 = vmatprep.subr.bf16.mxu0 0
    %3016 = vmatpush1.bf16.msra.mxu0 0
    %3017 = vmatprep.subr.bf16.mxu0 0
    %3018 = vmatpush1.bf16.msra.mxu0 0
    %3019 = vmatprep.subr.bf16.mxu0 0
    %3020 = vmatpush1.bf16.msra.mxu0 0
    %3021 = vmatprep.subr.bf16.mxu0 0
    %3022 = vmatpush1.bf16.msra.mxu0 0
    %3023 = vmatprep.subr.bf16.mxu0 0
    %3024 = vmatpush1.bf16.msra.mxu0 0
    %3025 = vmatprep.subr.bf16.mxu0 0
    %3026 = vmatpush1.bf16.msra.mxu0 0
    %3027 = vmatprep.subr.bf16.mxu0 0
    %3028 = vmatpush1.bf16.msra.mxu0 0
    %3029 = vmatprep.mubr.bf16.mxu0 0
    %3030 = vmatmul.mubr.bf16.gmra.mrb[0].mxu0 %v2986
    %v3031 = vpop.f32.mrb[0].mxu0
    %v3032 = vadd.f32 %v2862, %v3031
    %v3033 = vpop.f32.mrb[0].mxu0
    %v3034 = vadd.f32 %v2864, %v3033
    %v3035 = vpop.f32.mrb[0].mxu0
    %v3036 = vadd.f32 %v2866, %v3035
    %v3037 = vpop.f32.mrb[0].mxu0
    %v3038 = vadd.f32 %v2868, %v3037
    %3039 = vmatprep.mubr.bf16.mxu0 0
    %3040 = vmatmul.mubr.bf16.gmra.mrb[0].mxu0 %v2989
    %v3041 = vpop.f32.mrb[0].mxu0
    %v3042 = vadd.f32 %v2872, %v3041
    %v3043 = vpop.f32.mrb[0].mxu0
    %v3044 = vadd.f32 %v2874, %v3043
    %v3045 = vpop.f32.mrb[0].mxu0
    %v3046 = vadd.f32 %v2876, %v3045
    %v3047 = vpop.f32.mrb[0].mxu0
    %v3048 = vadd.f32 %v2878, %v3047
    %3049 = vmatprep.mubr.bf16.mxu0 0
    %3050 = vmatmul.mubr.bf16.gmra.mrb[0].mxu0 %v2992
    %v3051 = vpop.f32.mrb[0].mxu0
    %v3052 = vadd.f32 %v2882, %v3051
    %v3053 = vpop.f32.mrb[0].mxu0
    %v3054 = vadd.f32 %v2884, %v3053
    %v3055 = vpop.f32.mrb[0].mxu0
    %v3056 = vadd.f32 %v2886, %v3055
    %v3057 = vpop.f32.mrb[0].mxu0
    %v3058 = vadd.f32 %v2888, %v3057
    %3059 = vmatprep.mubr.bf16.mxu0 0
    %3060 = vmatmul.mubr.bf16.gmra.mrb[0].mxu0 %v2995
    %v3061 = vpop.f32.mrb[0].mxu0
    %v3062 = vadd.f32 %v2892, %v3061
    %v3063 = vpop.f32.mrb[0].mxu0
    %v3064 = vadd.f32 %v2894, %v3063
    %v3065 = vpop.f32.mrb[0].mxu0
    %v3066 = vadd.f32 %v2896, %v3065
    %v3067 = vpop.f32.mrb[0].mxu0
    %v3068 = vadd.f32 %v2898, %v3067
    %3069 = vdwg.mxu0
    %3070 = vmatprep.subr.bf16.mxu0 0
    %3071 = vmatpush1.bf16.msra.mxu0 %v2764
    %3072 = vmatprep.subr.bf16.mxu0 0
    %3073 = vmatpush1.bf16.msra.mxu0 %v2767
    %3074 = vmatprep.subr.bf16.mxu0 0
    %3075 = vmatpush1.bf16.msra.mxu0 %v2770
    %3076 = vmatprep.subr.bf16.mxu0 0
    %3077 = vmatpush1.bf16.msra.mxu0 %v2773
    %3078 = vmatprep.subr.bf16.mxu0 0
    %3079 = vmatpush1.bf16.msra.mxu0 0
    %3080 = vmatprep.subr.bf16.mxu0 0
    %3081 = vmatpush1.bf16.msra.mxu0 0
    %3082 = vmatprep.subr.bf16.mxu0 0
    %3083 = vmatpush1.bf16.msra.mxu0 0
    %3084 = vmatprep.subr.bf16.mxu0 0
    %3085 = vmatpush1.bf16.msra.mxu0 0
    %3086 = vmatprep.subr.bf16.mxu0 0
    %3087 = vmatpush1.bf16.msra.mxu0 0
    %3088 = vmatprep.subr.bf16.mxu0 0
    %3089 = vmatpush1.bf16.msra.mxu0 0
    %3090 = vmatprep.subr.bf16.mxu0 0
    %3091 = vmatpush1.bf16.msra.mxu0 0
    %3092 = vmatprep.subr.bf16.mxu0 0
    %3093 = vmatpush1.bf16.msra.mxu0 0
    %3094 = vmatprep.subr.bf16.mxu0 0
    %3095 = vmatpush1.bf16.msra.mxu0 0
    %3096 = vmatprep.subr.bf16.mxu0 0
    %3097 = vmatpush1.bf16.msra.mxu0 0
    %3098 = vmatprep.subr.bf16.mxu0 0
    %3099 = vmatpush1.bf16.msra.mxu0 0
    %3100 = vmatprep.subr.bf16.mxu0 0
    %3101 = vmatpush1.bf16.msra.mxu0 0
    %3102 = vmatprep.mubr.bf16.mxu0 0
    %3103 = vmatmul.mubr.bf16.gmra.mrb[0].mxu0 %v2986
    %v3104 = vpop.f32.mrb[0].mxu0
    %v3105 = vadd.f32 %v2935, %v3104
    %v3106 = vpop.f32.mrb[0].mxu0
    %v3107 = vpop.f32.mrb[0].mxu0
    %v3108 = vadd.f32 %v2938, %v3107
    %v3109 = vpop.f32.mrb[0].mxu0
    %3110 = vmatprep.mubr.bf16.mxu0 0
    %3111 = vmatmul.mubr.bf16.gmra.mrb[0].mxu0 %v2989
    %v3112 = vpop.f32.mrb[0].mxu0
    %v3113 = vadd.f32 %v2943, %v3112
    %v3114 = vpop.f32.mrb[0].mxu0
    %v3115 = vpop.f32.mrb[0].mxu0
    %v3116 = vadd.f32 %v2946, %v3115
    %v3117 = vpop.f32.mrb[0].mxu0
    %3118 = vmatprep.mubr.bf16.mxu0 0
    %3119 = vmatmul.mubr.bf16.gmra.mrb[0].mxu0 %v2992
    %v3120 = vpop.f32.mrb[0].mxu0
    %v3121 = vadd.f32 %v2951, %v3120
    %v3122 = vpop.f32.mrb[0].mxu0
    %v3123 = vpop.f32.mrb[0].mxu0
    %v3124 = vadd.f32 %v2954, %v3123
    %v3125 = vpop.f32.mrb[0].mxu0
    %3126 = vmatprep.mubr.bf16.mxu0 0
    %3127 = vmatmul.mubr.bf16.gmra.mrb[0].mxu0 %v2995
    %v3128 = vpop.f32.mrb[0].mxu0
    %v3129 = vadd.f32 %v2959, %v3128
    %v3130 = vpop.f32.mrb[0].mxu0
    %v3131 = vpop.f32.mrb[0].mxu0
    %v3132 = vadd.f32 %v2962, %v3131
    %v3133 = vpop.f32.mrb[0].mxu0
    %3134 = vdwg.mxu0
    %s3135 = scalar_lea.vmem [#allocation6], 192
    %v3136 = vld [vmem:[%s3135] sm:$0xf]
    %v3137 = vld [vmem:[%s3135 + $0x4] sm:$0xf]
    %v3138 = vld [vmem:[%s3135 + $0x8] sm:$0xf]
    %v3139 = vld [vmem:[%s3135 + $0xc] sm:$0xf]
    %v3140 = vld [vmem:[%s3135 + $0x10] sm:$0xf]
    %v3141 = vld [vmem:[%s3135 + $0x14] sm:$0xf]
    %v3142 = vld [vmem:[%s3135 + $0x18] sm:$0xf]
    %v3143 = vld [vmem:[%s3135 + $0x1c] sm:$0xf]
    %v3152 = vunpack.c.l.b16 %v3136
    %v3153 = vunpack.c.l.b16 %v3137
    %v3154 = vunpack.c.l.b16 %v3138
    %v3155 = vunpack.c.l.b16 %v3139
    %v3156 = vunpack.c.l.b16 %v3140
    %v3157 = vunpack.c.l.b16 %v3141
    %v3158 = vunpack.c.l.b16 %v3142
    %v3159 = vunpack.c.l.b16 %v3143
    %v3160 = vpack.c.b16 %v3153, %v3152
    %v3161 = vpack.c.b16 %v3155, %v3154
    %v3162 = vpack.c.b16 %v3157, %v3156
    %v3163 = vpack.c.b16 %v3159, %v3158
    %v3165 = vsel %vm412, %v3160, 0
    %v3168 = vsel %vm412, %v3161, 0
    %v3171 = vsel %vm412, %v3162, 0
    %v3174 = vsel %vm412, %v3163, 0
    %3176 = vmatprep.subr.bf16.mxu0 %v1838
    %3177 = vmatpush1.bf16.msra.mxu0 %v1837
    %3178 = vmatprep.subr.bf16.mxu0 %v1841
    %3179 = vmatpush1.bf16.msra.mxu0 %v1840
    %3180 = vmatprep.subr.bf16.mxu0 %v1844
    %3181 = vmatpush1.bf16.msra.mxu0 %v1843
    %3182 = vmatprep.subr.bf16.mxu0 %v1847
    %3183 = vmatpush1.bf16.msra.mxu0 %v1846
    %3184 = vmatprep.subr.bf16.mxu0 0
    %3185 = vmatpush1.bf16.msra.mxu0 0
    %3186 = vmatprep.subr.bf16.mxu0 0
    %3187 = vmatpush1.bf16.msra.mxu0 0
    %3188 = vmatprep.subr.bf16.mxu0 0
    %3189 = vmatpush1.bf16.msra.mxu0 0
    %3190 = vmatprep.subr.bf16.mxu0 0
    %3191 = vmatpush1.bf16.msra.mxu0 0
    %3192 = vmatprep.subr.bf16.mxu0 0
    %3193 = vmatpush1.bf16.msra.mxu0 0
    %3194 = vmatprep.subr.bf16.mxu0 0
    %3195 = vmatpush1.bf16.msra.mxu0 0
    %3196 = vmatprep.subr.bf16.mxu0 0
    %3197 = vmatpush1.bf16.msra.mxu0 0
    %3198 = vmatprep.subr.bf16.mxu0 0
    %3199 = vmatpush1.bf16.msra.mxu0 0
    %3200 = vmatprep.subr.bf16.mxu0 0
    %3201 = vmatpush1.bf16.msra.mxu0 0
    %3202 = vmatprep.subr.bf16.mxu0 0
    %3203 = vmatpush1.bf16.msra.mxu0 0
    %3204 = vmatprep.subr.bf16.mxu0 0
    %3205 = vmatpush1.bf16.msra.mxu0 0
    %3206 = vmatprep.subr.bf16.mxu0 0
    %3207 = vmatpush1.bf16.msra.mxu0 0
    %3208 = vmatprep.mubr.bf16.mxu0 0
    %3209 = vmatmul.mubr.bf16.gmra.mrb[0].mxu0 %v3165
    %v3210 = vpop.f32.mrb[0].mxu0
    %v3211 = vadd.f32 0.0, %v3210
    %v3212 = vpop.f32.mrb[0].mxu0
    %v3213 = vadd.f32 0.0, %v3212
    %v3214 = vpop.f32.mrb[0].mxu0
    %v3215 = vadd.f32 0.0, %v3214
    %v3216 = vpop.f32.mrb[0].mxu0
    %v3217 = vadd.f32 0.0, %v3216
    %3218 = vmatprep.mubr.bf16.mxu0 0
    %3219 = vmatmul.mubr.bf16.gmra.mrb[0].mxu0 %v3168
    %v3220 = vpop.f32.mrb[0].mxu0
    %v3221 = vadd.f32 0.0, %v3220
    %v3222 = vpop.f32.mrb[0].mxu0
    %v3223 = vadd.f32 0.0, %v3222
    %v3224 = vpop.f32.mrb[0].mxu0
    %v3225 = vadd.f32 0.0, %v3224
    %v3226 = vpop.f32.mrb[0].mxu0
    %v3227 = vadd.f32 0.0, %v3226
    %3228 = vmatprep.mubr.bf16.mxu0 0
    %3229 = vmatmul.mubr.bf16.gmra.mrb[0].mxu0 %v3171
    %v3230 = vpop.f32.mrb[0].mxu0
    %v3231 = vadd.f32 0.0, %v3230
    %v3232 = vpop.f32.mrb[0].mxu0
    %v3233 = vadd.f32 0.0, %v3232
    %v3234 = vpop.f32.mrb[0].mxu0
    %v3235 = vadd.f32 0.0, %v3234
    %v3236 = vpop.f32.mrb[0].mxu0
    %v3237 = vadd.f32 0.0, %v3236
    %3238 = vmatprep.mubr.bf16.mxu0 0
    %3239 = vmatmul.mubr.bf16.gmra.mrb[0].mxu0 %v3174
    %v3240 = vpop.f32.mrb[0].mxu0
    %v3241 = vadd.f32 0.0, %v3240
    %v3242 = vpop.f32.mrb[0].mxu0
    %v3243 = vadd.f32 0.0, %v3242
    %v3244 = vpop.f32.mrb[0].mxu0
    %v3245 = vadd.f32 0.0, %v3244
    %v3246 = vpop.f32.mrb[0].mxu0
    %v3247 = vadd.f32 0.0, %v3246
    %3248 = vdwg.mxu0
    %3249 = vmatprep.subr.bf16.mxu0 0
    %3250 = vmatpush1.bf16.msra.mxu0 %v1839
    %3251 = vmatprep.subr.bf16.mxu0 0
    %3252 = vmatpush1.bf16.msra.mxu0 %v1842
    %3253 = vmatprep.subr.bf16.mxu0 0
    %3254 = vmatpush1.bf16.msra.mxu0 %v1845
    %3255 = vmatprep.subr.bf16.mxu0 0
    %3256 = vmatpush1.bf16.msra.mxu0 %v1848
    %3257 = vmatprep.subr.bf16.mxu0 0
    %3258 = vmatpush1.bf16.msra.mxu0 0
    %3259 = vmatprep.subr.bf16.mxu0 0
    %3260 = vmatpush1.bf16.msra.mxu0 0
    %3261 = vmatprep.subr.bf16.mxu0 0
    %3262 = vmatpush1.bf16.msra.mxu0 0
    %3263 = vmatprep.subr.bf16.mxu0 0
    %3264 = vmatpush1.bf16.msra.mxu0 0
    %3265 = vmatprep.subr.bf16.mxu0 0
    %3266 = vmatpush1.bf16.msra.mxu0 0
    %3267 = vmatprep.subr.bf16.mxu0 0
    %3268 = vmatpush1.bf16.msra.mxu0 0
    %3269 = vmatprep.subr.bf16.mxu0 0
    %3270 = vmatpush1.bf16.msra.mxu0 0
    %3271 = vmatprep.subr.bf16.mxu0 0
    %3272 = vmatpush1.bf16.msra.mxu0 0
    %3273 = vmatprep.subr.bf16.mxu0 0
    %3274 = vmatpush1.bf16.msra.mxu0 0
    %3275 = vmatprep.subr.bf16.mxu0 0
    %3276 = vmatpush1.bf16.msra.mxu0 0
    %3277 = vmatprep.subr.bf16.mxu0 0
    %3278 = vmatpush1.bf16.msra.mxu0 0
    %3279 = vmatprep.subr.bf16.mxu0 0
    %3280 = vmatpush1.bf16.msra.mxu0 0
    %3281 = vmatprep.mubr.bf16.mxu0 0
    %3282 = vmatmul.mubr.bf16.gmra.mrb[0].mxu0 %v3165
    %v3283 = vpop.f32.mrb[0].mxu0
    %v3284 = vadd.f32 0.0, %v3283
    %v3285 = vpop.f32.mrb[0].mxu0
    %v3286 = vpop.f32.mrb[0].mxu0
    %v3287 = vadd.f32 0.0, %v3286
    %v3288 = vpop.f32.mrb[0].mxu0
    %3289 = vmatprep.mubr.bf16.mxu0 0
    %3290 = vmatmul.mubr.bf16.gmra.mrb[0].mxu0 %v3168
    %v3291 = vpop.f32.mrb[0].mxu0
    %v3292 = vadd.f32 0.0, %v3291
    %v3293 = vpop.f32.mrb[0].mxu0
    %v3294 = vpop.f32.mrb[0].mxu0
    %v3295 = vadd.f32 0.0, %v3294
    %v3296 = vpop.f32.mrb[0].mxu0
    %3297 = vmatprep.mubr.bf16.mxu0 0
    %3298 = vmatmul.mubr.bf16.gmra.mrb[0].mxu0 %v3171
    %v3299 = vpop.f32.mrb[0].mxu0
    %v3300 = vadd.f32 0.0, %v3299
    %v3301 = vpop.f32.mrb[0].mxu0
    %v3302 = vpop.f32.mrb[0].mxu0
    %v3303 = vadd.f32 0.0, %v3302
    %v3304 = vpop.f32.mrb[0].mxu0
    %3305 = vmatprep.mubr.bf16.mxu0 0
    %3306 = vmatmul.mubr.bf16.gmra.mrb[0].mxu0 %v3174
    %v3307 = vpop.f32.mrb[0].mxu0
    %v3308 = vadd.f32 0.0, %v3307
    %v3309 = vpop.f32.mrb[0].mxu0
    %v3310 = vpop.f32.mrb[0].mxu0
    %v3311 = vadd.f32 0.0, %v3310
    %v3312 = vpop.f32.mrb[0].mxu0
    %3313 = vdwg.mxu0
    %v3314 = vadd.f32 %v3032, %v3211
    %v3315 = vadd.f32 %v3034, %v3213
    %v3316 = vadd.f32 %v3105, %v3284
    %v3317 = vadd.f32 %v3036, %v3215
    %v3318 = vadd.f32 %v3038, %v3217
    %v3319 = vadd.f32 %v3108, %v3287
    %v3320 = vadd.f32 %v3042, %v3221
    %v3321 = vadd.f32 %v3044, %v3223
    %v3322 = vadd.f32 %v3113, %v3292
    %v3323 = vadd.f32 %v3046, %v3225
    %v3324 = vadd.f32 %v3048, %v3227
    %v3325 = vadd.f32 %v3116, %v3295
    %v3326 = vadd.f32 %v3052, %v3231
    %v3327 = vadd.f32 %v3054, %v3233
    %v3328 = vadd.f32 %v3121, %v3300
    %v3329 = vadd.f32 %v3056, %v3235
    %v3330 = vadd.f32 %v3058, %v3237
    %v3331 = vadd.f32 %v3124, %v3303
    %v3332 = vadd.f32 %v3062, %v3241
    %v3333 = vadd.f32 %v3064, %v3243
    %v3334 = vadd.f32 %v3129, %v3308
    %v3335 = vadd.f32 %v3066, %v3245
    %v3336 = vadd.f32 %v3068, %v3247
    %v3337 = vadd.f32 %v3132, %v3311
    %3338 = vset.pattern.permute.xlu0 6
    %3339 = vperm.xlu0 %3338, %v149
    %v3340 = vpop.permute.xlu0 %3339
    %3342 = vset.pattern.permute.xlu0 6
    %3343 = vperm.xlu0 %3342, %v150
    %v3344 = vpop.permute.xlu0 %3343
    %3346 = vset.pattern.permute.xlu0 6
    %3347 = vperm.xlu0 %3346, %v151
    %v3348 = vpop.permute.xlu0 %3347
    %3350 = vset.pattern.permute.xlu0 6
    %3351 = vperm.xlu0 %3350, %v152
    %v3352 = vpop.permute.xlu0 %3351
    %3354 = vset.pattern.permute.xlu0 6
    %3355 = vperm.xlu0 %3354, %v153
    %v3356 = vpop.permute.xlu0 %3355
    %3358 = vset.pattern.permute.xlu0 6
    %3359 = vperm.xlu0 %3358, %v154
    %v3360 = vpop.permute.xlu0 %3359
    %3362 = vset.pattern.permute.xlu0 6
    %3363 = vperm.xlu0 %3362, %v155
    %v3364 = vpop.permute.xlu0 %3363
    %3366 = vset.pattern.permute.xlu0 6
    %3367 = vperm.xlu0 %3366, %v156
    %v3368 = vpop.permute.xlu0 %3367
    %v3370 = vadd.f32 %v3314, %v3340
    %v3371 = vadd.f32 %v3315, %v3340
    %v3372 = vadd.f32 %v3316, %v3340
    %v3373 = vadd.f32 %v3317, %v3344
    %v3374 = vadd.f32 %v3318, %v3344
    %v3375 = vadd.f32 %v3319, %v3344
    %v3376 = vadd.f32 %v3320, %v3348
    %v3377 = vadd.f32 %v3321, %v3348
    %v3378 = vadd.f32 %v3322, %v3348
    %v3379 = vadd.f32 %v3323, %v3352
    %v3380 = vadd.f32 %v3324, %v3352
    %v3381 = vadd.f32 %v3325, %v3352
    %v3382 = vadd.f32 %v3326, %v3356
    %v3383 = vadd.f32 %v3327, %v3356
    %v3384 = vadd.f32 %v3328, %v3356
    %v3385 = vadd.f32 %v3329, %v3360
    %v3386 = vadd.f32 %v3330, %v3360
    %v3387 = vadd.f32 %v3331, %v3360
    %v3388 = vadd.f32 %v3332, %v3364
    %v3389 = vadd.f32 %v3333, %v3364
    %v3390 = vadd.f32 %v3334, %v3364
    %v3391 = vadd.f32 %v3335, %v3368
    %v3392 = vadd.f32 %v3336, %v3368
    %v3393 = vadd.f32 %v3337, %v3368
    %vm3394 = vcmp.gt.f32.partialorder %v3370, 0.0
    %vm3395 = vcmp.gt.f32.partialorder %v3371, 0.0
    %vm3396 = vcmp.gt.f32.partialorder %v3372, 0.0
    %vm3397 = vcmp.gt.f32.partialorder %v3373, 0.0
    %vm3398 = vcmp.gt.f32.partialorder %v3374, 0.0
    %vm3399 = vcmp.gt.f32.partialorder %v3375, 0.0
    %vm3400 = vcmp.gt.f32.partialorder %v3376, 0.0
    %vm3401 = vcmp.gt.f32.partialorder %v3377, 0.0
    %vm3402 = vcmp.gt.f32.partialorder %v3378, 0.0
    %vm3403 = vcmp.gt.f32.partialorder %v3379, 0.0
    %vm3404 = vcmp.gt.f32.partialorder %v3380, 0.0
    %vm3405 = vcmp.gt.f32.partialorder %v3381, 0.0
    %vm3406 = vcmp.gt.f32.partialorder %v3382, 0.0
    %vm3407 = vcmp.gt.f32.partialorder %v3383, 0.0
    %vm3408 = vcmp.gt.f32.partialorder %v3384, 0.0
    %vm3409 = vcmp.gt.f32.partialorder %v3385, 0.0
    %vm3410 = vcmp.gt.f32.partialorder %v3386, 0.0
    %vm3411 = vcmp.gt.f32.partialorder %v3387, 0.0
    %vm3412 = vcmp.gt.f32.partialorder %v3388, 0.0
    %vm3413 = vcmp.gt.f32.partialorder %v3389, 0.0
    %vm3414 = vcmp.gt.f32.partialorder %v3390, 0.0
    %vm3415 = vcmp.gt.f32.partialorder %v3391, 0.0
    %vm3416 = vcmp.gt.f32.partialorder %v3392, 0.0
    %vm3417 = vcmp.gt.f32.partialorder %v3393, 0.0
    %v3418 = vmin.f32 %v3370, 0.0
    %v3419 = vmin.f32 %v3371, 0.0
    %v3420 = vmin.f32 %v3372, 0.0
    %v3421 = vmin.f32 %v3373, 0.0
    %v3422 = vmin.f32 %v3374, 0.0
    %v3423 = vmin.f32 %v3375, 0.0
    %v3424 = vmin.f32 %v3376, 0.0
    %v3425 = vmin.f32 %v3377, 0.0
    %v3426 = vmin.f32 %v3378, 0.0
    %v3427 = vmin.f32 %v3379, 0.0
    %v3428 = vmin.f32 %v3380, 0.0
    %v3429 = vmin.f32 %v3381, 0.0
    %v3430 = vmin.f32 %v3382, 0.0
    %v3431 = vmin.f32 %v3383, 0.0
    %v3432 = vmin.f32 %v3384, 0.0
    %v3433 = vmin.f32 %v3385, 0.0
    %v3434 = vmin.f32 %v3386, 0.0
    %v3435 = vmin.f32 %v3387, 0.0
    %v3436 = vmin.f32 %v3388, 0.0
    %v3437 = vmin.f32 %v3389, 0.0
    %v3438 = vmin.f32 %v3390, 0.0
    %v3439 = vmin.f32 %v3391, 0.0
    %v3440 = vmin.f32 %v3392, 0.0
    %v3441 = vmin.f32 %v3393, 0.0
    %v3442 = vmul.f32 %v3418, 1.442695
    %v3443 = vpow.pop %v3442
    %v3444 = vmul.f32 %v3419, 1.442695
    %v3445 = vpow.pop %v3444
    %v3446 = vmul.f32 %v3420, 1.442695
    %v3447 = vpow.pop %v3446
    %v3448 = vmul.f32 %v3421, 1.442695
    %v3449 = vpow.pop %v3448
    %v3450 = vmul.f32 %v3422, 1.442695
    %v3451 = vpow.pop %v3450
    %v3452 = vmul.f32 %v3423, 1.442695
    %v3453 = vpow.pop %v3452
    %v3454 = vmul.f32 %v3424, 1.442695
    %v3455 = vpow.pop %v3454
    %v3456 = vmul.f32 %v3425, 1.442695
    %v3457 = vpow.pop %v3456
    %v3458 = vmul.f32 %v3426, 1.442695
    %v3459 = vpow.pop %v3458
    %v3460 = vmul.f32 %v3427, 1.442695
    %v3461 = vpow.pop %v3460
    %v3462 = vmul.f32 %v3428, 1.442695
    %v3463 = vpow.pop %v3462
    %v3464 = vmul.f32 %v3429, 1.442695
    %v3465 = vpow.pop %v3464
    %v3466 = vmul.f32 %v3430, 1.442695
    %v3467 = vpow.pop %v3466
    %v3468 = vmul.f32 %v3431, 1.442695
    %v3469 = vpow.pop %v3468
    %v3470 = vmul.f32 %v3432, 1.442695
    %v3471 = vpow.pop %v3470
    %v3472 = vmul.f32 %v3433, 1.442695
    %v3473 = vpow.pop %v3472
    %v3474 = vmul.f32 %v3434, 1.442695
    %v3475 = vpow.pop %v3474
    %v3476 = vmul.f32 %v3435, 1.442695
    %v3477 = vpow.pop %v3476
    %v3478 = vmul.f32 %v3436, 1.442695
    %v3479 = vpow.pop %v3478
    %v3480 = vmul.f32 %v3437, 1.442695
    %v3481 = vpow.pop %v3480
    %v3482 = vmul.f32 %v3438, 1.442695
    %v3483 = vpow.pop %v3482
    %v3484 = vmul.f32 %v3439, 1.442695
    %v3485 = vpow.pop %v3484
    %v3486 = vmul.f32 %v3440, 1.442695
    %v3487 = vpow.pop %v3486
    %v3488 = vmul.f32 %v3441, 1.442695
    %v3489 = vpow.pop %v3488
    %v3490 = vsub.f32 %v3443, 1.0
    %v3491 = vsub.f32 %v3445, 1.0
    %v3492 = vsub.f32 %v3447, 1.0
    %v3493 = vsub.f32 %v3449, 1.0
    %v3494 = vsub.f32 %v3451, 1.0
    %v3495 = vsub.f32 %v3453, 1.0
    %v3496 = vsub.f32 %v3455, 1.0
    %v3497 = vsub.f32 %v3457, 1.0
    %v3498 = vsub.f32 %v3459, 1.0
    %v3499 = vsub.f32 %v3461, 1.0
    %v3500 = vsub.f32 %v3463, 1.0
    %v3501 = vsub.f32 %v3465, 1.0
    %v3502 = vsub.f32 %v3467, 1.0
    %v3503 = vsub.f32 %v3469, 1.0
    %v3504 = vsub.f32 %v3471, 1.0
    %v3505 = vsub.f32 %v3473, 1.0
    %v3506 = vsub.f32 %v3475, 1.0
    %v3507 = vsub.f32 %v3477, 1.0
    %v3508 = vsub.f32 %v3479, 1.0
    %v3509 = vsub.f32 %v3481, 1.0
    %v3510 = vsub.f32 %v3483, 1.0
    %v3511 = vsub.f32 %v3485, 1.0
    %v3512 = vsub.f32 %v3487, 1.0
    %v3513 = vsub.f32 %v3489, 1.0
    %v3514 = vsel %vm3394, %v3370, %v3490
    %v3515 = vsel %vm3395, %v3371, %v3491
    %v3516 = vsel %vm3396, %v3372, %v3492
    %v3517 = vsel %vm3397, %v3373, %v3493
    %v3518 = vsel %vm3398, %v3374, %v3494
    %v3519 = vsel %vm3399, %v3375, %v3495
    %v3520 = vsel %vm3400, %v3376, %v3496
    %v3521 = vsel %vm3401, %v3377, %v3497
    %v3522 = vsel %vm3402, %v3378, %v3498
    %v3523 = vsel %vm3403, %v3379, %v3499
    %v3524 = vsel %vm3404, %v3380, %v3500
    %v3525 = vsel %vm3405, %v3381, %v3501
    %v3526 = vsel %vm3406, %v3382, %v3502
    %v3527 = vsel %vm3407, %v3383, %v3503
    %v3528 = vsel %vm3408, %v3384, %v3504
    %v3529 = vsel %vm3409, %v3385, %v3505
    %v3530 = vsel %vm3410, %v3386, %v3506
    %v3531 = vsel %vm3411, %v3387, %v3507
    %v3532 = vsel %vm3412, %v3388, %v3508
    %v3533 = vsel %vm3413, %v3389, %v3509
    %v3534 = vsel %vm3414, %v3390, %v3510
    %v3535 = vsel %vm3415, %v3391, %v3511
    %v3536 = vsel %vm3416, %v3392, %v3512
    %v3537 = vsel %vm3417, %v3393, %v3513
    %s3538 = scalar_lea.vmem [#allocation6], 320
    %v3539 = vld [vmem:[%s3538] sm:$0xf]
    %v3540 = vld [vmem:[%s3538 + $0x4] sm:$0xf]
    %v3541 = vld [vmem:[%s3538 + $0x8] sm:$0xf]
    %v3542 = vld [vmem:[%s3538 + $0xc] sm:$0xf]
    %v3543 = vld [vmem:[%s3538 + $0x10] sm:$0xf]
    %v3544 = vld [vmem:[%s3538 + $0x14] sm:$0xf]
    %v3545 = vld [vmem:[%s3538 + $0x18] sm:$0xf]
    %v3546 = vld [vmem:[%s3538 + $0x1c] sm:$0xf]
    %v3547 = vpack.c.bf16 %v3517, %v3514
    %v3548 = vpack.c.bf16 %v3518, %v3515
    %v3549 = vpack.c.bf16 %v3519, %v3516
    %v3550 = vpack.c.bf16 %v3523, %v3520
    %v3551 = vpack.c.bf16 %v3524, %v3521
    %v3552 = vpack.c.bf16 %v3525, %v3522
    %v3553 = vpack.c.bf16 %v3529, %v3526
    %v3554 = vpack.c.bf16 %v3530, %v3527
    %v3555 = vpack.c.bf16 %v3531, %v3528
    %v3556 = vpack.c.bf16 %v3535, %v3532
    %v3557 = vpack.c.bf16 %v3536, %v3533
    %v3558 = vpack.c.bf16 %v3537, %v3534
    %3559 = vset.pattern.permute.xlu0 7
    %3560 = vperm.xlu0 %3559, %v149
    %v3561 = vpop.permute.xlu0 %3560
    %3563 = vset.pattern.permute.xlu0 7
    %3564 = vperm.xlu0 %3563, %v150
    %v3565 = vpop.permute.xlu0 %3564
    %3567 = vset.pattern.permute.xlu0 7
    %3568 = vperm.xlu0 %3567, %v151
    %v3569 = vpop.permute.xlu0 %3568
    %3571 = vset.pattern.permute.xlu0 7
    %3572 = vperm.xlu0 %3571, %v152
    %v3573 = vpop.permute.xlu0 %3572
    %3575 = vset.pattern.permute.xlu0 7
    %3576 = vperm.xlu0 %3575, %v153
    %v3577 = vpop.permute.xlu0 %3576
    %3579 = vset.pattern.permute.xlu0 7
    %3580 = vperm.xlu0 %3579, %v154
    %v3581 = vpop.permute.xlu0 %3580
    %3583 = vset.pattern.permute.xlu0 7
    %3584 = vperm.xlu0 %3583, %v155
    %v3585 = vpop.permute.xlu0 %3584
    %3587 = vset.pattern.permute.xlu0 7
    %3588 = vperm.xlu0 %3587, %v156
    %v3589 = vpop.permute.xlu0 %3588
    %v3599 = vunpack.c.l.b16 %v3539
    %v3600 = vunpack.c.l.b16 %v3540
    %v3601 = vunpack.c.l.b16 %v3541
    %v3602 = vunpack.c.l.b16 %v3542
    %v3603 = vunpack.c.l.b16 %v3543
    %v3604 = vunpack.c.l.b16 %v3544
    %v3605 = vunpack.c.l.b16 %v3545
    %v3606 = vunpack.c.l.b16 %v3546
    %v3607 = vpack.c.b16 %v3600, %v3599
    %v3608 = vpack.c.b16 %v3602, %v3601
    %v3609 = vpack.c.b16 %v3604, %v3603
    %v3610 = vpack.c.b16 %v3606, %v3605
    %v3612 = vsel %vm412, %v3607, 0
    %v3615 = vsel %vm412, %v3608, 0
    %v3618 = vsel %vm412, %v3609, 0
    %v3621 = vsel %vm412, %v3610, 0
    %3623 = vmatprep.subr.bf16.mxu0 %v3548
    %3624 = vmatpush1.bf16.msra.mxu0 %v3547
    %3625 = vmatprep.subr.bf16.mxu0 %v3551
    %3626 = vmatpush1.bf16.msra.mxu0 %v3550
    %3627 = vmatprep.subr.bf16.mxu0 %v3554
    %3628 = vmatpush1.bf16.msra.mxu0 %v3553
    %3629 = vmatprep.subr.bf16.mxu0 %v3557
    %3630 = vmatpush1.bf16.msra.mxu0 %v3556
    %3631 = vmatprep.subr.bf16.mxu0 0
    %3632 = vmatpush1.bf16.msra.mxu0 0
    %3633 = vmatprep.subr.bf16.mxu0 0
    %3634 = vmatpush1.bf16.msra.mxu0 0
    %3635 = vmatprep.subr.bf16.mxu0 0
    %3636 = vmatpush1.bf16.msra.mxu0 0
    %3637 = vmatprep.subr.bf16.mxu0 0
    %3638 = vmatpush1.bf16.msra.mxu0 0
    %3639 = vmatprep.subr.bf16.mxu0 0
    %3640 = vmatpush1.bf16.msra.mxu0 0
    %3641 = vmatprep.subr.bf16.mxu0 0
    %3642 = vmatpush1.bf16.msra.mxu0 0
    %3643 = vmatprep.subr.bf16.mxu0 0
    %3644 = vmatpush1.bf16.msra.mxu0 0
    %3645 = vmatprep.subr.bf16.mxu0 0
    %3646 = vmatpush1.bf16.msra.mxu0 0
    %3647 = vmatprep.subr.bf16.mxu0 0
    %3648 = vmatpush1.bf16.msra.mxu0 0
    %3649 = vmatprep.subr.bf16.mxu0 0
    %3650 = vmatpush1.bf16.msra.mxu0 0
    %3651 = vmatprep.subr.bf16.mxu0 0
    %3652 = vmatpush1.bf16.msra.mxu0 0
    %3653 = vmatprep.subr.bf16.mxu0 0
    %3654 = vmatpush1.bf16.msra.mxu0 0
    %3655 = vmatprep.mubr.bf16.mxu0 0
    %3656 = vmatmul.mubr.bf16.gmra.mrb[0].mxu0 %v3612
    %v3657 = vpop.f32.mrb[0].mxu0
    %v3658 = vadd.f32 %v3561, %v3657
    %v3659 = vpop.f32.mrb[0].mxu0
    %v3660 = vadd.f32 %v3561, %v3659
    %v3661 = vpop.f32.mrb[0].mxu0
    %v3662 = vadd.f32 %v3565, %v3661
    %v3663 = vpop.f32.mrb[0].mxu0
    %v3664 = vadd.f32 %v3565, %v3663
    %3665 = vmatprep.mubr.bf16.mxu0 0
    %3666 = vmatmul.mubr.bf16.gmra.mrb[0].mxu0 %v3615
    %v3667 = vpop.f32.mrb[0].mxu0
    %v3668 = vadd.f32 %v3569, %v3667
    %v3669 = vpop.f32.mrb[0].mxu0
    %v3670 = vadd.f32 %v3569, %v3669
    %v3671 = vpop.f32.mrb[0].mxu0
    %v3672 = vadd.f32 %v3573, %v3671
    %v3673 = vpop.f32.mrb[0].mxu0
    %v3674 = vadd.f32 %v3573, %v3673
    %3675 = vmatprep.mubr.bf16.mxu0 0
    %3676 = vmatmul.mubr.bf16.gmra.mrb[0].mxu0 %v3618
    %v3677 = vpop.f32.mrb[0].mxu0
    %v3678 = vadd.f32 %v3577, %v3677
    %v3679 = vpop.f32.mrb[0].mxu0
    %v3680 = vadd.f32 %v3577, %v3679
    %v3681 = vpop.f32.mrb[0].mxu0
    %v3682 = vadd.f32 %v3581, %v3681
    %v3683 = vpop.f32.mrb[0].mxu0
    %v3684 = vadd.f32 %v3581, %v3683
    %3685 = vmatprep.mubr.bf16.mxu0 0
    %3686 = vmatmul.mubr.bf16.gmra.mrb[0].mxu0 %v3621
    %v3687 = vpop.f32.mrb[0].mxu0
    %v3688 = vadd.f32 %v3585, %v3687
    %v3689 = vpop.f32.mrb[0].mxu0
    %v3690 = vadd.f32 %v3585, %v3689
    %v3691 = vpop.f32.mrb[0].mxu0
    %v3692 = vadd.f32 %v3589, %v3691
    %v3693 = vpop.f32.mrb[0].mxu0
    %v3694 = vadd.f32 %v3589, %v3693
    %3695 = vdwg.mxu0
    %3696 = vmatprep.subr.bf16.mxu0 0
    %3697 = vmatpush1.bf16.msra.mxu0 %v3549
    %3698 = vmatprep.subr.bf16.mxu0 0
    %3699 = vmatpush1.bf16.msra.mxu0 %v3552
    %3700 = vmatprep.subr.bf16.mxu0 0
    %3701 = vmatpush1.bf16.msra.mxu0 %v3555
    %3702 = vmatprep.subr.bf16.mxu0 0
    %3703 = vmatpush1.bf16.msra.mxu0 %v3558
    %3704 = vmatprep.subr.bf16.mxu0 0
    %3705 = vmatpush1.bf16.msra.mxu0 0
    %3706 = vmatprep.subr.bf16.mxu0 0
    %3707 = vmatpush1.bf16.msra.mxu0 0
    %3708 = vmatprep.subr.bf16.mxu0 0
    %3709 = vmatpush1.bf16.msra.mxu0 0
    %3710 = vmatprep.subr.bf16.mxu0 0
    %3711 = vmatpush1.bf16.msra.mxu0 0
    %3712 = vmatprep.subr.bf16.mxu0 0
    %3713 = vmatpush1.bf16.msra.mxu0 0
    %3714 = vmatprep.subr.bf16.mxu0 0
    %3715 = vmatpush1.bf16.msra.mxu0 0
    %3716 = vmatprep.subr.bf16.mxu0 0
    %3717 = vmatpush1.bf16.msra.mxu0 0
    %3718 = vmatprep.subr.bf16.mxu0 0
    %3719 = vmatpush1.bf16.msra.mxu0 0
    %3720 = vmatprep.subr.bf16.mxu0 0
    %3721 = vmatpush1.bf16.msra.mxu0 0
    %3722 = vmatprep.subr.bf16.mxu0 0
    %3723 = vmatpush1.bf16.msra.mxu0 0
    %3724 = vmatprep.subr.bf16.mxu0 0
    %3725 = vmatpush1.bf16.msra.mxu0 0
    %3726 = vmatprep.subr.bf16.mxu0 0
    %3727 = vmatpush1.bf16.msra.mxu0 0
    %3728 = vmatprep.mubr.bf16.mxu0 0
    %3729 = vmatmul.mubr.bf16.gmra.mrb[0].mxu0 %v3612
    %v3730 = vpop.f32.mrb[0].mxu0
    %v3731 = vadd.f32 %v3561, %v3730
    %v3732 = vpop.f32.mrb[0].mxu0
    %v3733 = vpop.f32.mrb[0].mxu0
    %v3734 = vadd.f32 %v3565, %v3733
    %v3735 = vpop.f32.mrb[0].mxu0
    %3736 = vmatprep.mubr.bf16.mxu0 0
    %3737 = vmatmul.mubr.bf16.gmra.mrb[0].mxu0 %v3615
    %v3738 = vpop.f32.mrb[0].mxu0
    %v3739 = vadd.f32 %v3569, %v3738
    %v3740 = vpop.f32.mrb[0].mxu0
    %v3741 = vpop.f32.mrb[0].mxu0
    %v3742 = vadd.f32 %v3573, %v3741
    %v3743 = vpop.f32.mrb[0].mxu0
    %3744 = vmatprep.mubr.bf16.mxu0 0
    %3745 = vmatmul.mubr.bf16.gmra.mrb[0].mxu0 %v3618
    %v3746 = vpop.f32.mrb[0].mxu0
    %v3747 = vadd.f32 %v3577, %v3746
    %v3748 = vpop.f32.mrb[0].mxu0
    %v3749 = vpop.f32.mrb[0].mxu0
    %v3750 = vadd.f32 %v3581, %v3749
    %v3751 = vpop.f32.mrb[0].mxu0
    %3752 = vmatprep.mubr.bf16.mxu0 0
    %3753 = vmatmul.mubr.bf16.gmra.mrb[0].mxu0 %v3621
    %v3754 = vpop.f32.mrb[0].mxu0
    %v3755 = vadd.f32 %v3585, %v3754
    %v3756 = vpop.f32.mrb[0].mxu0
    %v3757 = vpop.f32.mrb[0].mxu0
    %v3758 = vadd.f32 %v3589, %v3757
    %v3759 = vpop.f32.mrb[0].mxu0
    %3760 = vdwg.mxu0
    %vm3761 = vcmp.gt.f32.partialorder %v3658, 0.0
    %vm3762 = vcmp.gt.f32.partialorder %v3660, 0.0
    %vm3763 = vcmp.gt.f32.partialorder %v3731, 0.0
    %vm3764 = vcmp.gt.f32.partialorder %v3662, 0.0
    %vm3765 = vcmp.gt.f32.partialorder %v3664, 0.0
    %vm3766 = vcmp.gt.f32.partialorder %v3734, 0.0
    %vm3767 = vcmp.gt.f32.partialorder %v3668, 0.0
    %vm3768 = vcmp.gt.f32.partialorder %v3670, 0.0
    %vm3769 = vcmp.gt.f32.partialorder %v3739, 0.0
    %vm3770 = vcmp.gt.f32.partialorder %v3672, 0.0
    %vm3771 = vcmp.gt.f32.partialorder %v3674, 0.0
    %vm3772 = vcmp.gt.f32.partialorder %v3742, 0.0
    %vm3773 = vcmp.gt.f32.partialorder %v3678, 0.0
    %vm3774 = vcmp.gt.f32.partialorder %v3680, 0.0
    %vm3775 = vcmp.gt.f32.partialorder %v3747, 0.0
    %vm3776 = vcmp.gt.f32.partialorder %v3682, 0.0
    %vm3777 = vcmp.gt.f32.partialorder %v3684, 0.0
    %vm3778 = vcmp.gt.f32.partialorder %v3750, 0.0
    %vm3779 = vcmp.gt.f32.partialorder %v3688, 0.0
    %vm3780 = vcmp.gt.f32.partialorder %v3690, 0.0
    %vm3781 = vcmp.gt.f32.partialorder %v3755, 0.0
    %vm3782 = vcmp.gt.f32.partialorder %v3692, 0.0
    %vm3783 = vcmp.gt.f32.partialorder %v3694, 0.0
    %vm3784 = vcmp.gt.f32.partialorder %v3758, 0.0
    %v3785 = vmin.f32 %v3658, 0.0
    %v3786 = vmin.f32 %v3660, 0.0
    %v3787 = vmin.f32 %v3731, 0.0
    %v3788 = vmin.f32 %v3662, 0.0
    %v3789 = vmin.f32 %v3664, 0.0
    %v3790 = vmin.f32 %v3734, 0.0
    %v3791 = vmin.f32 %v3668, 0.0
    %v3792 = vmin.f32 %v3670, 0.0
    %v3793 = vmin.f32 %v3739, 0.0
    %v3794 = vmin.f32 %v3672, 0.0
    %v3795 = vmin.f32 %v3674, 0.0
    %v3796 = vmin.f32 %v3742, 0.0
    %v3797 = vmin.f32 %v3678, 0.0
    %v3798 = vmin.f32 %v3680, 0.0
    %v3799 = vmin.f32 %v3747, 0.0
    %v3800 = vmin.f32 %v3682, 0.0
    %v3801 = vmin.f32 %v3684, 0.0
    %v3802 = vmin.f32 %v3750, 0.0
    %v3803 = vmin.f32 %v3688, 0.0
    %v3804 = vmin.f32 %v3690, 0.0
    %v3805 = vmin.f32 %v3755, 0.0
    %v3806 = vmin.f32 %v3692, 0.0
    %v3807 = vmin.f32 %v3694, 0.0
    %v3808 = vmin.f32 %v3758, 0.0
    %v3809 = vmul.f32 %v3785, 1.442695
    %v3810 = vpow.pop %v3809
    %v3811 = vmul.f32 %v3786, 1.442695
    %v3812 = vpow.pop %v3811
    %v3813 = vmul.f32 %v3787, 1.442695
    %v3814 = vpow.pop %v3813
    %v3815 = vmul.f32 %v3788, 1.442695
    %v3816 = vpow.pop %v3815
    %v3817 = vmul.f32 %v3789, 1.442695
    %v3818 = vpow.pop %v3817
    %v3819 = vmul.f32 %v3790, 1.442695
    %v3820 = vpow.pop %v3819
    %v3821 = vmul.f32 %v3791, 1.442695
    %v3822 = vpow.pop %v3821
    %v3823 = vmul.f32 %v3792, 1.442695
    %v3824 = vpow.pop %v3823
    %v3825 = vmul.f32 %v3793, 1.442695
    %v3826 = vpow.pop %v3825
    %v3827 = vmul.f32 %v3794, 1.442695
    %v3828 = vpow.pop %v3827
    %v3829 = vmul.f32 %v3795, 1.442695
    %v3830 = vpow.pop %v3829
    %v3831 = vmul.f32 %v3796, 1.442695
    %v3832 = vpow.pop %v3831
    %v3833 = vmul.f32 %v3797, 1.442695
    %v3834 = vpow.pop %v3833
    %v3835 = vmul.f32 %v3798, 1.442695
    %v3836 = vpow.pop %v3835
    %v3837 = vmul.f32 %v3799, 1.442695
    %v3838 = vpow.pop %v3837
    %v3839 = vmul.f32 %v3800, 1.442695
    %v3840 = vpow.pop %v3839
    %v3841 = vmul.f32 %v3801, 1.442695
    %v3842 = vpow.pop %v3841
    %v3843 = vmul.f32 %v3802, 1.442695
    %v3844 = vpow.pop %v3843
    %v3845 = vmul.f32 %v3803, 1.442695
    %v3846 = vpow.pop %v3845
    %v3847 = vmul.f32 %v3804, 1.442695
    %v3848 = vpow.pop %v3847
    %v3849 = vmul.f32 %v3805, 1.442695
    %v3850 = vpow.pop %v3849
    %v3851 = vmul.f32 %v3806, 1.442695
    %v3852 = vpow.pop %v3851
    %v3853 = vmul.f32 %v3807, 1.442695
    %v3854 = vpow.pop %v3853
    %v3855 = vmul.f32 %v3808, 1.442695
    %v3856 = vpow.pop %v3855
    %v3857 = vsub.f32 %v3810, 1.0
    %v3858 = vsub.f32 %v3812, 1.0
    %v3859 = vsub.f32 %v3814, 1.0
    %v3860 = vsub.f32 %v3816, 1.0
    %v3861 = vsub.f32 %v3818, 1.0
    %v3862 = vsub.f32 %v3820, 1.0
    %v3863 = vsub.f32 %v3822, 1.0
    %v3864 = vsub.f32 %v3824, 1.0
    %v3865 = vsub.f32 %v3826, 1.0
    %v3866 = vsub.f32 %v3828, 1.0
    %v3867 = vsub.f32 %v3830, 1.0
    %v3868 = vsub.f32 %v3832, 1.0
    %v3869 = vsub.f32 %v3834, 1.0
    %v3870 = vsub.f32 %v3836, 1.0
    %v3871 = vsub.f32 %v3838, 1.0
    %v3872 = vsub.f32 %v3840, 1.0
    %v3873 = vsub.f32 %v3842, 1.0
    %v3874 = vsub.f32 %v3844, 1.0
    %v3875 = vsub.f32 %v3846, 1.0
    %v3876 = vsub.f32 %v3848, 1.0
    %v3877 = vsub.f32 %v3850, 1.0
    %v3878 = vsub.f32 %v3852, 1.0
    %v3879 = vsub.f32 %v3854, 1.0
    %v3880 = vsub.f32 %v3856, 1.0
    %v3881 = vsel %vm3761, %v3658, %v3857
    %v3882 = vsel %vm3762, %v3660, %v3858
    %v3883 = vsel %vm3763, %v3731, %v3859
    %v3884 = vsel %vm3764, %v3662, %v3860
    %v3885 = vsel %vm3765, %v3664, %v3861
    %v3886 = vsel %vm3766, %v3734, %v3862
    %v3887 = vsel %vm3767, %v3668, %v3863
    %v3888 = vsel %vm3768, %v3670, %v3864
    %v3889 = vsel %vm3769, %v3739, %v3865
    %v3890 = vsel %vm3770, %v3672, %v3866
    %v3891 = vsel %vm3771, %v3674, %v3867
    %v3892 = vsel %vm3772, %v3742, %v3868
    %v3893 = vsel %vm3773, %v3678, %v3869
    %v3894 = vsel %vm3774, %v3680, %v3870
    %v3895 = vsel %vm3775, %v3747, %v3871
    %v3896 = vsel %vm3776, %v3682, %v3872
    %v3897 = vsel %vm3777, %v3684, %v3873
    %v3898 = vsel %vm3778, %v3750, %v3874
    %v3899 = vsel %vm3779, %v3688, %v3875
    %v3900 = vsel %vm3780, %v3690, %v3876
    %v3901 = vsel %vm3781, %v3755, %v3877
    %v3902 = vsel %vm3782, %v3692, %v3878
    %v3903 = vsel %vm3783, %v3694, %v3879
    %v3904 = vsel %vm3784, %v3758, %v3880
    %v3905 = vmul.f32 %v3881, 0.999995
    %v3906 = vmul.f32 %v3882, 0.999995
    %v3907 = vmul.f32 %v3883, 0.999995
    %v3908 = vmul.f32 %v3884, 0.999995
    %v3909 = vmul.f32 %v3885, 0.999995
    %v3910 = vmul.f32 %v3886, 0.999995
    %v3911 = vmul.f32 %v3887, 0.999995
    %v3912 = vmul.f32 %v3888, 0.999995
    %v3913 = vmul.f32 %v3889, 0.999995
    %v3914 = vmul.f32 %v3890, 0.999995
    %v3915 = vmul.f32 %v3891, 0.999995
    %v3916 = vmul.f32 %v3892, 0.999995
    %v3917 = vmul.f32 %v3893, 0.999995
    %v3918 = vmul.f32 %v3894, 0.999995
    %v3919 = vmul.f32 %v3895, 0.999995
    %v3920 = vmul.f32 %v3896, 0.999995
    %v3921 = vmul.f32 %v3897, 0.999995
    %v3922 = vmul.f32 %v3898, 0.999995
    %v3923 = vmul.f32 %v3899, 0.999995
    %v3924 = vmul.f32 %v3900, 0.999995
    %v3925 = vmul.f32 %v3901, 0.999995
    %v3926 = vmul.f32 %v3902, 0.999995
    %v3927 = vmul.f32 %v3903, 0.999995
    %v3928 = vmul.f32 %v3904, 0.999995
    %s3929 = scalar_lea.vmem [#allocation6], 352
    %v3930 = vld [vmem:[%s3929] sm:$0xf]
    %v3931 = vpack.c.bf16 %v3908, %v3905
    %v3932 = vpack.c.bf16 %v3909, %v3906
    %v3933 = vpack.c.bf16 %v3910, %v3907
    %v3934 = vpack.c.bf16 %v3914, %v3911
    %v3935 = vpack.c.bf16 %v3915, %v3912
    %v3936 = vpack.c.bf16 %v3916, %v3913
    %v3937 = vld [vmem:[#allocation7] sm:$0x3]
    %3939 = vset.pattern.permute.xlu0 8
    %3940 = vperm.xlu0 %3939, %v3937
    %v3941 = vpop.permute.xlu0 %3940
    %vm3943 = vcmask 261120
    %v3945 = vsel %vm3943, %v3930, 0
    %3947 = vmatprep.subr.bf16.mxu0 %v3932
    %3948 = vmatpush1.bf16.msra.mxu0 %v3931
    %3949 = vmatprep.subr.bf16.mxu0 %v3935
    %3950 = vmatpush1.bf16.msra.mxu0 %v3934
    %3951 = vmatprep.subr.bf16.mxu0 0
    %3952 = vmatpush1.bf16.msra.mxu0 0
    %3953 = vmatprep.subr.bf16.mxu0 0
    %3954 = vmatpush1.bf16.msra.mxu0 0
    %3955 = vmatprep.subr.bf16.mxu0 0
    %3956 = vmatpush1.bf16.msra.mxu0 0
    %3957 = vmatprep.subr.bf16.mxu0 0
    %3958 = vmatpush1.bf16.msra.mxu0 0
    %3959 = vmatprep.subr.bf16.mxu0 0
    %3960 = vmatpush1.bf16.msra.mxu0 0
    %3961 = vmatprep.subr.bf16.mxu0 0
    %3962 = vmatpush1.bf16.msra.mxu0 0
    %3963 = vmatprep.subr.bf16.mxu0 0
    %3964 = vmatpush1.bf16.msra.mxu0 0
    %3965 = vmatprep.subr.bf16.mxu0 0
    %3966 = vmatpush1.bf16.msra.mxu0 0
    %3967 = vmatprep.subr.bf16.mxu0 0
    %3968 = vmatpush1.bf16.msra.mxu0 0
    %3969 = vmatprep.subr.bf16.mxu0 0
    %3970 = vmatpush1.bf16.msra.mxu0 0
    %3971 = vmatprep.subr.bf16.mxu0 0
    %3972 = vmatpush1.bf16.msra.mxu0 0
    %3973 = vmatprep.subr.bf16.mxu0 0
    %3974 = vmatpush1.bf16.msra.mxu0 0
    %3975 = vmatprep.subr.bf16.mxu0 0
    %3976 = vmatpush1.bf16.msra.mxu0 0
    %3977 = vmatprep.subr.bf16.mxu0 0
    %3978 = vmatpush1.bf16.msra.mxu0 0
    %3979 = vmatprep.mubr.bf16.mxu0 0
    %3980 = vmatmul.mubr.bf16.gmra.mrb[0].mxu0 %v3945
    %v3981 = vpop.f32.mrb[0].mxu0
    %v3982 = vadd.f32 %v3941, %v3981
    %v3983 = vpop.f32.mrb[0].mxu0
    %v3984 = vadd.f32 %v3941, %v3983
    %v3985 = vpop.f32.mrb[0].mxu0
    %v3986 = vpop.f32.mrb[0].mxu0
    %3987 = vdwg.mxu0
    %3988 = vmatprep.subr.bf16.mxu0 0
    %3989 = vmatpush1.bf16.msra.mxu0 %v3933
    %3990 = vmatprep.subr.bf16.mxu0 0
    %3991 = vmatpush1.bf16.msra.mxu0 %v3936
    %3992 = vmatprep.subr.bf16.mxu0 0
    %3993 = vmatpush1.bf16.msra.mxu0 0
    %3994 = vmatprep.subr.bf16.mxu0 0
    %3995 = vmatpush1.bf16.msra.mxu0 0
    %3996 = vmatprep.subr.bf16.mxu0 0
    %3997 = vmatpush1.bf16.msra.mxu0 0
    %3998 = vmatprep.subr.bf16.mxu0 0
    %3999 = vmatpush1.bf16.msra.mxu0 0
    %4000 = vmatprep.subr.bf16.mxu0 0
    %4001 = vmatpush1.bf16.msra.mxu0 0
    %4002 = vmatprep.subr.bf16.mxu0 0
    %4003 = vmatpush1.bf16.msra.mxu0 0
    %4004 = vmatprep.subr.bf16.mxu0 0
    %4005 = vmatpush1.bf16.msra.mxu0 0
    %4006 = vmatprep.subr.bf16.mxu0 0
    %4007 = vmatpush1.bf16.msra.mxu0 0
    %4008 = vmatprep.subr.bf16.mxu0 0
    %4009 = vmatpush1.bf16.msra.mxu0 0
    %4010 = vmatprep.subr.bf16.mxu0 0
    %4011 = vmatpush1.bf16.msra.mxu0 0
    %4012 = vmatprep.subr.bf16.mxu0 0
    %4013 = vmatpush1.bf16.msra.mxu0 0
    %4014 = vmatprep.subr.bf16.mxu0 0
    %4015 = vmatpush1.bf16.msra.mxu0 0
    %4016 = vmatprep.subr.bf16.mxu0 0
    %4017 = vmatpush1.bf16.msra.mxu0 0
    %4018 = vmatprep.subr.bf16.mxu0 0
    %4019 = vmatpush1.bf16.msra.mxu0 0
    %4020 = vmatprep.mubr.bf16.mxu0 0
    %4021 = vmatmul.mubr.bf16.gmra.mrb[0].mxu0 %v3945
    %v4022 = vpop.f32.mrb[0].mxu0
    %v4023 = vadd.f32 %v3941, %v4022
    %v4024 = vpop.f32.mrb[0].mxu0
    %v4025 = vpop.f32.mrb[0].mxu0
    %v4026 = vpop.f32.mrb[0].mxu0
    %4027 = vdwg.mxu0
    %v4031 = vcombine.low %v3982, %v3984
    %v4033 = vunpack.c.l.s4 1983009808
    %v4034 = vunpack.c.0.s8 %v4033
    %v4035 = vlaneseq
    %v4036 = vshrl.u32 %v4035, 7
    %v4037 = vsub.s32 %v4034, %v4036
    %v4038 = vrot.slane %v4031, %v4037
    %v4040 = vunpack.c.l.s4 1983009808
    %v4041 = vunpack.c.0.s8 %v4040
    %v4042 = vlaneseq
    %v4043 = vshrl.u32 %v4042, 7
    %v4044 = vsub.s32 %v4041, %v4043
    %v4045 = vrot.slane %v4023, %v4044
    %v4046 = vcombine.low %v4038, %v4045
    %vm4048 = vcmask 1041408
    %vm4049 = vcmask 1043458
    %vm4050 = vmor %vm4049, %vm4048
    %vm4051 = vcmask 881668
    %vm4052 = vmor %vm4051, %vm4050
    %4053 = vst.msk [vmem:[%s5] sm:$0x3f] %vm4052, %v4046
    %4054 = vst [vmem:[%s7] sm:$0xff] %v3917
    %4055 = vst [vmem:[%s7 + $0x8] sm:$0xff] %v3918
    %vm4056 = vcmask 883712
    %4057 = vst.msk [vmem:[%s7 + $0x10] sm:$0xff] %vm4056, %v3919
    %4058 = vst [vmem:[%s7 + $0x18] sm:$0xff] %v3920
    %4059 = vst [vmem:[%s7 + $0x20] sm:$0xff] %v3921
    %4060 = vst.msk [vmem:[%s7 + $0x28] sm:$0xff] %vm4056, %v3922
    %4061 = vst [vmem:[%s7 + $0x30] sm:$0xff] %v3923
    %4062 = vst [vmem:[%s7 + $0x38] sm:$0xff] %v3924
    %4063 = vst.msk [vmem:[%s7 + $0x40] sm:$0xff] %vm4056, %v3925
    %4064 = vst [vmem:[%s7 + $0x48] sm:$0xff] %v3926
    %4065 = vst [vmem:[%s7 + $0x50] sm:$0xff] %v3927
    %4066 = vst.msk [vmem:[%s7 + $0x58] sm:$0xff] %vm4056, %v3928
    %v4067 = vrot.slane %v3982, 1
    %v4068 = vrot.slane %v3984, 1
    %v4069 = vrot.slane %v4023, 1
    %v4073 = vsub.f32 %v3982, %v4067
    %v4074 = vsub.f32 %v3984, %v4068
    %v4075 = vsub.f32 %v4023, %v4069
    %v4076 = vmul.f32 %v4073, 1.442695
    %v4077 = vpow.pop %v4076
    %v4078 = vmul.f32 %v4074, 1.442695
    %v4079 = vpow.pop %v4078
    %v4080 = vmul.f32 %v4075, 1.442695
    %v4081 = vpow.pop %v4080
    %v4082 = vadd.f32 %v4077, 1.0
    %v4083 = vadd.f32 %v4079, 1.0
    %v4084 = vadd.f32 %v4081, 1.0
    %v4085 = vrcp.pop %v4082
    %v4086 = vrcp.pop %v4083
    %v4087 = vrcp.pop %v4084
    %v4088 = vsub.f32 1.0, %v4085
    %v4089 = vsub.f32 1.0, %v4086
    %v4090 = vsub.f32 1.0, %v4087
    %v4091 = vsel %vm604, %v148, 0
    %4093 = vmatprep.subr.bf16.mxu0 %v587
    %4094 = vmatpush1.bf16.msra.mxu0 %v586
    %4095 = vmatprep.subr.bf16.mxu0 %v622
    %4096 = vmatpush1.bf16.msra.mxu0 %v619
    %4097 = vmatprep.subr.bf16.mxu0 0
    %4098 = vmatpush1.bf16.msra.mxu0 0
    %4099 = vmatprep.subr.bf16.mxu0 0
    %4100 = vmatpush1.bf16.msra.mxu0 0
    %4101 = vmatprep.subr.bf16.mxu0 0
    %4102 = vmatpush1.bf16.msra.mxu0 0
    %4103 = vmatprep.subr.bf16.mxu0 0
    %4104 = vmatpush1.bf16.msra.mxu0 0
    %4105 = vmatprep.subr.bf16.mxu0 0
    %4106 = vmatpush1.bf16.msra.mxu0 0
    %4107 = vmatprep.subr.bf16.mxu0 0
    %4108 = vmatpush1.bf16.msra.mxu0 0
    %4109 = vmatprep.subr.bf16.mxu0 0
    %4110 = vmatpush1.bf16.msra.mxu0 0
    %4111 = vmatprep.subr.bf16.mxu0 0
    %4112 = vmatpush1.bf16.msra.mxu0 0
    %4113 = vmatprep.subr.bf16.mxu0 0
    %4114 = vmatpush1.bf16.msra.mxu0 0
    %4115 = vmatprep.subr.bf16.mxu0 0
    %4116 = vmatpush1.bf16.msra.mxu0 0
    %4117 = vmatprep.subr.bf16.mxu0 0
    %4118 = vmatpush1.bf16.msra.mxu0 0
    %4119 = vmatprep.subr.bf16.mxu0 0
    %4120 = vmatpush1.bf16.msra.mxu0 0
    %4121 = vmatprep.subr.bf16.mxu0 0
    %4122 = vmatpush1.bf16.msra.mxu0 0
    %4123 = vmatprep.subr.bf16.mxu0 0
    %4124 = vmatpush1.bf16.msra.mxu0 0
    %4125 = vmatprep.mubr.bf16.mxu0 0
    %4126 = vmatmul.mubr.bf16.gmra.mrb[0].mxu0 %v4091
    %v4127 = vpop.f32.mrb[0].mxu0
    %v4128 = vadd.f32 0.0, %v4127
    %v4129 = vpop.f32.mrb[0].mxu0
    %v4130 = vadd.f32 0.0, %v4129
    %v4131 = vpop.f32.mrb[0].mxu0
    %v4132 = vpop.f32.mrb[0].mxu0
    %4133 = vdwg.mxu0
    %4134 = vmatprep.subr.bf16.mxu0 %v589
    %4135 = vmatpush1.bf16.msra.mxu0 %v588
    %4136 = vmatprep.subr.bf16.mxu0 %v628
    %4137 = vmatpush1.bf16.msra.mxu0 %v625
    %4138 = vmatprep.subr.bf16.mxu0 0
    %4139 = vmatpush1.bf16.msra.mxu0 0
    %4140 = vmatprep.subr.bf16.mxu0 0
    %4141 = vmatpush1.bf16.msra.mxu0 0
    %4142 = vmatprep.subr.bf16.mxu0 0
    %4143 = vmatpush1.bf16.msra.mxu0 0
    %4144 = vmatprep.subr.bf16.mxu0 0
    %4145 = vmatpush1.bf16.msra.mxu0 0
    %4146 = vmatprep.subr.bf16.mxu0 0
    %4147 = vmatpush1.bf16.msra.mxu0 0
    %4148 = vmatprep.subr.bf16.mxu0 0
    %4149 = vmatpush1.bf16.msra.mxu0 0
    %4150 = vmatprep.subr.bf16.mxu0 0
    %4151 = vmatpush1.bf16.msra.mxu0 0
    %4152 = vmatprep.subr.bf16.mxu0 0
    %4153 = vmatpush1.bf16.msra.mxu0 0
    %4154 = vmatprep.subr.bf16.mxu0 0
    %4155 = vmatpush1.bf16.msra.mxu0 0
    %4156 = vmatprep.subr.bf16.mxu0 0
    %4157 = vmatpush1.bf16.msra.mxu0 0
    %4158 = vmatprep.subr.bf16.mxu0 0
    %4159 = vmatpush1.bf16.msra.mxu0 0
    %4160 = vmatprep.subr.bf16.mxu0 0
    %4161 = vmatpush1.bf16.msra.mxu0 0
    %4162 = vmatprep.subr.bf16.mxu0 0
    %4163 = vmatpush1.bf16.msra.mxu0 0
    %4164 = vmatprep.subr.bf16.mxu0 0
    %4165 = vmatpush1.bf16.msra.mxu0 0
    %4166 = vmatprep.mubr.bf16.mxu0 0
    %4167 = vmatmul.mubr.bf16.gmra.mrb[0].mxu0 %v4091
    %v4168 = vpop.f32.mrb[0].mxu0
    %v4169 = vadd.f32 0.0, %v4168
    %v4170 = vpop.f32.mrb[0].mxu0
    %v4171 = vadd.f32 0.0, %v4170
    %v4172 = vpop.f32.mrb[0].mxu0
    %v4173 = vpop.f32.mrb[0].mxu0
    %4174 = vdwg.mxu0
    %4175 = vmatprep.subr.bf16.mxu0 %v591
    %4176 = vmatpush1.bf16.msra.mxu0 %v590
    %4177 = vmatprep.subr.bf16.mxu0 %v634
    %4178 = vmatpush1.bf16.msra.mxu0 %v631
    %4179 = vmatprep.subr.bf16.mxu0 0
    %4180 = vmatpush1.bf16.msra.mxu0 0
    %4181 = vmatprep.subr.bf16.mxu0 0
    %4182 = vmatpush1.bf16.msra.mxu0 0
    %4183 = vmatprep.subr.bf16.mxu0 0
    %4184 = vmatpush1.bf16.msra.mxu0 0
    %4185 = vmatprep.subr.bf16.mxu0 0
    %4186 = vmatpush1.bf16.msra.mxu0 0
    %4187 = vmatprep.subr.bf16.mxu0 0
    %4188 = vmatpush1.bf16.msra.mxu0 0
    %4189 = vmatprep.subr.bf16.mxu0 0
    %4190 = vmatpush1.bf16.msra.mxu0 0
    %4191 = vmatprep.subr.bf16.mxu0 0
    %4192 = vmatpush1.bf16.msra.mxu0 0
    %4193 = vmatprep.subr.bf16.mxu0 0
    %4194 = vmatpush1.bf16.msra.mxu0 0
    %4195 = vmatprep.subr.bf16.mxu0 0
    %4196 = vmatpush1.bf16.msra.mxu0 0
    %4197 = vmatprep.subr.bf16.mxu0 0
    %4198 = vmatpush1.bf16.msra.mxu0 0
    %4199 = vmatprep.subr.bf16.mxu0 0
    %4200 = vmatpush1.bf16.msra.mxu0 0
    %4201 = vmatprep.subr.bf16.mxu0 0
    %4202 = vmatpush1.bf16.msra.mxu0 0
    %4203 = vmatprep.subr.bf16.mxu0 0
    %4204 = vmatpush1.bf16.msra.mxu0 0
    %4205 = vmatprep.subr.bf16.mxu0 0
    %4206 = vmatpush1.bf16.msra.mxu0 0
    %4207 = vmatprep.mubr.bf16.mxu0 0
    %4208 = vmatmul.mubr.bf16.gmra.mrb[0].mxu0 %v4091
    %v4209 = vpop.f32.mrb[0].mxu0
    %v4210 = vadd.f32 0.0, %v4209
    %v4211 = vpop.f32.mrb[0].mxu0
    %v4212 = vadd.f32 0.0, %v4211
    %v4213 = vpop.f32.mrb[0].mxu0
    %v4214 = vpop.f32.mrb[0].mxu0
    %4215 = vdwg.mxu0
    %s4216 = scalar_lea.vmem [#allocation6], 384
    %v4217 = vld [vmem:[%s4216] sm:$0xf]
    %v4218 = vld [vmem:[%s4216 + $0x4] sm:$0xf]
    %v4219 = vld [vmem:[%s4216 + $0x8] sm:$0xf]
    %v4220 = vld [vmem:[%s4216 + $0xc] sm:$0xf]
    %v4221 = vld [vmem:[%s4216 + $0x10] sm:$0xf]
    %v4222 = vld [vmem:[%s4216 + $0x14] sm:$0xf]
    %v4223 = vld [vmem:[%s4216 + $0x18] sm:$0xf]
    %v4224 = vld [vmem:[%s4216 + $0x1c] sm:$0xf]
    %v4225 = vpack.c.bf16 %v4128, %v4128
    %v4226 = vpack.c.bf16 %v4130, %v4130
    %v4227 = vpack.c.bf16 %v4169, %v4169
    %s4228 = scalar_lea.vmem [#allocation6], 416
    %v4229 = vld [vmem:[%s4228] sm:$0xf]
    %v4230 = vld [vmem:[%s4228 + $0x4] sm:$0xf]
    %v4231 = vld [vmem:[%s4228 + $0x8] sm:$0xf]
    %v4232 = vld [vmem:[%s4228 + $0xc] sm:$0xf]
    %v4233 = vld [vmem:[%s4228 + $0x10] sm:$0xf]
    %v4234 = vld [vmem:[%s4228 + $0x14] sm:$0xf]
    %v4235 = vld [vmem:[%s4228 + $0x18] sm:$0xf]
    %v4236 = vld [vmem:[%s4228 + $0x1c] sm:$0xf]
    %v4237 = vpack.c.bf16 %v4171, %v4171
    %v4238 = vpack.c.bf16 %v4210, %v4210
    %v4239 = vpack.c.bf16 %v4212, %v4212
    %v4248 = vunpack.c.l.b16 %v4229
    %v4249 = vunpack.c.l.b16 %v4230
    %v4250 = vunpack.c.l.b16 %v4231
    %v4251 = vunpack.c.l.b16 %v4232
    %v4252 = vunpack.c.l.b16 %v4233
    %v4253 = vunpack.c.l.b16 %v4234
    %v4254 = vunpack.c.l.b16 %v4235
    %v4255 = vunpack.c.l.b16 %v4236
    %v4256 = vpack.c.b16 %v4249, %v4248
    %v4257 = vpack.c.b16 %v4251, %v4250
    %v4258 = vpack.c.b16 %v4253, %v4252
    %v4259 = vpack.c.b16 %v4255, %v4254
    %v4261 = vsel %vm217, %v4256, 0
    %v4264 = vsel %vm217, %v4257, 0
    %v4267 = vsel %vm217, %v4258, 0
    %v4270 = vsel %vm217, %v4259, 0
    %v4273 = vsel %vm230, %v4237, 0
    %v4276 = vsel %vm230, %v4238, 0
    %v4279 = vsel %vm230, %v4239, 0
    %4281 = vmatprep.subr.bf16.mxu0 %v4276
    %4282 = vmatpush1.bf16.msra.mxu0 %v4273
    %4283 = vmatprep.subr.bf16.mxu0 0
    %4284 = vmatpush1.bf16.msra.mxu0 0
    %4285 = vmatprep.subr.bf16.mxu0 0
    %4286 = vmatpush1.bf16.msra.mxu0 0
    %4287 = vmatprep.subr.bf16.mxu0 0
    %4288 = vmatpush1.bf16.msra.mxu0 0
    %4289 = vmatprep.subr.bf16.mxu0 0
    %4290 = vmatpush1.bf16.msra.mxu0 0
    %4291 = vmatprep.subr.bf16.mxu0 0
    %4292 = vmatpush1.bf16.msra.mxu0 0
    %4293 = vmatprep.subr.bf16.mxu0 0
    %4294 = vmatpush1.bf16.msra.mxu0 0
    %4295 = vmatprep.subr.bf16.mxu0 0
    %4296 = vmatpush1.bf16.msra.mxu0 0
    %4297 = vmatprep.subr.bf16.mxu0 0
    %4298 = vmatpush1.bf16.msra.mxu0 0
    %4299 = vmatprep.subr.bf16.mxu0 0
    %4300 = vmatpush1.bf16.msra.mxu0 0
    %4301 = vmatprep.subr.bf16.mxu0 0
    %4302 = vmatpush1.bf16.msra.mxu0 0
    %4303 = vmatprep.subr.bf16.mxu0 0
    %4304 = vmatpush1.bf16.msra.mxu0 0
    %4305 = vmatprep.subr.bf16.mxu0 0
    %4306 = vmatpush1.bf16.msra.mxu0 0
    %4307 = vmatprep.subr.bf16.mxu0 0
    %4308 = vmatpush1.bf16.msra.mxu0 0
    %4309 = vmatprep.subr.bf16.mxu0 0
    %4310 = vmatpush1.bf16.msra.mxu0 0
    %4311 = vmatprep.subr.bf16.mxu0 0
    %4312 = vmatpush1.bf16.msra.mxu0 0
    %4313 = vmatprep.mubr.bf16.mxu0 0
    %4314 = vmatmul.mubr.bf16.gmra.mrb[0].mxu0 %v4261
    %v4315 = vpop.f32.mrb[0].mxu0
    %v4316 = vadd.f32 0.0, %v4315
    %v4317 = vpop.f32.mrb[0].mxu0
    %v4318 = vadd.f32 0.0, %v4317
    %v4319 = vpop.f32.mrb[0].mxu0
    %v4320 = vadd.f32 0.0, %v4319
    %v4321 = vpop.f32.mrb[0].mxu0
    %v4322 = vadd.f32 0.0, %v4321
    %4323 = vmatprep.mubr.bf16.mxu0 0
    %4324 = vmatmul.mubr.bf16.gmra.mrb[0].mxu0 %v4264
    %v4325 = vpop.f32.mrb[0].mxu0
    %v4326 = vadd.f32 0.0, %v4325
    %v4327 = vpop.f32.mrb[0].mxu0
    %v4328 = vadd.f32 0.0, %v4327
    %v4329 = vpop.f32.mrb[0].mxu0
    %v4330 = vadd.f32 0.0, %v4329
    %v4331 = vpop.f32.mrb[0].mxu0
    %v4332 = vadd.f32 0.0, %v4331
    %4333 = vmatprep.mubr.bf16.mxu0 0
    %4334 = vmatmul.mubr.bf16.gmra.mrb[0].mxu0 %v4267
    %v4335 = vpop.f32.mrb[0].mxu0
    %v4336 = vadd.f32 0.0, %v4335
    %v4337 = vpop.f32.mrb[0].mxu0
    %v4338 = vadd.f32 0.0, %v4337
    %v4339 = vpop.f32.mrb[0].mxu0
    %v4340 = vadd.f32 0.0, %v4339
    %v4341 = vpop.f32.mrb[0].mxu0
    %v4342 = vadd.f32 0.0, %v4341
    %4343 = vmatprep.mubr.bf16.mxu0 0
    %4344 = vmatmul.mubr.bf16.gmra.mrb[0].mxu0 %v4270
    %v4345 = vpop.f32.mrb[0].mxu0
    %v4346 = vadd.f32 0.0, %v4345
    %v4347 = vpop.f32.mrb[0].mxu0
    %v4348 = vadd.f32 0.0, %v4347
    %v4349 = vpop.f32.mrb[0].mxu0
    %v4350 = vadd.f32 0.0, %v4349
    %v4351 = vpop.f32.mrb[0].mxu0
    %v4352 = vadd.f32 0.0, %v4351
    %4353 = vdwg.mxu0
    %4354 = vmatprep.subr.bf16.mxu0 0
    %4355 = vmatpush1.bf16.msra.mxu0 %v4279
    %4356 = vmatprep.subr.bf16.mxu0 0
    %4357 = vmatpush1.bf16.msra.mxu0 0
    %4358 = vmatprep.subr.bf16.mxu0 0
    %4359 = vmatpush1.bf16.msra.mxu0 0
    %4360 = vmatprep.subr.bf16.mxu0 0
    %4361 = vmatpush1.bf16.msra.mxu0 0
    %4362 = vmatprep.subr.bf16.mxu0 0
    %4363 = vmatpush1.bf16.msra.mxu0 0
    %4364 = vmatprep.subr.bf16.mxu0 0
    %4365 = vmatpush1.bf16.msra.mxu0 0
    %4366 = vmatprep.subr.bf16.mxu0 0
    %4367 = vmatpush1.bf16.msra.mxu0 0
    %4368 = vmatprep.subr.bf16.mxu0 0
    %4369 = vmatpush1.bf16.msra.mxu0 0
    %4370 = vmatprep.subr.bf16.mxu0 0
    %4371 = vmatpush1.bf16.msra.mxu0 0
    %4372 = vmatprep.subr.bf16.mxu0 0
    %4373 = vmatpush1.bf16.msra.mxu0 0
    %4374 = vmatprep.subr.bf16.mxu0 0
    %4375 = vmatpush1.bf16.msra.mxu0 0
    %4376 = vmatprep.subr.bf16.mxu0 0
    %4377 = vmatpush1.bf16.msra.mxu0 0
    %4378 = vmatprep.subr.bf16.mxu0 0
    %4379 = vmatpush1.bf16.msra.mxu0 0
    %4380 = vmatprep.subr.bf16.mxu0 0
    %4381 = vmatpush1.bf16.msra.mxu0 0
    %4382 = vmatprep.subr.bf16.mxu0 0
    %4383 = vmatpush1.bf16.msra.mxu0 0
    %4384 = vmatprep.subr.bf16.mxu0 0
    %4385 = vmatpush1.bf16.msra.mxu0 0
    %4386 = vmatprep.mubr.bf16.mxu0 0
    %4387 = vmatmul.mubr.bf16.gmra.mrb[0].mxu0 %v4261
    %v4388 = vpop.f32.mrb[0].mxu0
    %v4389 = vadd.f32 0.0, %v4388
    %v4390 = vpop.f32.mrb[0].mxu0
    %v4391 = vpop.f32.mrb[0].mxu0
    %v4392 = vadd.f32 0.0, %v4391
    %v4393 = vpop.f32.mrb[0].mxu0
    %4394 = vmatprep.mubr.bf16.mxu0 0
    %4395 = vmatmul.mubr.bf16.gmra.mrb[0].mxu0 %v4264
    %v4396 = vpop.f32.mrb[0].mxu0
    %v4397 = vadd.f32 0.0, %v4396
    %v4398 = vpop.f32.mrb[0].mxu0
    %v4399 = vpop.f32.mrb[0].mxu0
    %v4400 = vadd.f32 0.0, %v4399
    %v4401 = vpop.f32.mrb[0].mxu0
    %4402 = vmatprep.mubr.bf16.mxu0 0
    %4403 = vmatmul.mubr.bf16.gmra.mrb[0].mxu0 %v4267
    %v4404 = vpop.f32.mrb[0].mxu0
    %v4405 = vadd.f32 0.0, %v4404
    %v4406 = vpop.f32.mrb[0].mxu0
    %v4407 = vpop.f32.mrb[0].mxu0
    %v4408 = vadd.f32 0.0, %v4407
    %v4409 = vpop.f32.mrb[0].mxu0
    %4410 = vmatprep.mubr.bf16.mxu0 0
    %4411 = vmatmul.mubr.bf16.gmra.mrb[0].mxu0 %v4270
    %v4412 = vpop.f32.mrb[0].mxu0
    %v4413 = vadd.f32 0.0, %v4412
    %v4414 = vpop.f32.mrb[0].mxu0
    %v4415 = vpop.f32.mrb[0].mxu0
    %v4416 = vadd.f32 0.0, %v4415
    %v4417 = vpop.f32.mrb[0].mxu0
    %4418 = vdwg.mxu0
    %v4427 = vunpack.c.l.b16 %v4217
    %v4428 = vunpack.c.l.b16 %v4218
    %v4429 = vunpack.c.l.b16 %v4219
    %v4430 = vunpack.c.l.b16 %v4220
    %v4431 = vunpack.c.l.b16 %v4221
    %v4432 = vunpack.c.l.b16 %v4222
    %v4433 = vunpack.c.l.b16 %v4223
    %v4434 = vunpack.c.l.b16 %v4224
    %v4435 = vpack.c.b16 %v4428, %v4427
    %v4436 = vpack.c.b16 %v4430, %v4429
    %v4437 = vpack.c.b16 %v4432, %v4431
    %v4438 = vpack.c.b16 %v4434, %v4433
    %v4440 = vsel %vm217, %v4435, 0
    %v4443 = vsel %vm217, %v4436, 0
    %v4446 = vsel %vm217, %v4437, 0
    %v4449 = vsel %vm217, %v4438, 0
    %v4452 = vsel %vm230, %v4225, 0
    %v4455 = vsel %vm230, %v4226, 0
    %v4458 = vsel %vm230, %v4227, 0
    %4460 = vmatprep.subr.bf16.mxu0 %v4455
    %4461 = vmatpush1.bf16.msra.mxu0 %v4452
    %4462 = vmatprep.subr.bf16.mxu0 0
    %4463 = vmatpush1.bf16.msra.mxu0 0
    %4464 = vmatprep.subr.bf16.mxu0 0
    %4465 = vmatpush1.bf16.msra.mxu0 0
    %4466 = vmatprep.subr.bf16.mxu0 0
    %4467 = vmatpush1.bf16.msra.mxu0 0
    %4468 = vmatprep.subr.bf16.mxu0 0
    %4469 = vmatpush1.bf16.msra.mxu0 0
    %4470 = vmatprep.subr.bf16.mxu0 0
    %4471 = vmatpush1.bf16.msra.mxu0 0
    %4472 = vmatprep.subr.bf16.mxu0 0
    %4473 = vmatpush1.bf16.msra.mxu0 0
    %4474 = vmatprep.subr.bf16.mxu0 0
    %4475 = vmatpush1.bf16.msra.mxu0 0
    %4476 = vmatprep.subr.bf16.mxu0 0
    %4477 = vmatpush1.bf16.msra.mxu0 0
    %4478 = vmatprep.subr.bf16.mxu0 0
    %4479 = vmatpush1.bf16.msra.mxu0 0
    %4480 = vmatprep.subr.bf16.mxu0 0
    %4481 = vmatpush1.bf16.msra.mxu0 0
    %4482 = vmatprep.subr.bf16.mxu0 0
    %4483 = vmatpush1.bf16.msra.mxu0 0
    %4484 = vmatprep.subr.bf16.mxu0 0
    %4485 = vmatpush1.bf16.msra.mxu0 0
    %4486 = vmatprep.subr.bf16.mxu0 0
    %4487 = vmatpush1.bf16.msra.mxu0 0
    %4488 = vmatprep.subr.bf16.mxu0 0
    %4489 = vmatpush1.bf16.msra.mxu0 0
    %4490 = vmatprep.subr.bf16.mxu0 0
    %4491 = vmatpush1.bf16.msra.mxu0 0
    %4492 = vmatprep.mubr.bf16.mxu0 0
    %4493 = vmatmul.mubr.bf16.gmra.mrb[0].mxu0 %v4440
    %v4494 = vpop.f32.mrb[0].mxu0
    %v4495 = vadd.f32 %v4316, %v4494
    %v4496 = vpop.f32.mrb[0].mxu0
    %v4497 = vadd.f32 %v4318, %v4496
    %v4498 = vpop.f32.mrb[0].mxu0
    %v4499 = vadd.f32 %v4320, %v4498
    %v4500 = vpop.f32.mrb[0].mxu0
    %v4501 = vadd.f32 %v4322, %v4500
    %4502 = vmatprep.mubr.bf16.mxu0 0
    %4503 = vmatmul.mubr.bf16.gmra.mrb[0].mxu0 %v4443
    %v4504 = vpop.f32.mrb[0].mxu0
    %v4505 = vadd.f32 %v4326, %v4504
    %v4506 = vpop.f32.mrb[0].mxu0
    %v4507 = vadd.f32 %v4328, %v4506
    %v4508 = vpop.f32.mrb[0].mxu0
    %v4509 = vadd.f32 %v4330, %v4508
    %v4510 = vpop.f32.mrb[0].mxu0
    %v4511 = vadd.f32 %v4332, %v4510
    %4512 = vmatprep.mubr.bf16.mxu0 0
    %4513 = vmatmul.mubr.bf16.gmra.mrb[0].mxu0 %v4446
    %v4514 = vpop.f32.mrb[0].mxu0
    %v4515 = vadd.f32 %v4336, %v4514
    %v4516 = vpop.f32.mrb[0].mxu0
    %v4517 = vadd.f32 %v4338, %v4516
    %v4518 = vpop.f32.mrb[0].mxu0
    %v4519 = vadd.f32 %v4340, %v4518
    %v4520 = vpop.f32.mrb[0].mxu0
    %v4521 = vadd.f32 %v4342, %v4520
    %4522 = vmatprep.mubr.bf16.mxu0 0
    %4523 = vmatmul.mubr.bf16.gmra.mrb[0].mxu0 %v4449
    %v4524 = vpop.f32.mrb[0].mxu0
    %v4525 = vadd.f32 %v4346, %v4524
    %v4526 = vpop.f32.mrb[0].mxu0
    %v4527 = vadd.f32 %v4348, %v4526
    %v4528 = vpop.f32.mrb[0].mxu0
    %v4529 = vadd.f32 %v4350, %v4528
    %v4530 = vpop.f32.mrb[0].mxu0
    %v4531 = vadd.f32 %v4352, %v4530
    %4532 = vdwg.mxu0
    %4533 = vmatprep.subr.bf16.mxu0 0
    %4534 = vmatpush1.bf16.msra.mxu0 %v4458
    %4535 = vmatprep.subr.bf16.mxu0 0
    %4536 = vmatpush1.bf16.msra.mxu0 0
    %4537 = vmatprep.subr.bf16.mxu0 0
    %4538 = vmatpush1.bf16.msra.mxu0 0
    %4539 = vmatprep.subr.bf16.mxu0 0
    %4540 = vmatpush1.bf16.msra.mxu0 0
    %4541 = vmatprep.subr.bf16.mxu0 0
    %4542 = vmatpush1.bf16.msra.mxu0 0
    %4543 = vmatprep.subr.bf16.mxu0 0
    %4544 = vmatpush1.bf16.msra.mxu0 0
    %4545 = vmatprep.subr.bf16.mxu0 0
    %4546 = vmatpush1.bf16.msra.mxu0 0
    %4547 = vmatprep.subr.bf16.mxu0 0
    %4548 = vmatpush1.bf16.msra.mxu0 0
    %4549 = vmatprep.subr.bf16.mxu0 0
    %4550 = vmatpush1.bf16.msra.mxu0 0
    %4551 = vmatprep.subr.bf16.mxu0 0
    %4552 = vmatpush1.bf16.msra.mxu0 0
    %4553 = vmatprep.subr.bf16.mxu0 0
    %4554 = vmatpush1.bf16.msra.mxu0 0
    %4555 = vmatprep.subr.bf16.mxu0 0
    %4556 = vmatpush1.bf16.msra.mxu0 0
    %4557 = vmatprep.subr.bf16.mxu0 0
    %4558 = vmatpush1.bf16.msra.mxu0 0
    %4559 = vmatprep.subr.bf16.mxu0 0
    %4560 = vmatpush1.bf16.msra.mxu0 0
    %4561 = vmatprep.subr.bf16.mxu0 0
    %4562 = vmatpush1.bf16.msra.mxu0 0
    %4563 = vmatprep.subr.bf16.mxu0 0
    %4564 = vmatpush1.bf16.msra.mxu0 0
    %4565 = vmatprep.mubr.bf16.mxu0 0
    %4566 = vmatmul.mubr.bf16.gmra.mrb[0].mxu0 %v4440
    %v4567 = vpop.f32.mrb[0].mxu0
    %v4568 = vadd.f32 %v4389, %v4567
    %v4569 = vpop.f32.mrb[0].mxu0
    %v4570 = vpop.f32.mrb[0].mxu0
    %v4571 = vadd.f32 %v4392, %v4570
    %v4572 = vpop.f32.mrb[0].mxu0
    %4573 = vmatprep.mubr.bf16.mxu0 0
    %4574 = vmatmul.mubr.bf16.gmra.mrb[0].mxu0 %v4443
    %v4575 = vpop.f32.mrb[0].mxu0
    %v4576 = vadd.f32 %v4397, %v4575
    %v4577 = vpop.f32.mrb[0].mxu0
    %v4578 = vpop.f32.mrb[0].mxu0
    %v4579 = vadd.f32 %v4400, %v4578
    %v4580 = vpop.f32.mrb[0].mxu0
    %4581 = vmatprep.mubr.bf16.mxu0 0
    %4582 = vmatmul.mubr.bf16.gmra.mrb[0].mxu0 %v4446
    %v4583 = vpop.f32.mrb[0].mxu0
    %v4584 = vadd.f32 %v4405, %v4583
    %v4585 = vpop.f32.mrb[0].mxu0
    %v4586 = vpop.f32.mrb[0].mxu0
    %v4587 = vadd.f32 %v4408, %v4586
    %v4588 = vpop.f32.mrb[0].mxu0
    %4589 = vmatprep.mubr.bf16.mxu0 0
    %4590 = vmatmul.mubr.bf16.gmra.mrb[0].mxu0 %v4449
    %v4591 = vpop.f32.mrb[0].mxu0
    %v4592 = vadd.f32 %v4413, %v4591
    %v4593 = vpop.f32.mrb[0].mxu0
    %v4594 = vpop.f32.mrb[0].mxu0
    %v4595 = vadd.f32 %v4416, %v4594
    %v4596 = vpop.f32.mrb[0].mxu0
    %4597 = vdwg.mxu0
    %v4598 = vld [vmem:[#allocation7] sm:$0xff]
    %v4599 = vld [vmem:[#allocation7 + $0x8] sm:$0xff]
    %v4600 = vld [vmem:[#allocation7 + $0x10] sm:$0xff]
    %v4601 = vld [vmem:[#allocation7 + $0x18] sm:$0xff]
    %v4602 = vld [vmem:[#allocation7 + $0x20] sm:$0xff]
    %v4603 = vld [vmem:[#allocation7 + $0x28] sm:$0xff]
    %v4604 = vld [vmem:[#allocation7 + $0x30] sm:$0xff]
    %v4605 = vld [vmem:[#allocation7 + $0x38] sm:$0xff]
    %4607 = vset.pattern.permute.xlu0 9
    %4608 = vperm.xlu0 %4607, %v4598
    %v4609 = vpop.permute.xlu0 %4608
    %4612 = vset.pattern.permute.xlu0 9
    %4613 = vperm.xlu0 %4612, %v4599
    %v4614 = vpop.permute.xlu0 %4613
    %4617 = vset.pattern.permute.xlu0 9
    %4618 = vperm.xlu0 %4617, %v4600
    %v4619 = vpop.permute.xlu0 %4618
    %4622 = vset.pattern.permute.xlu0 9
    %4623 = vperm.xlu0 %4622, %v4601
    %v4624 = vpop.permute.xlu0 %4623
    %4627 = vset.pattern.permute.xlu0 9
    %4628 = vperm.xlu0 %4627, %v4602
    %v4629 = vpop.permute.xlu0 %4628
    %4632 = vset.pattern.permute.xlu0 9
    %4633 = vperm.xlu0 %4632, %v4603
    %v4634 = vpop.permute.xlu0 %4633
    %4637 = vset.pattern.permute.xlu0 9
    %4638 = vperm.xlu0 %4637, %v4604
    %v4639 = vpop.permute.xlu0 %4638
    %4642 = vset.pattern.permute.xlu0 9
    %4643 = vperm.xlu0 %4642, %v4605
    %v4644 = vpop.permute.xlu0 %4643
    %v4646 = vadd.f32 %v4495, %v4609
    %v4647 = vadd.f32 %v4497, %v4609
    %v4648 = vadd.f32 %v4568, %v4609
    %v4649 = vadd.f32 %v4499, %v4614
    %v4650 = vadd.f32 %v4501, %v4614
    %v4651 = vadd.f32 %v4571, %v4614
    %v4652 = vadd.f32 %v4505, %v4619
    %v4653 = vadd.f32 %v4507, %v4619
    %v4654 = vadd.f32 %v4576, %v4619
    %v4655 = vadd.f32 %v4509, %v4624
    %v4656 = vadd.f32 %v4511, %v4624
    %v4657 = vadd.f32 %v4579, %v4624
    %v4658 = vadd.f32 %v4515, %v4629
    %v4659 = vadd.f32 %v4517, %v4629
    %v4660 = vadd.f32 %v4584, %v4629
    %v4661 = vadd.f32 %v4519, %v4634
    %v4662 = vadd.f32 %v4521, %v4634
    %v4663 = vadd.f32 %v4587, %v4634
    %v4664 = vadd.f32 %v4525, %v4639
    %v4665 = vadd.f32 %v4527, %v4639
    %v4666 = vadd.f32 %v4592, %v4639
    %v4667 = vadd.f32 %v4529, %v4644
    %v4668 = vadd.f32 %v4531, %v4644
    %v4669 = vadd.f32 %v4595, %v4644
    %v4670 = vmax.f32 %v4646, 0.0
    %v4671 = vmax.f32 %v4647, 0.0
    %v4672 = vmax.f32 %v4648, 0.0
    %v4673 = vmax.f32 %v4649, 0.0
    %v4674 = vmax.f32 %v4650, 0.0
    %v4675 = vmax.f32 %v4651, 0.0
    %v4676 = vmax.f32 %v4652, 0.0
    %v4677 = vmax.f32 %v4653, 0.0
    %v4678 = vmax.f32 %v4654, 0.0
    %v4679 = vmax.f32 %v4655, 0.0
    %v4680 = vmax.f32 %v4656, 0.0
    %v4681 = vmax.f32 %v4657, 0.0
    %v4682 = vmax.f32 %v4658, 0.0
    %v4683 = vmax.f32 %v4659, 0.0
    %v4684 = vmax.f32 %v4660, 0.0
    %v4685 = vmax.f32 %v4661, 0.0
    %v4686 = vmax.f32 %v4662, 0.0
    %v4687 = vmax.f32 %v4663, 0.0
    %v4688 = vmax.f32 %v4664, 0.0
    %v4689 = vmax.f32 %v4665, 0.0
    %v4690 = vmax.f32 %v4666, 0.0
    %v4691 = vmax.f32 %v4667, 0.0
    %v4692 = vmax.f32 %v4668, 0.0
    %v4693 = vmax.f32 %v4669, 0.0
    %s4694 = scalar_lea.vmem [#allocation6], 448
    %v4695 = vld [vmem:[%s4694] sm:$0xf]
    %v4696 = vld [vmem:[%s4694 + $0x4] sm:$0xf]
    %v4697 = vld [vmem:[%s4694 + $0x8] sm:$0xf]
    %v4698 = vld [vmem:[%s4694 + $0xc] sm:$0xf]
    %v4699 = vld [vmem:[%s4694 + $0x10] sm:$0xf]
    %v4700 = vld [vmem:[%s4694 + $0x14] sm:$0xf]
    %v4701 = vld [vmem:[%s4694 + $0x18] sm:$0xf]
    %v4702 = vld [vmem:[%s4694 + $0x1c] sm:$0xf]
    %v4703 = vpack.c.bf16 %v4673, %v4670
    %v4704 = vpack.c.bf16 %v4674, %v4671
    %v4705 = vpack.c.bf16 %v4675, %v4672
    %v4706 = vpack.c.bf16 %v4679, %v4676
    %v4707 = vpack.c.bf16 %v4680, %v4677
    %v4708 = vpack.c.bf16 %v4681, %v4678
    %v4709 = vpack.c.bf16 %v4685, %v4682
    %v4710 = vpack.c.bf16 %v4686, %v4683
    %v4711 = vpack.c.bf16 %v4687, %v4684
    %v4712 = vpack.c.bf16 %v4691, %v4688
    %v4713 = vpack.c.bf16 %v4692, %v4689
    %v4714 = vpack.c.bf16 %v4693, %v4690
    %4715 = vset.pattern.permute.xlu0 10
    %4716 = vperm.xlu0 %4715, %v4598
    %v4717 = vpop.permute.xlu0 %4716
    %4719 = vset.pattern.permute.xlu0 10
    %4720 = vperm.xlu0 %4719, %v4599
    %v4721 = vpop.permute.xlu0 %4720
    %4723 = vset.pattern.permute.xlu0 10
    %4724 = vperm.xlu0 %4723, %v4600
    %v4725 = vpop.permute.xlu0 %4724
    %4727 = vset.pattern.permute.xlu0 10
    %4728 = vperm.xlu0 %4727, %v4601
    %v4729 = vpop.permute.xlu0 %4728
    %4731 = vset.pattern.permute.xlu0 10
    %4732 = vperm.xlu0 %4731, %v4602
    %v4733 = vpop.permute.xlu0 %4732
    %4735 = vset.pattern.permute.xlu0 10
    %4736 = vperm.xlu0 %4735, %v4603
    %v4737 = vpop.permute.xlu0 %4736
    %4739 = vset.pattern.permute.xlu0 10
    %4740 = vperm.xlu0 %4739, %v4604
    %v4741 = vpop.permute.xlu0 %4740
    %4743 = vset.pattern.permute.xlu0 10
    %4744 = vperm.xlu0 %4743, %v4605
    %v4745 = vpop.permute.xlu0 %4744
    %v4755 = vunpack.c.l.b16 %v4695
    %v4756 = vunpack.c.l.b16 %v4696
    %v4757 = vunpack.c.l.b16 %v4697
    %v4758 = vunpack.c.l.b16 %v4698
    %v4759 = vunpack.c.l.b16 %v4699
    %v4760 = vunpack.c.l.b16 %v4700
    %v4761 = vunpack.c.l.b16 %v4701
    %v4762 = vunpack.c.l.b16 %v4702
    %v4763 = vpack.c.b16 %v4756, %v4755
    %v4764 = vpack.c.b16 %v4758, %v4757
    %v4765 = vpack.c.b16 %v4760, %v4759
    %v4766 = vpack.c.b16 %v4762, %v4761
    %v4768 = vsel %vm412, %v4763, 0
    %v4771 = vsel %vm412, %v4764, 0
    %v4774 = vsel %vm412, %v4765, 0
    %v4777 = vsel %vm412, %v4766, 0
    %4779 = vmatprep.subr.bf16.mxu0 %v4704
    %4780 = vmatpush1.bf16.msra.mxu0 %v4703
    %4781 = vmatprep.subr.bf16.mxu0 %v4707
    %4782 = vmatpush1.bf16.msra.mxu0 %v4706
    %4783 = vmatprep.subr.bf16.mxu0 %v4710
    %4784 = vmatpush1.bf16.msra.mxu0 %v4709
    %4785 = vmatprep.subr.bf16.mxu0 %v4713
    %4786 = vmatpush1.bf16.msra.mxu0 %v4712
    %4787 = vmatprep.subr.bf16.mxu0 0
    %4788 = vmatpush1.bf16.msra.mxu0 0
    %4789 = vmatprep.subr.bf16.mxu0 0
    %4790 = vmatpush1.bf16.msra.mxu0 0
    %4791 = vmatprep.subr.bf16.mxu0 0
    %4792 = vmatpush1.bf16.msra.mxu0 0
    %4793 = vmatprep.subr.bf16.mxu0 0
    %4794 = vmatpush1.bf16.msra.mxu0 0
    %4795 = vmatprep.subr.bf16.mxu0 0
    %4796 = vmatpush1.bf16.msra.mxu0 0
    %4797 = vmatprep.subr.bf16.mxu0 0
    %4798 = vmatpush1.bf16.msra.mxu0 0
    %4799 = vmatprep.subr.bf16.mxu0 0
    %4800 = vmatpush1.bf16.msra.mxu0 0
    %4801 = vmatprep.subr.bf16.mxu0 0
    %4802 = vmatpush1.bf16.msra.mxu0 0
    %4803 = vmatprep.subr.bf16.mxu0 0
    %4804 = vmatpush1.bf16.msra.mxu0 0
    %4805 = vmatprep.subr.bf16.mxu0 0
    %4806 = vmatpush1.bf16.msra.mxu0 0
    %4807 = vmatprep.subr.bf16.mxu0 0
    %4808 = vmatpush1.bf16.msra.mxu0 0
    %4809 = vmatprep.subr.bf16.mxu0 0
    %4810 = vmatpush1.bf16.msra.mxu0 0
    %4811 = vmatprep.mubr.bf16.mxu0 0
    %4812 = vmatmul.mubr.bf16.gmra.mrb[0].mxu0 %v4768
    %v4813 = vpop.f32.mrb[0].mxu0
    %v4814 = vadd.f32 %v4717, %v4813
    %v4815 = vpop.f32.mrb[0].mxu0
    %v4816 = vadd.f32 %v4717, %v4815
    %v4817 = vpop.f32.mrb[0].mxu0
    %v4818 = vadd.f32 %v4721, %v4817
    %v4819 = vpop.f32.mrb[0].mxu0
    %v4820 = vadd.f32 %v4721, %v4819
    %4821 = vmatprep.mubr.bf16.mxu0 0
    %4822 = vmatmul.mubr.bf16.gmra.mrb[0].mxu0 %v4771
    %v4823 = vpop.f32.mrb[0].mxu0
    %v4824 = vadd.f32 %v4725, %v4823
    %v4825 = vpop.f32.mrb[0].mxu0
    %v4826 = vadd.f32 %v4725, %v4825
    %v4827 = vpop.f32.mrb[0].mxu0
    %v4828 = vadd.f32 %v4729, %v4827
    %v4829 = vpop.f32.mrb[0].mxu0
    %v4830 = vadd.f32 %v4729, %v4829
    %4831 = vmatprep.mubr.bf16.mxu0 0
    %4832 = vmatmul.mubr.bf16.gmra.mrb[0].mxu0 %v4774
    %v4833 = vpop.f32.mrb[0].mxu0
    %v4834 = vadd.f32 %v4733, %v4833
    %v4835 = vpop.f32.mrb[0].mxu0
    %v4836 = vadd.f32 %v4733, %v4835
    %v4837 = vpop.f32.mrb[0].mxu0
    %v4838 = vadd.f32 %v4737, %v4837
    %v4839 = vpop.f32.mrb[0].mxu0
    %v4840 = vadd.f32 %v4737, %v4839
    %4841 = vmatprep.mubr.bf16.mxu0 0
    %4842 = vmatmul.mubr.bf16.gmra.mrb[0].mxu0 %v4777
    %v4843 = vpop.f32.mrb[0].mxu0
    %v4844 = vadd.f32 %v4741, %v4843
    %v4845 = vpop.f32.mrb[0].mxu0
    %v4846 = vadd.f32 %v4741, %v4845
    %v4847 = vpop.f32.mrb[0].mxu0
    %v4848 = vadd.f32 %v4745, %v4847
    %v4849 = vpop.f32.mrb[0].mxu0
    %v4850 = vadd.f32 %v4745, %v4849
    %4851 = vdwg.mxu0
    %4852 = vmatprep.subr.bf16.mxu0 0
    %4853 = vmatpush1.bf16.msra.mxu0 %v4705
    %4854 = vmatprep.subr.bf16.mxu0 0
    %4855 = vmatpush1.bf16.msra.mxu0 %v4708
    %4856 = vmatprep.subr.bf16.mxu0 0
    %4857 = vmatpush1.bf16.msra.mxu0 %v4711
    %4858 = vmatprep.subr.bf16.mxu0 0
    %4859 = vmatpush1.bf16.msra.mxu0 %v4714
    %4860 = vmatprep.subr.bf16.mxu0 0
    %4861 = vmatpush1.bf16.msra.mxu0 0
    %4862 = vmatprep.subr.bf16.mxu0 0
    %4863 = vmatpush1.bf16.msra.mxu0 0
    %4864 = vmatprep.subr.bf16.mxu0 0
    %4865 = vmatpush1.bf16.msra.mxu0 0
    %4866 = vmatprep.subr.bf16.mxu0 0
    %4867 = vmatpush1.bf16.msra.mxu0 0
    %4868 = vmatprep.subr.bf16.mxu0 0
    %4869 = vmatpush1.bf16.msra.mxu0 0
    %4870 = vmatprep.subr.bf16.mxu0 0
    %4871 = vmatpush1.bf16.msra.mxu0 0
    %4872 = vmatprep.subr.bf16.mxu0 0
    %4873 = vmatpush1.bf16.msra.mxu0 0
    %4874 = vmatprep.subr.bf16.mxu0 0
    %4875 = vmatpush1.bf16.msra.mxu0 0
    %4876 = vmatprep.subr.bf16.mxu0 0
    %4877 = vmatpush1.bf16.msra.mxu0 0
    %4878 = vmatprep.subr.bf16.mxu0 0
    %4879 = vmatpush1.bf16.msra.mxu0 0
    %4880 = vmatprep.subr.bf16.mxu0 0
    %4881 = vmatpush1.bf16.msra.mxu0 0
    %4882 = vmatprep.subr.bf16.mxu0 0
    %4883 = vmatpush1.bf16.msra.mxu0 0
    %4884 = vmatprep.mubr.bf16.mxu0 0
    %4885 = vmatmul.mubr.bf16.gmra.mrb[0].mxu0 %v4768
    %v4886 = vpop.f32.mrb[0].mxu0
    %v4887 = vadd.f32 %v4717, %v4886
    %v4888 = vpop.f32.mrb[0].mxu0
    %v4889 = vpop.f32.mrb[0].mxu0
    %v4890 = vadd.f32 %v4721, %v4889
    %v4891 = vpop.f32.mrb[0].mxu0
    %4892 = vmatprep.mubr.bf16.mxu0 0
    %4893 = vmatmul.mubr.bf16.gmra.mrb[0].mxu0 %v4771
    %v4894 = vpop.f32.mrb[0].mxu0
    %v4895 = vadd.f32 %v4725, %v4894
    %v4896 = vpop.f32.mrb[0].mxu0
    %v4897 = vpop.f32.mrb[0].mxu0
    %v4898 = vadd.f32 %v4729, %v4897
    %v4899 = vpop.f32.mrb[0].mxu0
    %4900 = vmatprep.mubr.bf16.mxu0 0
    %4901 = vmatmul.mubr.bf16.gmra.mrb[0].mxu0 %v4774
    %v4902 = vpop.f32.mrb[0].mxu0
    %v4903 = vadd.f32 %v4733, %v4902
    %v4904 = vpop.f32.mrb[0].mxu0
    %v4905 = vpop.f32.mrb[0].mxu0
    %v4906 = vadd.f32 %v4737, %v4905
    %v4907 = vpop.f32.mrb[0].mxu0
    %4908 = vmatprep.mubr.bf16.mxu0 0
    %4909 = vmatmul.mubr.bf16.gmra.mrb[0].mxu0 %v4777
    %v4910 = vpop.f32.mrb[0].mxu0
    %v4911 = vadd.f32 %v4741, %v4910
    %v4912 = vpop.f32.mrb[0].mxu0
    %v4913 = vpop.f32.mrb[0].mxu0
    %v4914 = vadd.f32 %v4745, %v4913
    %v4915 = vpop.f32.mrb[0].mxu0
    %4916 = vdwg.mxu0
    %v4917 = vmax.f32 %v4814, 0.0
    %v4918 = vmax.f32 %v4816, 0.0
    %v4919 = vmax.f32 %v4887, 0.0
    %v4920 = vmax.f32 %v4818, 0.0
    %v4921 = vmax.f32 %v4820, 0.0
    %v4922 = vmax.f32 %v4890, 0.0
    %v4923 = vmax.f32 %v4824, 0.0
    %v4924 = vmax.f32 %v4826, 0.0
    %v4925 = vmax.f32 %v4895, 0.0
    %v4926 = vmax.f32 %v4828, 0.0
    %v4927 = vmax.f32 %v4830, 0.0
    %v4928 = vmax.f32 %v4898, 0.0
    %v4929 = vmax.f32 %v4834, 0.0
    %v4930 = vmax.f32 %v4836, 0.0
    %v4931 = vmax.f32 %v4903, 0.0
    %v4932 = vmax.f32 %v4838, 0.0
    %v4933 = vmax.f32 %v4840, 0.0
    %v4934 = vmax.f32 %v4906, 0.0
    %v4935 = vmax.f32 %v4844, 0.0
    %v4936 = vmax.f32 %v4846, 0.0
    %v4937 = vmax.f32 %v4911, 0.0
    %v4938 = vmax.f32 %v4848, 0.0
    %v4939 = vmax.f32 %v4850, 0.0
    %v4940 = vmax.f32 %v4914, 0.0
    %v4941 = vlaneseq
    %v4942 = vshrl.u32 %v4941, 7
    %v4943 = vsub.s32 0, %v4942
    %v4944 = vrot.slane %v4085, %v4943
    %v4945 = vlaneseq
    %v4946 = vshrl.u32 %v4945, 7
    %v4947 = vsub.s32 0, %v4946
    %v4948 = vrot.slane %v4086, %v4947
    %v4949 = vlaneseq
    %v4950 = vshrl.u32 %v4949, 7
    %v4951 = vsub.s32 0, %v4950
    %v4952 = vrot.slane %v4087, %v4951
    %v4953 = vmul.f32 %v4929, %v4944
    %v4954 = vmul.f32 %v4930, %v4948
    %v4955 = vmul.f32 %v4931, %v4952
    %v4956 = vmul.f32 %v4932, %v4944
    %v4957 = vmul.f32 %v4933, %v4948
    %v4958 = vmul.f32 %v4934, %v4952
    %v4959 = vmul.f32 %v4935, %v4944
    %v4960 = vmul.f32 %v4936, %v4948
    %v4961 = vmul.f32 %v4937, %v4952
    %v4962 = vmul.f32 %v4938, %v4944
    %v4963 = vmul.f32 %v4939, %v4948
    %v4964 = vmul.f32 %v4940, %v4952
    %v4965 = vlaneseq
    %v4966 = vshrl.u32 %v4965, 7
    %v4967 = vsub.s32 0, %v4966
    %v4968 = vrot.slane %v4088, %v4967
    %v4969 = vlaneseq
    %v4970 = vshrl.u32 %v4969, 7
    %v4971 = vsub.s32 0, %v4970
    %v4972 = vrot.slane %v4089, %v4971
    %v4973 = vlaneseq
    %v4974 = vshrl.u32 %v4973, 7
    %v4975 = vsub.s32 0, %v4974
    %v4976 = vrot.slane %v4090, %v4975
    %v4977 = vmul.f32 %v4917, %v4968
    %v4978 = vmul.f32 %v4918, %v4972
    %v4979 = vmul.f32 %v4919, %v4976
    %v4980 = vmul.f32 %v4920, %v4968
    %v4981 = vmul.f32 %v4921, %v4972
    %v4982 = vmul.f32 %v4922, %v4976
    %v4983 = vmul.f32 %v4923, %v4968
    %v4984 = vmul.f32 %v4924, %v4972
    %v4985 = vmul.f32 %v4925, %v4976
    %v4986 = vmul.f32 %v4926, %v4968
    %v4987 = vmul.f32 %v4927, %v4972
    %v4988 = vmul.f32 %v4928, %v4976
    %v4989 = vadd.f32 %v4953, %v4977
    %v4990 = vadd.f32 %v4954, %v4978
    %v4991 = vadd.f32 %v4955, %v4979
    %v4992 = vadd.f32 %v4956, %v4980
    %v4993 = vadd.f32 %v4957, %v4981
    %v4994 = vadd.f32 %v4958, %v4982
    %v4995 = vadd.f32 %v4959, %v4983
    %v4996 = vadd.f32 %v4960, %v4984
    %v4997 = vadd.f32 %v4961, %v4985
    %v4998 = vadd.f32 %v4962, %v4986
    %v4999 = vadd.f32 %v4963, %v4987
    %v5000 = vadd.f32 %v4964, %v4988
    %v5001 = vpack.c.bf16 %v4992, %v4989
    %v5002 = vpack.c.bf16 %v4993, %v4990
    %v5003 = vpack.c.bf16 %v4994, %v4991
    %v5004 = vpack.c.bf16 %v4998, %v4995
    %v5005 = vpack.c.bf16 %v4999, %v4996
    %v5006 = vpack.c.bf16 %v5000, %v4997
    %5007 = vmatprep.subr.bf16.mxu0 0
    %5008 = vmatpush1.bf16.msra.mxu0 %v1945
    %5009 = vmatprep.subr.bf16.mxu0 0
    %5010 = vmatpush1.bf16.msra.mxu0 %v1946
    %5011 = vmatprep.subr.bf16.mxu0 0
    %5012 = vmatpush1.bf16.msra.mxu0 %v1947
    %5013 = vmatprep.subr.bf16.mxu0 0
    %5014 = vmatpush1.bf16.msra.mxu0 %v1948
    %5015 = vmatprep.subr.bf16.mxu0 0
    %5016 = vmatpush1.bf16.msra.mxu0 %v1949
    %5017 = vmatprep.subr.bf16.mxu0 0
    %5018 = vmatpush1.bf16.msra.mxu0 %v1950
    %5019 = vmatprep.subr.bf16.mxu0 0
    %5020 = vmatpush1.bf16.msra.mxu0 %v1951
    %5021 = vmatprep.subr.bf16.mxu0 0
    %5022 = vmatpush1.bf16.msra.mxu0 %v1952
    %5023 = vmatprep.subr.bf16.mxu0 0
    %5024 = vmatpush1.bf16.msra.mxu0 %v1953
    %5025 = vmatprep.subr.bf16.mxu0 0
    %5026 = vmatpush1.bf16.msra.mxu0 %v1954
    %5027 = vmatprep.subr.bf16.mxu0 0
    %5028 = vmatpush1.bf16.msra.mxu0 %v1955
    %5029 = vmatprep.subr.bf16.mxu0 0
    %5030 = vmatpush1.bf16.msra.mxu0 %v1956
    %5031 = vmatprep.subr.bf16.mxu0 0
    %5032 = vmatpush1.bf16.msra.mxu0 %v1957
    %5033 = vmatprep.subr.bf16.mxu0 0
    %5034 = vmatpush1.bf16.msra.mxu0 %v1958
    %5035 = vmatprep.subr.bf16.mxu0 0
    %5036 = vmatpush1.bf16.msra.mxu0 %v1959
    %5037 = vmatprep.subr.bf16.mxu0 0
    %5038 = vmatpush1.bf16.msra.mxu0 %v1960
    %5039 = vmatprep.mubr.bf16.mxu0 %v5002
    %5040 = vmatmul.mubr.bf16.gmra.mrb[0].mxu0 %v5001
    %v5041 = vpop.f32.mrb[0].mxu0
    %v5042 = vadd.f32 0.0, %v5041
    %v5043 = vpop.f32.mrb[0].mxu0
    %v5044 = vpop.f32.mrb[0].mxu0
    %v5045 = vadd.f32 0.0, %v5044
    %v5046 = vpop.f32.mrb[0].mxu0
    %5047 = vmatprep.mubr.bf16.mxu0 %v5005
    %5048 = vmatmul.mubr.bf16.gmra.mrb[0].mxu0 %v5004
    %v5049 = vpop.f32.mrb[0].mxu0
    %v5050 = vadd.f32 0.0, %v5049
    %v5051 = vpop.f32.mrb[0].mxu0
    %v5052 = vpop.f32.mrb[0].mxu0
    %v5053 = vadd.f32 0.0, %v5052
    %v5054 = vpop.f32.mrb[0].mxu0
    %5055 = vdwg.mxu0
    %5056 = vmatprep.subr.bf16.mxu0 0
    %5057 = vmatpush1.bf16.msra.mxu0 %v1961
    %5058 = vmatprep.subr.bf16.mxu0 0
    %5059 = vmatpush1.bf16.msra.mxu0 %v1962
    %5060 = vmatprep.subr.bf16.mxu0 0
    %5061 = vmatpush1.bf16.msra.mxu0 %v1963
    %5062 = vmatprep.subr.bf16.mxu0 0
    %5063 = vmatpush1.bf16.msra.mxu0 %v1964
    %5064 = vmatprep.subr.bf16.mxu0 0
    %5065 = vmatpush1.bf16.msra.mxu0 %v1965
    %5066 = vmatprep.subr.bf16.mxu0 0
    %5067 = vmatpush1.bf16.msra.mxu0 %v1966
    %5068 = vmatprep.subr.bf16.mxu0 0
    %5069 = vmatpush1.bf16.msra.mxu0 %v1967
    %5070 = vmatprep.subr.bf16.mxu0 0
    %5071 = vmatpush1.bf16.msra.mxu0 %v1968
    %5072 = vmatprep.subr.bf16.mxu0 0
    %5073 = vmatpush1.bf16.msra.mxu0 0
    %5074 = vmatprep.subr.bf16.mxu0 0
    %5075 = vmatpush1.bf16.msra.mxu0 0
    %5076 = vmatprep.subr.bf16.mxu0 0
    %5077 = vmatpush1.bf16.msra.mxu0 0
    %5078 = vmatprep.subr.bf16.mxu0 0
    %5079 = vmatpush1.bf16.msra.mxu0 0
    %5080 = vmatprep.subr.bf16.mxu0 0
    %5081 = vmatpush1.bf16.msra.mxu0 0
    %5082 = vmatprep.subr.bf16.mxu0 0
    %5083 = vmatpush1.bf16.msra.mxu0 0
    %5084 = vmatprep.subr.bf16.mxu0 0
    %5085 = vmatpush1.bf16.msra.mxu0 0
    %5086 = vmatprep.subr.bf16.mxu0 0
    %5087 = vmatpush1.bf16.msra.mxu0 0
    %5088 = vmatprep.mubr.bf16.mxu0 0
    %5089 = vmatmul.mubr.bf16.gmra.mrb[0].mxu0 %v5003
    %v5090 = vpop.f32.mrb[0].mxu0
    %v5091 = vadd.f32 %v5042, %v5090
    %v5092 = vpop.f32.mrb[0].mxu0
    %v5093 = vpop.f32.mrb[0].mxu0
    %v5094 = vadd.f32 %v5045, %v5093
    %v5095 = vpop.f32.mrb[0].mxu0
    %5096 = vmatprep.mubr.bf16.mxu0 0
    %5097 = vmatmul.mubr.bf16.gmra.mrb[0].mxu0 %v5006
    %v5098 = vpop.f32.mrb[0].mxu0
    %v5099 = vadd.f32 %v5050, %v5098
    %v5100 = vpop.f32.mrb[0].mxu0
    %v5101 = vpop.f32.mrb[0].mxu0
    %v5102 = vadd.f32 %v5053, %v5101
    %v5103 = vpop.f32.mrb[0].mxu0
    %5104 = vdwg.mxu0
    %s5105 = scalar_lea.vmem [#allocation6], 480
    %v5106 = vld [vmem:[%s5105] sm:$0xf]
    %v5107 = vld [vmem:[%s5105 + $0x4] sm:$0xf]
    %v5108 = vld [vmem:[%s5105 + $0x8] sm:$0xf]
    %v5109 = vld [vmem:[%s5105 + $0xc] sm:$0xf]
    %s5110 = scalar_lea.vmem [#allocation6], 512
    %v5111 = vld [vmem:[%s5110] sm:$0xf]
    %v5112 = vld [vmem:[%s5110 + $0x4] sm:$0xf]
    %v5113 = vld [vmem:[%s5110 + $0x8] sm:$0xf]
    %v5114 = vld [vmem:[%s5110 + $0xc] sm:$0xf]
    %v5115 = vpack.c.bf16 %v5094, %v5091
    %v5116 = vpack.c.bf16 %v5102, %v5099
    %v5121 = vunpack.c.l.b16 %v5111
    %v5122 = vunpack.c.l.b16 %v5112
    %v5123 = vunpack.c.l.b16 %v5113
    %v5124 = vunpack.c.l.b16 %v5114
    %v5125 = vpack.c.b16 %v5122, %v5121
    %v5126 = vpack.c.b16 %v5124, %v5123
    %v5128 = vsel %vm3943, %v5125, 0
    %v5131 = vsel %vm3943, %v5126, 0
    %5133 = vmatprep.subr.bf16.mxu0 0
    %5134 = vmatpush1.bf16.msra.mxu0 %v5115
    %5135 = vmatprep.subr.bf16.mxu0 0
    %5136 = vmatpush1.bf16.msra.mxu0 %v5116
    %5137 = vmatprep.subr.bf16.mxu0 0
    %5138 = vmatpush1.bf16.msra.mxu0 0
    %5139 = vmatprep.subr.bf16.mxu0 0
    %5140 = vmatpush1.bf16.msra.mxu0 0
    %5141 = vmatprep.subr.bf16.mxu0 0
    %5142 = vmatpush1.bf16.msra.mxu0 0
    %5143 = vmatprep.subr.bf16.mxu0 0
    %5144 = vmatpush1.bf16.msra.mxu0 0
    %5145 = vmatprep.subr.bf16.mxu0 0
    %5146 = vmatpush1.bf16.msra.mxu0 0
    %5147 = vmatprep.subr.bf16.mxu0 0
    %5148 = vmatpush1.bf16.msra.mxu0 0
    %5149 = vmatprep.subr.bf16.mxu0 0
    %5150 = vmatpush1.bf16.msra.mxu0 0
    %5151 = vmatprep.subr.bf16.mxu0 0
    %5152 = vmatpush1.bf16.msra.mxu0 0
    %5153 = vmatprep.subr.bf16.mxu0 0
    %5154 = vmatpush1.bf16.msra.mxu0 0
    %5155 = vmatprep.subr.bf16.mxu0 0
    %5156 = vmatpush1.bf16.msra.mxu0 0
    %5157 = vmatprep.subr.bf16.mxu0 0
    %5158 = vmatpush1.bf16.msra.mxu0 0
    %5159 = vmatprep.subr.bf16.mxu0 0
    %5160 = vmatpush1.bf16.msra.mxu0 0
    %5161 = vmatprep.subr.bf16.mxu0 0
    %5162 = vmatpush1.bf16.msra.mxu0 0
    %5163 = vmatprep.subr.bf16.mxu0 0
    %5164 = vmatpush1.bf16.msra.mxu0 0
    %5165 = vmatprep.mubr.bf16.mxu0 0
    %5166 = vmatmul.mubr.bf16.gmra.mrb[0].mxu0 %v5128
    %v5167 = vpop.f32.mrb[0].mxu0
    %v5168 = vadd.f32 0.0, %v5167
    %v5169 = vpop.f32.mrb[0].mxu0
    %v5170 = vpop.f32.mrb[0].mxu0
    %v5171 = vadd.f32 0.0, %v5170
    %v5172 = vpop.f32.mrb[0].mxu0
    %5173 = vmatprep.mubr.bf16.mxu0 0
    %5174 = vmatmul.mubr.bf16.gmra.mrb[0].mxu0 %v5131
    %v5175 = vpop.f32.mrb[0].mxu0
    %v5176 = vadd.f32 0.0, %v5175
    %v5177 = vpop.f32.mrb[0].mxu0
    %v5178 = vpop.f32.mrb[0].mxu0
    %v5179 = vadd.f32 0.0, %v5178
    %v5180 = vpop.f32.mrb[0].mxu0
    %5181 = vdwg.mxu0
    %v5186 = vunpack.c.l.b16 %v5106
    %v5187 = vunpack.c.l.b16 %v5107
    %v5188 = vunpack.c.l.b16 %v5108
    %v5189 = vunpack.c.l.b16 %v5109
    %v5190 = vpack.c.b16 %v5187, %v5186
    %v5191 = vpack.c.b16 %v5189, %v5188
    %v5193 = vsel %vm217, %v5190, 0
    %v5196 = vsel %vm217, %v5191, 0
    %5198 = vmatprep.subr.bf16.mxu0 0
    %5199 = vmatpush1.bf16.msra.mxu0 %v232
    %5200 = vmatprep.subr.bf16.mxu0 0
    %5201 = vmatpush1.bf16.msra.mxu0 0
    %5202 = vmatprep.subr.bf16.mxu0 0
    %5203 = vmatpush1.bf16.msra.mxu0 0
    %5204 = vmatprep.subr.bf16.mxu0 0
    %5205 = vmatpush1.bf16.msra.mxu0 0
    %5206 = vmatprep.subr.bf16.mxu0 0
    %5207 = vmatpush1.bf16.msra.mxu0 0
    %5208 = vmatprep.subr.bf16.mxu0 0
    %5209 = vmatpush1.bf16.msra.mxu0 0
    %5210 = vmatprep.subr.bf16.mxu0 0
    %5211 = vmatpush1.bf16.msra.mxu0 0
    %5212 = vmatprep.subr.bf16.mxu0 0
    %5213 = vmatpush1.bf16.msra.mxu0 0
    %5214 = vmatprep.subr.bf16.mxu0 0
    %5215 = vmatpush1.bf16.msra.mxu0 0
    %5216 = vmatprep.subr.bf16.mxu0 0
    %5217 = vmatpush1.bf16.msra.mxu0 0
    %5218 = vmatprep.subr.bf16.mxu0 0
    %5219 = vmatpush1.bf16.msra.mxu0 0
    %5220 = vmatprep.subr.bf16.mxu0 0
    %5221 = vmatpush1.bf16.msra.mxu0 0
    %5222 = vmatprep.subr.bf16.mxu0 0
    %5223 = vmatpush1.bf16.msra.mxu0 0
    %5224 = vmatprep.subr.bf16.mxu0 0
    %5225 = vmatpush1.bf16.msra.mxu0 0
    %5226 = vmatprep.subr.bf16.mxu0 0
    %5227 = vmatpush1.bf16.msra.mxu0 0
    %5228 = vmatprep.subr.bf16.mxu0 0
    %5229 = vmatpush1.bf16.msra.mxu0 0
    %5230 = vmatprep.mubr.bf16.mxu0 0
    %5231 = vmatmul.mubr.bf16.gmra.mrb[0].mxu0 %v5193
    %v5232 = vpop.f32.mrb[0].mxu0
    %v5233 = vadd.f32 %v5168, %v5232
    %v5234 = vpop.f32.mrb[0].mxu0
    %v5235 = vpop.f32.mrb[0].mxu0
    %v5236 = vadd.f32 %v5171, %v5235
    %v5237 = vpop.f32.mrb[0].mxu0
    %5238 = vmatprep.mubr.bf16.mxu0 0
    %5239 = vmatmul.mubr.bf16.gmra.mrb[0].mxu0 %v5196
    %v5240 = vpop.f32.mrb[0].mxu0
    %v5241 = vadd.f32 %v5176, %v5240
    %v5242 = vpop.f32.mrb[0].mxu0
    %v5243 = vpop.f32.mrb[0].mxu0
    %v5244 = vadd.f32 %v5179, %v5243
    %v5245 = vpop.f32.mrb[0].mxu0
    %5246 = vdwg.mxu0
    %v5247 = vld [vmem:[#allocation7] sm:$0xff]
    %v5248 = vld [vmem:[#allocation7 + $0x8] sm:$0xff]
    %v5249 = vld [vmem:[#allocation7 + $0x10] sm:$0xff]
    %v5250 = vld [vmem:[#allocation7 + $0x18] sm:$0xff]
    %5252 = vset.pattern.permute.xlu0 11
    %5253 = vperm.xlu0 %5252, %v5247
    %v5254 = vpop.permute.xlu0 %5253
    %5257 = vset.pattern.permute.xlu0 11
    %5258 = vperm.xlu0 %5257, %v5248
    %v5259 = vpop.permute.xlu0 %5258
    %5262 = vset.pattern.permute.xlu0 11
    %5263 = vperm.xlu0 %5262, %v5249
    %v5264 = vpop.permute.xlu0 %5263
    %5267 = vset.pattern.permute.xlu0 11
    %5268 = vperm.xlu0 %5267, %v5250
    %v5269 = vpop.permute.xlu0 %5268
    %v5271 = vadd.f32 %v5233, %v5254
    %v5272 = vadd.f32 %v5236, %v5259
    %v5273 = vadd.f32 %v5241, %v5264
    %v5274 = vadd.f32 %v5244, %v5269
    %v5275 = vmax.f32 %v5271, 0.0
    %v5276 = vmax.f32 %v5272, 0.0
    %v5277 = vmax.f32 %v5273, 0.0
    %v5278 = vmax.f32 %v5274, 0.0
    %s5279 = scalar_lea.vmem [#allocation6], 544
    %v5280 = vld [vmem:[%s5279] sm:$0xf]
    %v5281 = vld [vmem:[%s5279 + $0x4] sm:$0xf]
    %v5282 = vld [vmem:[%s5279 + $0x8] sm:$0xf]
    %v5283 = vld [vmem:[%s5279 + $0xc] sm:$0xf]
    %v5284 = vpack.c.bf16 %v5276, %v5275
    %v5285 = vpack.c.bf16 %v5278, %v5277
    %5286 = vset.pattern.permute.xlu0 12
    %5287 = vperm.xlu0 %5286, %v5247
    %v5288 = vpop.permute.xlu0 %5287
    %5290 = vset.pattern.permute.xlu0 12
    %5291 = vperm.xlu0 %5290, %v5248
    %v5292 = vpop.permute.xlu0 %5291
    %5294 = vset.pattern.permute.xlu0 12
    %5295 = vperm.xlu0 %5294, %v5249
    %v5296 = vpop.permute.xlu0 %5295
    %5298 = vset.pattern.permute.xlu0 12
    %5299 = vperm.xlu0 %5298, %v5250
    %v5300 = vpop.permute.xlu0 %5299
    %v5306 = vunpack.c.l.b16 %v5280
    %v5307 = vunpack.c.l.b16 %v5281
    %v5308 = vunpack.c.l.b16 %v5282
    %v5309 = vunpack.c.l.b16 %v5283
    %v5310 = vpack.c.b16 %v5307, %v5306
    %v5311 = vpack.c.b16 %v5309, %v5308
    %v5313 = vsel %vm3943, %v5310, 0
    %v5316 = vsel %vm3943, %v5311, 0
    %5318 = vmatprep.subr.bf16.mxu0 0
    %5319 = vmatpush1.bf16.msra.mxu0 %v5284
    %5320 = vmatprep.subr.bf16.mxu0 0
    %5321 = vmatpush1.bf16.msra.mxu0 %v5285
    %5322 = vmatprep.subr.bf16.mxu0 0
    %5323 = vmatpush1.bf16.msra.mxu0 0
    %5324 = vmatprep.subr.bf16.mxu0 0
    %5325 = vmatpush1.bf16.msra.mxu0 0
    %5326 = vmatprep.subr.bf16.mxu0 0
    %5327 = vmatpush1.bf16.msra.mxu0 0
    %5328 = vmatprep.subr.bf16.mxu0 0
    %5329 = vmatpush1.bf16.msra.mxu0 0
    %5330 = vmatprep.subr.bf16.mxu0 0
    %5331 = vmatpush1.bf16.msra.mxu0 0
    %5332 = vmatprep.subr.bf16.mxu0 0
    %5333 = vmatpush1.bf16.msra.mxu0 0
    %5334 = vmatprep.subr.bf16.mxu0 0
    %5335 = vmatpush1.bf16.msra.mxu0 0
    %5336 = vmatprep.subr.bf16.mxu0 0
    %5337 = vmatpush1.bf16.msra.mxu0 0
    %5338 = vmatprep.subr.bf16.mxu0 0
    %5339 = vmatpush1.bf16.msra.mxu0 0
    %5340 = vmatprep.subr.bf16.mxu0 0
    %5341 = vmatpush1.bf16.msra.mxu0 0
    %5342 = vmatprep.subr.bf16.mxu0 0
    %5343 = vmatpush1.bf16.msra.mxu0 0
    %5344 = vmatprep.subr.bf16.mxu0 0
    %5345 = vmatpush1.bf16.msra.mxu0 0
    %5346 = vmatprep.subr.bf16.mxu0 0
    %5347 = vmatpush1.bf16.msra.mxu0 0
    %5348 = vmatprep.subr.bf16.mxu0 0
    %5349 = vmatpush1.bf16.msra.mxu0 0
    %5350 = vmatprep.mubr.bf16.mxu0 0
    %5351 = vmatmul.mubr.bf16.gmra.mrb[0].mxu0 %v5313
    %v5352 = vpop.f32.mrb[0].mxu0
    %v5353 = vadd.f32 %v5288, %v5352
    %v5354 = vpop.f32.mrb[0].mxu0
    %v5355 = vpop.f32.mrb[0].mxu0
    %v5356 = vadd.f32 %v5292, %v5355
    %v5357 = vpop.f32.mrb[0].mxu0
    %5358 = vmatprep.mubr.bf16.mxu0 0
    %5359 = vmatmul.mubr.bf16.gmra.mrb[0].mxu0 %v5316
    %v5360 = vpop.f32.mrb[0].mxu0
    %v5361 = vadd.f32 %v5296, %v5360
    %v5362 = vpop.f32.mrb[0].mxu0
    %v5363 = vpop.f32.mrb[0].mxu0
    %v5364 = vadd.f32 %v5300, %v5363
    %v5365 = vpop.f32.mrb[0].mxu0
    %5366 = vdwg.mxu0
    %v5367 = vmax.f32 %v5353, 0.0
    %v5368 = vmax.f32 %v5356, 0.0
    %v5369 = vmax.f32 %v5361, 0.0
    %v5370 = vmax.f32 %v5364, 0.0
    %s5371 = scalar_lea.vmem [#allocation6], 576
    %v5372 = vld [vmem:[%s5371] sm:$0xf]
    %v5373 = vpack.c.bf16 %v5368, %v5367
    %v5374 = vpack.c.bf16 %v5370, %v5369
    %v5375 = vld [vmem:[#allocation7] sm:$0x3]
    %5377 = vset.pattern.permute.xlu0 13
    %5378 = vperm.xlu0 %5377, %v5375
    %v5379 = vpop.permute.xlu0 %5378
    %v5382 = vsel %vm3943, %v5372, 0
    %5384 = vmatprep.subr.bf16.mxu0 0
    %5385 = vmatpush1.bf16.msra.mxu0 %v5373
    %5386 = vmatprep.subr.bf16.mxu0 0
    %5387 = vmatpush1.bf16.msra.mxu0 %v5374
    %5388 = vmatprep.subr.bf16.mxu0 0
    %5389 = vmatpush1.bf16.msra.mxu0 0
    %5390 = vmatprep.subr.bf16.mxu0 0
    %5391 = vmatpush1.bf16.msra.mxu0 0
    %5392 = vmatprep.subr.bf16.mxu0 0
    %5393 = vmatpush1.bf16.msra.mxu0 0
    %5394 = vmatprep.subr.bf16.mxu0 0
    %5395 = vmatpush1.bf16.msra.mxu0 0
    %5396 = vmatprep.subr.bf16.mxu0 0
    %5397 = vmatpush1.bf16.msra.mxu0 0
    %5398 = vmatprep.subr.bf16.mxu0 0
    %5399 = vmatpush1.bf16.msra.mxu0 0
    %5400 = vmatprep.subr.bf16.mxu0 0
    %5401 = vmatpush1.bf16.msra.mxu0 0
    %5402 = vmatprep.subr.bf16.mxu0 0
    %5403 = vmatpush1.bf16.msra.mxu0 0
    %5404 = vmatprep.subr.bf16.mxu0 0
    %5405 = vmatpush1.bf16.msra.mxu0 0
    %5406 = vmatprep.subr.bf16.mxu0 0
    %5407 = vmatpush1.bf16.msra.mxu0 0
    %5408 = vmatprep.subr.bf16.mxu0 0
    %5409 = vmatpush1.bf16.msra.mxu0 0
    %5410 = vmatprep.subr.bf16.mxu0 0
    %5411 = vmatpush1.bf16.msra.mxu0 0
    %5412 = vmatprep.subr.bf16.mxu0 0
    %5413 = vmatpush1.bf16.msra.mxu0 0
    %5414 = vmatprep.subr.bf16.mxu0 0
    %5415 = vmatpush1.bf16.msra.mxu0 0
    %5416 = vmatprep.mubr.bf16.mxu0 0
    %5417 = vmatmul.mubr.bf16.gmra.mrb[0].mxu0 %v5382
    %v5418 = vpop.f32.mrb[0].mxu0
    %v5419 = vadd.f32 %v5379, %v5418
    %v5420 = vpop.f32.mrb[0].mxu0
    %v5421 = vpop.f32.mrb[0].mxu0
    %v5422 = vpop.f32.mrb[0].mxu0
    %5423 = vdwg.mxu0
    %v5424 = vadd.f32 %v79, %v5419
    %vm5425 = vcmask 222208
    %5426 = vst.msk [vmem:[%s6] sm:$0x3] %vm5425, %v5424
    // Predicated region
    $region38: #{fwd.1} parent=1 // pred_check
      _
    $region39: #{fwd.1} parent=1 // pred_check_branch
      %5428 = sbr.rel (0) target = $region41
    $region40: #{fwd.1} parent=1 // pred_region
      _
    $region41: #{fwd.1} parent=1 // pred_fallthru
      _
    // Predicated region
    $region42: #{fwd.1} parent=1 // pred_check
      _
    $region43: #{fwd.1} parent=1 // pred_check_branch
      %5430 = sbr.rel (0) target = $region45
    $region44: #{fwd.1} parent=1 // pred_region
      _
    $region45: #{fwd.1} parent=1 // pred_fallthru
      _
    // Predicated region
    $region46: #{fwd.1} parent=1 // pred_check
      _
    $region47: #{fwd.1} parent=1 // pred_check_branch
      %5432 = sbr.rel (0) target = $region49
    $region48: #{fwd.1} parent=1 // pred_region
      _
    $region49: #{fwd.1} parent=1 // pred_fallthru
      _
    // Predicated region
    $region50: #{fwd.1} parent=1 // pred_check
      _
    $region51: #{fwd.1} parent=1 // pred_check_branch
      %5434 = sbr.rel (0) target = $region53
    $region52: #{fwd.1} parent=1 // pred_region
      _
    $region53: #{fwd.1} parent=1 // pred_fallthru
      _
    // Predicated region
    $region54: #{fwd.1} parent=1 // pred_check
      _
    $region55: #{fwd.1} parent=1 // pred_check_branch
      %5436 = sbr.rel (0) target = $region57
    $region56: #{fwd.1} parent=1 // pred_region
      _
    $region57: #{fwd.1} parent=1 // pred_fallthru
      _
    // Predicated region
    $region58: #{fwd.1} parent=1 // pred_check
      _
    $region59: #{fwd.1} parent=1 // pred_check_branch
      %5438 = sbr.rel (0) target = $region61
    $region60: #{fwd.1} parent=1 // pred_region
      _
    $region61: #{fwd.1} parent=1 // pred_fallthru
      _
    %5439 = vsyncpa [#allocation3], 1
    %5440 = vsyncpa [#allocation5], 1
    %5441 = vsyncpa [#allocation8], 1

</llo_original>
